<compile_context>
chip_gen: v7x
topology: tpu7x:2x2x1
jax: 0.10.0
libtpu: 0.0.40
codegen_flags: <defaults>
</compile_context>

<pallas_src>
import math
import numpy as np
import jax
import jax.numpy as jnp
from jax.experimental import pallas as pl
from jax.experimental.pallas import tpu as pltpu


# ---------------- configuration (mirrors SincConv_fast.__init__ args) ----------------
IN_CHANNELS = 1
OUT_CHANNELS = 8
KERNEL_SIZE = 16            # even -> module bumps it to 17
STRIDE = 1
PADDING = "VALID"
PAD_MODE = "reflect"
DILATION = 1
SAMPLE_RATE = 16000
MIN_LOW_HZ = 50.0
MIN_BAND_HZ = 50.0

K = KERNEL_SIZE + 1 if KERNEL_SIZE % 2 == 0 else KERNEL_SIZE   # 17
HALO = 128                  # lane-aligned halo block (>= K - 1 = 16)
T_TILE_MAX = 16384          # max lane-dense output tile width (multiple of 128)


def to_mel(hz):
    return 2595 * np.log10(1 + hz / 700)


def to_hz(mel):
    return 700 * (10 ** (mel / 2595) - 1)


def init_sinc_params():
    """Learned-parameter construction, mirroring SincConv_fast.__init__."""
    low_hz = 30.0
    high_hz = SAMPLE_RATE / 2 - (MIN_LOW_HZ + MIN_BAND_HZ)
    mel = np.linspace(to_mel(low_hz), to_mel(high_hz), OUT_CHANNELS + 1)
    hz = to_hz(mel)
    return dict(
        low_hz_=jnp.asarray(hz[:-1].reshape(-1, 1), jnp.float32),      # (C,1)
        band_hz_=jnp.asarray(np.diff(hz).reshape(-1, 1), jnp.float32),  # (C,1)
    )


def compute_filters(low_hz_, band_hz_):
    """(C, K) sinc filter bank — tiny (768 B), computed once in XLA per forward,
    exactly mirroring the torch forward's filter construction."""
    k_half = K // 2
    n_lin = np.linspace(0, K / 2 - 1, num=k_half)
    window_ = jnp.asarray(0.54 - 0.46 * np.cos(2 * math.pi * n_lin / K), jnp.float32)
    n_ = jnp.asarray(
        (2 * math.pi * np.arange(-(K - 1) / 2.0, 0) / SAMPLE_RATE).reshape(1, -1),
        jnp.float32)
    low = MIN_LOW_HZ + jnp.abs(low_hz_)                                  # (C,1)
    high = jnp.clip(low + MIN_BAND_HZ + jnp.abs(band_hz_),
                    MIN_LOW_HZ, SAMPLE_RATE / 2.0)                       # (C,1)
    band = (high - low)[:, 0]                                            # (C,)
    f_t_low = low @ n_
    f_t_high = high @ n_
    # NOTE: band == 0 (params pushed to Nyquist) divides by zero here, exactly
    # like the original PyTorch module.
    bp_left = (jnp.sin(f_t_high) - jnp.sin(f_t_low)) / (n_ / 2.0) * window_
    bp_center = 2.0 * band.reshape(-1, 1)
    bp_right = jnp.flip(bp_left, axis=1)
    bp = jnp.concatenate([bp_left, bp_center, bp_right], axis=1) / (2.0 * band[:, None])
    return bp.astype(jnp.float32)                                        # (C, K)


# ---------------- Pallas kernel: tiled 17-tap VPU MAC (VALID 1-D conv) ----------------
def _make_sinc_conv_kernel(t_tile):
    C = OUT_CHANNELS

    def kernel(filt_ref, x_ref, xh_ref, o_ref):
        # Halo'd signal for this tile: current t_tile samples + 128-sample halo.
        x = jnp.concatenate([x_ref[0], xh_ref[0]], axis=1)        # (1, t_tile + HALO)
        # One-time sublane broadcast (hoisted out of the tap loop) so every tap
        # below is a dense lane-shifted slice + VPU multiply-accumulate.
        xb = jnp.broadcast_to(x, (C, t_tile + HALO))              # (C, t_tile + HALO)
        filt = filt_ref[...]                                      # (C, K)

        # 17-tap shifted MAC into a (C, t_tile) f32 accumulator value.
        acc = filt[:, 0:1] * xb[:, 0:t_tile]
        for k in range(1, K):
            acc = acc + filt[:, k:k + 1] * xb[:, k:k + t_tile]
        o_ref[0] = acc.astype(o_ref.dtype)

    return kernel


# ---------------- wrapper ----------------
def sinc_conv_forward(waveforms, params):
    C = OUT_CHANNELS
    B, Cin, T = waveforms.shape
    assert Cin == 1, "SincConv only supports one input channel"
    x = waveforms.astype(jnp.float32)                 # NCW = (B, 1, T)

    # padding handling (wrapper glue); module config here is 'VALID'
    if PADDING == "SAME":
        pad_l = K // 2 - 1 if STRIDE > 1 else K // 2
        x = jnp.pad(x, ((0, 0), (0, 0), (pad_l, K // 2)), mode=PAD_MODE)

    # TODO(synk): stride > 1 / dilation > 1 (strided in-kernel slicing) not implemented.
    assert STRIDE == 1 and DILATION == 1

    T_in = x.shape[2]
    t_out = T_in - K + 1
    assert t_out > 0
    # Biggest lane-dense tile that the signal actually needs, capped by T_TILE_MAX.
    t_tile = min(T_TILE_MAX, ((t_out + 127) // 128) * 128)
    n_t = (t_out + t_tile - 1) // t_tile

    halo_stride = t_tile // HALO                    # halo block-index step per time tile
    last_halo_blk = (T_in + HALO - 1) // HALO - 1   # last in-bounds 128-wide block of x

    filters = compute_filters(params["low_hz_"], params["band_hz_"])   # (C, K)

    def halo_map(b, t):
        # The 128 samples right after the current tile; clamped at the end of the
        # signal.  When clamping kicks in, every output that would have used the
        # halo lies past t_out and is never written (partial last output block).
        return (b, 0, jnp.minimum((t + 1) * halo_stride, last_halo_blk))

    grid_spec = pltpu.PrefetchScalarGridSpec(
        num_scalar_prefetch=0,
        grid=(B, n_t),
        in_specs=[
            pl.BlockSpec((C, K), lambda b, t: (0, 0)),              # filter bank (resident)
            pl.BlockSpec((1, 1, t_tile), lambda b, t: (b, 0, t)),   # current tile of x
            pl.BlockSpec((1, 1, HALO), halo_map),                   # 128-sample halo
        ],
        out_specs=pl.BlockSpec((1, C, t_tile), lambda b, t: (b, 0, t)),
    )

    return pl.pallas_call(
        _make_sinc_conv_kernel(t_tile),
        out_shape=jax.ShapeDtypeStruct((B, C, t_out), jnp.float32),  # exact size, no slice
        grid_spec=grid_spec,
        compiler_params=pltpu.CompilerParams(
            dimension_semantics=("parallel", "parallel"),   # both axes stateless
            vmem_limit_bytes=32 * 1024 * 1024,              # ~2-3 MiB actually used
        ),
    )(filters, x, x)


# ---------------- pure-JAX reference (mirrors the torch code) ----------------
def sinc_conv_reference(waveforms):
    low_hz = 30.0
    high_hz = SAMPLE_RATE / 2 - (MIN_LOW_HZ + MIN_BAND_HZ)
    mel = np.linspace(to_mel(low_hz), to_mel(high_hz), OUT_CHANNELS + 1)
    hz = to_hz(mel)
    low_hz_ = jnp.asarray(hz[:-1].reshape(-1, 1), jnp.float32)
    band_hz_ = jnp.asarray(np.diff(hz).reshape(-1, 1), jnp.float32)
    k_half = K // 2
    n_lin = np.linspace(0, K / 2 - 1, num=k_half)
    window_ = jnp.asarray(0.54 - 0.46 * np.cos(2 * math.pi * n_lin / K), jnp.float32)
    n_ = jnp.asarray((2 * math.pi * np.arange(-(K - 1) / 2.0, 0) / SAMPLE_RATE).reshape(1, -1),
                     jnp.float32)

    low = MIN_LOW_HZ + jnp.abs(low_hz_)
    high = jnp.clip(low + MIN_BAND_HZ + jnp.abs(band_hz_), MIN_LOW_HZ, SAMPLE_RATE / 2)
    band = (high - low)[:, 0]
    f_t_low = low @ n_
    f_t_high = high @ n_
    bp_left = (jnp.sin(f_t_high) - jnp.sin(f_t_low)) / (n_ / 2) * window_
    bp_center = 2 * band.reshape(-1, 1)
    bp_right = jnp.flip(bp_left, axis=1)
    bp = jnp.concatenate([bp_left, bp_center, bp_right], axis=1) / (2 * band[:, None])
    filters = bp.reshape(OUT_CHANNELS, 1, K)
    return jax.lax.conv_general_dilated(
        waveforms, filters, window_strides=(1,), padding="VALID",
        rhs_dilation=(1,), dimension_numbers=("NCH", "OIH", "NCH"),
        precision=jax.lax.Precision.HIGHEST)


if __name__ == "__main__":
    key = jax.random.PRNGKey(0)
    B, T = 2, 4096                               # ~0.25 s of 16 kHz audio per item
    waveforms = jax.random.normal(key, (B, IN_CHANNELS, T), dtype=jnp.float32)

    params = init_sinc_params()
    out = jax.block_until_ready(sinc_conv_forward(waveforms, params))

    ref = jax.block_until_ready(sinc_conv_reference(waveforms))
    # Kernel accumulates the 17 taps in exact f32 on the VPU; reference uses
    # Precision.HIGHEST conv, so agreement should be tight.
    np.testing.assert_allclose(np.asarray(out), np.asarray(ref), rtol=1e-3, atol=1e-3)

    print("KERNEL_OK")
</pallas_src>

<mosaic_0001>
module attributes {stable_mosaic.version = 11 : i64} {
  func.func @kernel(%arg0: i32, %arg1: i32, %arg2: memref<8x17xf32, #tpu.memory_space<vmem>>, %arg3: memref<1x1x4096xf32, #tpu.memory_space<vmem>>, %arg4: memref<1x1x128xf32, #tpu.memory_space<vmem>>, %arg5: memref<1x8x4096xf32, #tpu.memory_space<vmem>>) attributes {dimension_semantics = [#tpu.dimension_semantics<parallel>, #tpu.dimension_semantics<parallel>], iteration_bounds = array<i64: 2, 1>, scalar_prefetch = 0 : i64, scratch_operands = 0 : i64, tpu.core_type = #tpu.core_type<tc>, window_params = [{pipeline_mode = #tpu.pipeline_mode<synchronous>, transform_indices = @transform_0, window_bounds = array<i64: 8, 17>}, {transform_indices = @transform_1, window_bounds = array<i64: 1, 1, 4096>}, {transform_indices = @transform_2, window_bounds = array<i64: 1, 1, 128>}, {transform_indices = @transform_3, window_bounds = array<i64: 1, 8, 4096>}]} {
    %c0 = arith.constant 0 : index
    %c0_0 = arith.constant 0 : index
    %c0_1 = arith.constant 0 : index
    %0 = vector.load %arg3[%c0, %c0_0, %c0_1] : memref<1x1x4096xf32, #tpu.memory_space<vmem>>, vector<1x1x4096xf32>
    %1 = vector.shape_cast %0 : vector<1x1x4096xf32> to vector<1x4096xf32>
    %c0_2 = arith.constant 0 : index
    %c0_3 = arith.constant 0 : index
    %c0_4 = arith.constant 0 : index
    %2 = vector.load %arg4[%c0_2, %c0_3, %c0_4] : memref<1x1x128xf32, #tpu.memory_space<vmem>>, vector<1x1x128xf32>
    %3 = vector.shape_cast %2 : vector<1x1x128xf32> to vector<1x128xf32>
    %4 = tpu.concatenate %1, %3 in 1 : vector<1x4096xf32>, vector<1x128xf32> -> vector<1x4224xf32>
    %5 = vector.shape_cast %4 : vector<1x4224xf32> to vector<1x4224xf32>
    %6 = vector.broadcast %5 : vector<1x4224xf32> to vector<8x4224xf32>
    %c0_5 = arith.constant 0 : index
    %c0_6 = arith.constant 0 : index
    %7 = vector.load %arg2[%c0_5, %c0_6] : memref<8x17xf32, #tpu.memory_space<vmem>>, vector<8x17xf32>
    %8 = vector.extract_strided_slice %7 {offsets = [0, 0], sizes = [8, 1], strides = [1, 1]} : vector<8x17xf32> to vector<8x1xf32>
    %9 = vector.extract_strided_slice %6 {offsets = [0, 0], sizes = [8, 4096], strides = [1, 1]} : vector<8x4224xf32> to vector<8x4096xf32>
    %10 = vector.broadcast %8 : vector<8x1xf32> to vector<8x4096xf32>
    %11 = arith.mulf %10, %9 : vector<8x4096xf32>
    %12 = vector.extract_strided_slice %7 {offsets = [0, 1], sizes = [8, 1], strides = [1, 1]} : vector<8x17xf32> to vector<8x1xf32>
    %13 = vector.extract_strided_slice %6 {offsets = [0, 1], sizes = [8, 4096], strides = [1, 1]} : vector<8x4224xf32> to vector<8x4096xf32>
    %14 = vector.broadcast %12 : vector<8x1xf32> to vector<8x4096xf32>
    %15 = arith.mulf %14, %13 : vector<8x4096xf32>
    %16 = arith.addf %11, %15 : vector<8x4096xf32>
    %17 = vector.extract_strided_slice %7 {offsets = [0, 2], sizes = [8, 1], strides = [1, 1]} : vector<8x17xf32> to vector<8x1xf32>
    %18 = vector.extract_strided_slice %6 {offsets = [0, 2], sizes = [8, 4096], strides = [1, 1]} : vector<8x4224xf32> to vector<8x4096xf32>
    %19 = vector.broadcast %17 : vector<8x1xf32> to vector<8x4096xf32>
    %20 = arith.mulf %19, %18 : vector<8x4096xf32>
    %21 = arith.addf %16, %20 : vector<8x4096xf32>
    %22 = vector.extract_strided_slice %7 {offsets = [0, 3], sizes = [8, 1], strides = [1, 1]} : vector<8x17xf32> to vector<8x1xf32>
    %23 = vector.extract_strided_slice %6 {offsets = [0, 3], sizes = [8, 4096], strides = [1, 1]} : vector<8x4224xf32> to vector<8x4096xf32>
    %24 = vector.broadcast %22 : vector<8x1xf32> to vector<8x4096xf32>
    %25 = arith.mulf %24, %23 : vector<8x4096xf32>
    %26 = arith.addf %21, %25 : vector<8x4096xf32>
    %27 = vector.extract_strided_slice %7 {offsets = [0, 4], sizes = [8, 1], strides = [1, 1]} : vector<8x17xf32> to vector<8x1xf32>
    %28 = vector.extract_strided_slice %6 {offsets = [0, 4], sizes = [8, 4096], strides = [1, 1]} : vector<8x4224xf32> to vector<8x4096xf32>
    %29 = vector.broadcast %27 : vector<8x1xf32> to vector<8x4096xf32>
    %30 = arith.mulf %29, %28 : vector<8x4096xf32>
    %31 = arith.addf %26, %30 : vector<8x4096xf32>
    %32 = vector.extract_strided_slice %7 {offsets = [0, 5], sizes = [8, 1], strides = [1, 1]} : vector<8x17xf32> to vector<8x1xf32>
    %33 = vector.extract_strided_slice %6 {offsets = [0, 5], sizes = [8, 4096], strides = [1, 1]} : vector<8x4224xf32> to vector<8x4096xf32>
    %34 = vector.broadcast %32 : vector<8x1xf32> to vector<8x4096xf32>
    %35 = arith.mulf %34, %33 : vector<8x4096xf32>
    %36 = arith.addf %31, %35 : vector<8x4096xf32>
    %37 = vector.extract_strided_slice %7 {offsets = [0, 6], sizes = [8, 1], strides = [1, 1]} : vector<8x17xf32> to vector<8x1xf32>
    %38 = vector.extract_strided_slice %6 {offsets = [0, 6], sizes = [8, 4096], strides = [1, 1]} : vector<8x4224xf32> to vector<8x4096xf32>
    %39 = vector.broadcast %37 : vector<8x1xf32> to vector<8x4096xf32>
    %40 = arith.mulf %39, %38 : vector<8x4096xf32>
    %41 = arith.addf %36, %40 : vector<8x4096xf32>
    %42 = vector.extract_strided_slice %7 {offsets = [0, 7], sizes = [8, 1], strides = [1, 1]} : vector<8x17xf32> to vector<8x1xf32>
    %43 = vector.extract_strided_slice %6 {offsets = [0, 7], sizes = [8, 4096], strides = [1, 1]} : vector<8x4224xf32> to vector<8x4096xf32>
    %44 = vector.broadcast %42 : vector<8x1xf32> to vector<8x4096xf32>
    %45 = arith.mulf %44, %43 : vector<8x4096xf32>
    %46 = arith.addf %41, %45 : vector<8x4096xf32>
    %47 = vector.extract_strided_slice %7 {offsets = [0, 8], sizes = [8, 1], strides = [1, 1]} : vector<8x17xf32> to vector<8x1xf32>
    %48 = vector.extract_strided_slice %6 {offsets = [0, 8], sizes = [8, 4096], strides = [1, 1]} : vector<8x4224xf32> to vector<8x4096xf32>
    %49 = vector.broadcast %47 : vector<8x1xf32> to vector<8x4096xf32>
    %50 = arith.mulf %49, %48 : vector<8x4096xf32>
    %51 = arith.addf %46, %50 : vector<8x4096xf32>
    %52 = vector.extract_strided_slice %7 {offsets = [0, 9], sizes = [8, 1], strides = [1, 1]} : vector<8x17xf32> to vector<8x1xf32>
    %53 = vector.extract_strided_slice %6 {offsets = [0, 9], sizes = [8, 4096], strides = [1, 1]} : vector<8x4224xf32> to vector<8x4096xf32>
    %54 = vector.broadcast %52 : vector<8x1xf32> to vector<8x4096xf32>
    %55 = arith.mulf %54, %53 : vector<8x4096xf32>
    %56 = arith.addf %51, %55 : vector<8x4096xf32>
    %57 = vector.extract_strided_slice %7 {offsets = [0, 10], sizes = [8, 1], strides = [1, 1]} : vector<8x17xf32> to vector<8x1xf32>
    %58 = vector.extract_strided_slice %6 {offsets = [0, 10], sizes = [8, 4096], strides = [1, 1]} : vector<8x4224xf32> to vector<8x4096xf32>
    %59 = vector.broadcast %57 : vector<8x1xf32> to vector<8x4096xf32>
    %60 = arith.mulf %59, %58 : vector<8x4096xf32>
    %61 = arith.addf %56, %60 : vector<8x4096xf32>
    %62 = vector.extract_strided_slice %7 {offsets = [0, 11], sizes = [8, 1], strides = [1, 1]} : vector<8x17xf32> to vector<8x1xf32>
    %63 = vector.extract_strided_slice %6 {offsets = [0, 11], sizes = [8, 4096], strides = [1, 1]} : vector<8x4224xf32> to vector<8x4096xf32>
    %64 = vector.broadcast %62 : vector<8x1xf32> to vector<8x4096xf32>
    %65 = arith.mulf %64, %63 : vector<8x4096xf32>
    %66 = arith.addf %61, %65 : vector<8x4096xf32>
    %67 = vector.extract_strided_slice %7 {offsets = [0, 12], sizes = [8, 1], strides = [1, 1]} : vector<8x17xf32> to vector<8x1xf32>
    %68 = vector.extract_strided_slice %6 {offsets = [0, 12], sizes = [8, 4096], strides = [1, 1]} : vector<8x4224xf32> to vector<8x4096xf32>
    %69 = vector.broadcast %67 : vector<8x1xf32> to vector<8x4096xf32>
    %70 = arith.mulf %69, %68 : vector<8x4096xf32>
    %71 = arith.addf %66, %70 : vector<8x4096xf32>
    %72 = vector.extract_strided_slice %7 {offsets = [0, 13], sizes = [8, 1], strides = [1, 1]} : vector<8x17xf32> to vector<8x1xf32>
    %73 = vector.extract_strided_slice %6 {offsets = [0, 13], sizes = [8, 4096], strides = [1, 1]} : vector<8x4224xf32> to vector<8x4096xf32>
    %74 = vector.broadcast %72 : vector<8x1xf32> to vector<8x4096xf32>
    %75 = arith.mulf %74, %73 : vector<8x4096xf32>
    %76 = arith.addf %71, %75 : vector<8x4096xf32>
    %77 = vector.extract_strided_slice %7 {offsets = [0, 14], sizes = [8, 1], strides = [1, 1]} : vector<8x17xf32> to vector<8x1xf32>
    %78 = vector.extract_strided_slice %6 {offsets = [0, 14], sizes = [8, 4096], strides = [1, 1]} : vector<8x4224xf32> to vector<8x4096xf32>
    %79 = vector.broadcast %77 : vector<8x1xf32> to vector<8x4096xf32>
    %80 = arith.mulf %79, %78 : vector<8x4096xf32>
    %81 = arith.addf %76, %80 : vector<8x4096xf32>
    %82 = vector.extract_strided_slice %7 {offsets = [0, 15], sizes = [8, 1], strides = [1, 1]} : vector<8x17xf32> to vector<8x1xf32>
    %83 = vector.extract_strided_slice %6 {offsets = [0, 15], sizes = [8, 4096], strides = [1, 1]} : vector<8x4224xf32> to vector<8x4096xf32>
    %84 = vector.broadcast %82 : vector<8x1xf32> to vector<8x4096xf32>
    %85 = arith.mulf %84, %83 : vector<8x4096xf32>
    %86 = arith.addf %81, %85 : vector<8x4096xf32>
    %87 = vector.extract_strided_slice %7 {offsets = [0, 16], sizes = [8, 1], strides = [1, 1]} : vector<8x17xf32> to vector<8x1xf32>
    %88 = vector.extract_strided_slice %6 {offsets = [0, 16], sizes = [8, 4096], strides = [1, 1]} : vector<8x4224xf32> to vector<8x4096xf32>
    %89 = vector.broadcast %87 : vector<8x1xf32> to vector<8x4096xf32>
    %90 = arith.mulf %89, %88 : vector<8x4096xf32>
    %91 = arith.addf %86, %90 : vector<8x4096xf32>
    %c0_7 = arith.constant 0 : index
    %c0_8 = arith.constant 0 : index
    %c0_9 = arith.constant 0 : index
    %92 = vector.load %arg5[%c0_7, %c0_8, %c0_9] : memref<1x8x4096xf32, #tpu.memory_space<vmem>>, vector<1x8x4096xf32>
    %93 = vector.shape_cast %92 : vector<1x8x4096xf32> to vector<8x4096xf32>
    %94 = vector.shape_cast %91 : vector<8x4096xf32> to vector<1x8x4096xf32>
    tpu.vector_store %arg5[%c0_7, %c0_8, %c0_9], %94 {strides = array<i32>} : memref<1x8x4096xf32, #tpu.memory_space<vmem>>, vector<1x8x4096xf32>,
    return
  }
  func.func @transform_0(%arg0: i32, %arg1: i32) -> (i32, i32) {
    %c0_i32 = arith.constant 0 : i32
    %c0_i32_0 = arith.constant 0 : i32
    %c0_i32_1 = arith.constant 0 : i32
    return %c0_i32, %c0_i32_0 : i32, i32
  }
  func.func @transform_1(%arg0: i32, %arg1: i32) -> (i32, i32, i32) {
    %c0_i32 = arith.constant 0 : i32
    %c0_i32_0 = arith.constant 0 : i32
    return %arg0, %c0_i32, %arg1 : i32, i32, i32
  }
  func.func @transform_2(%arg0: i32, %arg1: i32) -> (i32, i32, i32) {
    %c1_i32 = arith.constant 1 : i32
    %0 = arith.addi %arg1, %c1_i32 : i32
    %c32_i32 = arith.constant 32 : i32
    %1 = arith.muli %0, %c32_i32 : i32
    %c31_i32 = arith.constant 31 : i32
    %2 = arith.minsi %1, %c31_i32 : i32
    %c0_i32 = arith.constant 0 : i32
    %c0_i32_0 = arith.constant 0 : i32
    return %arg0, %c0_i32, %2 : i32, i32, i32
  }
  func.func @transform_3(%arg0: i32, %arg1: i32) -> (i32, i32, i32) {
    %c0_i32 = arith.constant 0 : i32
    %c0_i32_0 = arith.constant 0 : i32
    return %arg0, %c0_i32, %arg1 : i32, i32, i32
  }
}

</mosaic_0001>

<llo_original>
// kernel: tpu_custom_call.1
$region0: #{tpu_custom_call.1}
  #allocation0 [shape = 'u32[]', space=smem, size = 0x4, offset = 0x4, fixed_abs, tag = 'smem constant byte address 0x4 - core index']
  #allocation1 [shape = 'u32[144,128]{1,0:T(1,128)}', space=vmem, size = 0x12000, scoped, tag = 'internal scratch']
  %s0 = inlined_call_operand.hbm [shape: f32[8,17], index: 0, kind: input, shape index: {}]
  %s1 = inlined_call_operand.hbm [shape: f32[2,1,4096], index: 1, kind: input, shape index: {}]
  %s2 = inlined_call_operand.hbm [shape: f32[2,1,4096], index: 2, kind: input, shape index: {}]
  %s3 = inlined_call_operand.hbm [shape: f32[2,8,4080], index: 3, kind: output, shape index: {}]
  %s4 = sld [smem:[#allocation0]]
  $region57: #{tpu_custom_call.1} parent=0
    _
  %s6 = ssub.s32 1, %s4
  %s7 = scalar_select 0, %s6, %s4
  $region1: #{tpu_custom_call.1} parent=0
    #allocation2 [shape = 'u8[4096]{0}', space=vmem, size = 0x1000, scoped, tag = 'input window, operand 0, single buffered']
    #allocation3 [shape = 's32[2]{0}', space=sflag, size = 0x8, scoped, tag = 'scoped memory for tpu_custom_call.1']
    #allocation4 [shape = 's32[2]{0}', space=sflag, size = 0x8, scoped, tag = 'scoped memory for tpu_custom_call.1']
    #allocation5 [shape = 'u8[32768]{0}', space=vmem, size = 0x8000, scoped, tag = 'input window, operand 1']
    #allocation6 [shape = 's32[2]{0}', space=sflag, size = 0x8, scoped, tag = 'scoped memory for tpu_custom_call.1']
    #allocation7 [shape = 'u8[1024]{0}', space=vmem, size = 0x400, scoped, tag = 'input window, operand 2']
    #allocation8 [shape = 'u8[262144]{0}', space=vmem, size = 0x40000, scoped, tag = 'output window, operand 0']
    %8 = vsyncpa [#allocation3], 0
    %9 = vsyncpa [#allocation6], 0
    %s10 = scalar_lea.sflag [#allocation6], 1
    %11 = vsyncpa %s10, 0
    %12 = vsyncpa [#allocation4], 0
    %s13 = scalar_lea.sflag [#allocation4], 1
    %14 = vsyncpa %s13, 0
    loop: start=0, step=1, limit=4
    $region2: #{tpu_custom_call.1} parent=1 // loop_pre_header
      _
    $region3: #{tpu_custom_call.1} parent=1 // loop_header
      %s16 = sphi 0, %s20
      %p17 = scmp.ge.s32.totalorder %s16, 4
      %s23 = sphi 0, %s35
      %s24 = sphi 0, %s31
      %s25 = sphi 0, %s23
      %s26 = sphi 0, %s24
      %s27 = sphi 0, %s25
      %s28 = sphi 0, %s26
      %s36 = sphi 0, %s36
      %s38 = sphi 0, %s36
      %s39 = sphi 0, %s38
      %s53 = sphi 0, %s39
      %s61 = sphi 0, %s63
      %s64 = sphi 0, %s61
      %s65 = sphi 0, %s64
      %s81 = sphi 0, %s65
      %s97 = sphi 0, %s99
      %s100 = sphi 0, %s97
      %s101 = sphi 0, %s100
      %s117 = sphi 0, %s101
      %s125 = sphi 0, %s127
      %s128 = sphi 0, %s125
      %s129 = sphi 0, %s128
      %s145 = sphi 0, %s129
    $region4: #{tpu_custom_call.1} parent=1 // loop_header_branch
      %19 = sbr.rel (%p17) target = $region8
    $region5: #{tpu_custom_call.1} parent=1 // loop_body
      %s21 = ssub.s32 %s16, 1
      %s22 = ssub.s32 %s16, 2
      %s29 = sadd.s32 1, %s24
      %p30 = scmp.ge.s32.totalorder %s29, 1
      %s31 = scalar_select %p30, 0, %s29
      %s32 = sadd.s32 1, %s23
      %s33 = scalar_select %p30, %s32, %s23
      %p34 = scmp.ge.s32.totalorder %s33, 2
      %s35 = scalar_select %p34, 0, %s33
      %s37 = sadd.s32 %s36, 1
      %p40 = scmp.eq.s32.totalorder %s16, 1
      %p41 = scmp.ne.s32.totalorder %s36, %s38
      %p42 = scmp.eq.s32.totalorder %s16, 0
      %p43 = por %p41, %p42
      %p44 = scmp.ne.s32.totalorder %s36, %s38
      %p45 = scmp.eq.s32.totalorder %s21, 1
      %p46 = por %p44, %p45
      %p47 = scmp.ne.s32.totalorder %s38, %s39
      %p48 = scmp.eq.s32.totalorder %s21, 0
      %p49 = por %p47, %p48
      %p50 = scmp.ne.s32.totalorder %s38, %s39
      %p51 = scmp.eq.s32.totalorder %s22, 1
      %p52 = por %p50, %p51
      %p54 = scmp.ne.s32.totalorder %s39, %s53
      %p55 = scmp.eq.s32.totalorder %s22, 0
      %p56 = por %p54, %p55
      %s57 = ssub.s32 %s23, %s35
      %s58 = ssub.s32 %s24, %s31
      %s59 = sor.u32 %s57, %s58
      %p60 = scmp.eq.s32.totalorder %s59, 0
      %s62 = sadd.s32 %s61, 1
      %s63 = scalar_select %p60, %s61, %s62
      %p66 = pneg %p60
      %p67 = scmp.eq.s32.totalorder %s16, 1
      %p68 = por %p66, %p67
      %p69 = scmp.ne.s32.totalorder %s61, %s64
      %p70 = scmp.eq.s32.totalorder %s16, 0
      %p71 = por %p69, %p70
      %p72 = scmp.ne.s32.totalorder %s61, %s64
      %p73 = scmp.eq.s32.totalorder %s21, 1
      %p74 = por %p72, %p73
      %p75 = scmp.ne.s32.totalorder %s64, %s65
      %p76 = scmp.eq.s32.totalorder %s21, 0
      %p77 = por %p75, %p76
      %p78 = scmp.ne.s32.totalorder %s64, %s65
      %p79 = scmp.eq.s32.totalorder %s22, 1
      %p80 = por %p78, %p79
      %p82 = scmp.ne.s32.totalorder %s65, %s81
      %p83 = scmp.eq.s32.totalorder %s22, 0
      %p84 = por %p82, %p83
      %s85 = sadd.s32 %s24, 1
      %s86 = smul.u32 %s85, 32
      %p87 = scmp.lt.s32.totalorder %s86, 31
      %s88 = scalar_select %p87, %s86, 31
      %s89 = sadd.s32 %s31, 1
      %s90 = smul.u32 %s89, 32
      %p91 = scmp.lt.s32.totalorder %s90, 31
      %s92 = scalar_select %p91, %s90, 31
      %s93 = ssub.s32 %s23, %s35
      %s94 = ssub.s32 %s88, %s92
      %s95 = sor.u32 %s93, %s94
      %p96 = scmp.eq.s32.totalorder %s95, 0
      %s98 = sadd.s32 %s97, 1
      %s99 = scalar_select %p96, %s97, %s98
      %p102 = pneg %p96
      %p103 = scmp.eq.s32.totalorder %s16, 1
      %p104 = por %p102, %p103
      %p105 = scmp.ne.s32.totalorder %s97, %s100
      %p106 = scmp.eq.s32.totalorder %s16, 0
      %p107 = por %p105, %p106
      %p108 = scmp.ne.s32.totalorder %s97, %s100
      %p109 = scmp.eq.s32.totalorder %s21, 1
      %p110 = por %p108, %p109
      %p111 = scmp.ne.s32.totalorder %s100, %s101
      %p112 = scmp.eq.s32.totalorder %s21, 0
      %p113 = por %p111, %p112
      %p114 = scmp.ne.s32.totalorder %s100, %s101
      %p115 = scmp.eq.s32.totalorder %s22, 1
      %p116 = por %p114, %p115
      %p118 = scmp.ne.s32.totalorder %s101, %s117
      %p119 = scmp.eq.s32.totalorder %s22, 0
      %p120 = por %p118, %p119
      %s121 = ssub.s32 %s23, %s35
      %s122 = ssub.s32 %s24, %s31
      %s123 = sor.u32 %s121, %s122
      %p124 = scmp.eq.s32.totalorder %s123, 0
      %s126 = sadd.s32 %s125, 1
      %s127 = scalar_select %p124, %s125, %s126
      %p130 = pneg %p124
      %p131 = scmp.eq.s32.totalorder %s16, 1
      %p132 = por %p130, %p131
      %p133 = scmp.ne.s32.totalorder %s125, %s128
      %p134 = scmp.eq.s32.totalorder %s16, 0
      %p135 = por %p133, %p134
      %p136 = scmp.ne.s32.totalorder %s125, %s128
      %p137 = scmp.eq.s32.totalorder %s21, 1
      %p138 = por %p136, %p137
      %p139 = scmp.ne.s32.totalorder %s128, %s129
      %p140 = scmp.eq.s32.totalorder %s21, 0
      %p141 = por %p139, %p140
      %p142 = scmp.ne.s32.totalorder %s128, %s129
      %p143 = scmp.eq.s32.totalorder %s22, 1
      %p144 = por %p142, %p143
      %p146 = scmp.ne.s32.totalorder %s129, %s145
      %p147 = scmp.eq.s32.totalorder %s22, 0
      %p148 = por %p146, %p147
      %p149 = scmp.le.s32.totalorder 1, %s16
      %p150 = scmp.lt.s32.totalorder %s16, 3
      %p151 = pnand %p149, %p150
      %p152 = pneg %p151
      // Predicated region
      $region9: #{tpu_custom_call.1} parent=5 // pred_check
        _
      $region10: #{tpu_custom_call.1} parent=5 // pred_check_branch
        %154 = sbr.rel (%p151) target = $region12
      $region11: #{tpu_custom_call.1} parent=5 // pred_region
        %s155 = ssub.s32 %s16, 1
        // Predicated region
        $region13: #{tpu_custom_call.1} parent=11 // pred_check
          %p156 = pneg %p49
        $region14: #{tpu_custom_call.1} parent=11 // pred_check_branch
          %158 = sbr.rel (%p156) target = $region16
        $region15: #{tpu_custom_call.1} parent=11 // pred_region
          %s160 = ssub.s32 128, 128
          %161 = vsyncadd [#allocation3], %s160
          %s163 = sshll.u32 [#allocation2], 4
          %s164 = int_to_ptr.vmem [resolvable:$true] %s163
          %166 = dma.hbm_to_vmem [thread:$0]  %s0, 128, %s164, [#allocation3]
        $region16: #{tpu_custom_call.1} parent=11 // pred_fallthru
          _
      $region12: #{tpu_custom_call.1} parent=5 // pred_fallthru
        _
      %p167 = scmp.lt.s32.totalorder %s16, 2
      // Predicated region
      $region17: #{tpu_custom_call.1} parent=5 // pred_check
        %p168 = pneg %p167
      $region18: #{tpu_custom_call.1} parent=5 // pred_check_branch
        %170 = sbr.rel (%p168) target = $region20
      $region19: #{tpu_custom_call.1} parent=5 // pred_region
        // Predicated region
        $region21: #{tpu_custom_call.1} parent=19 // pred_check
          %p171 = pneg %p71
        $region22: #{tpu_custom_call.1} parent=19 // pred_check_branch
          %173 = sbr.rel (%p171) target = $region24
        $region23: #{tpu_custom_call.1} parent=19 // pred_region
          %s174 = sand.u32 %s16, 1
          %s175 = scalar_lea.sflag [#allocation6], %s174
          %s176 = sand.u32 %s61, 1
          %s177 = smul.addr %s176, 32
          %s178 = scalar_lea.vmem [#allocation5], %s177
          %s179 = smul.u32 32, %s24
          %s181 = ssub.s32 512, 512
          %182 = vsyncadd %s175, %s181
          %s183 = smul.addr %s23, 32
          %s184 = sadd.s32 %s179, %s183
          %s185 = smul.addr %s184, 16
          %s186 = scalar_lea.hbm %s1, %s185
          %s188 = sshll.u32 %s178, 4
          %s189 = int_to_ptr.vmem [resolvable:$true] %s188
          %191 = dma.hbm_to_vmem [thread:$0]  %s186, 512, %s189, %s175
        $region24: #{tpu_custom_call.1} parent=19 // pred_fallthru
          _
        // Predicated region
        $region25: #{tpu_custom_call.1} parent=19 // pred_check
          %p192 = pneg %p107
        $region26: #{tpu_custom_call.1} parent=19 // pred_check_branch
          %194 = sbr.rel (%p192) target = $region28
        $region27: #{tpu_custom_call.1} parent=19 // pred_region
          %s195 = sand.u32 %s16, 1
          %s196 = scalar_lea.sflag [#allocation6], %s195
          %s197 = sand.u32 %s97, 1
          %s198 = scalar_lea.vmem [#allocation7], %s197
          %s199 = sadd.s32 %s24, 1
          %s200 = smul.u32 %s199, 32
          %p201 = scmp.lt.s32.totalorder %s200, 31
          %s202 = scalar_select %p201, %s200, 31
          %s204 = ssub.s32 16, 16
          %205 = vsyncadd %s196, %s204
          %s206 = smul.addr %s23, 32
          %s207 = sadd.s32 %s202, %s206
          %s208 = smul.addr %s207, 16
          %s209 = scalar_lea.hbm %s2, %s208
          %s211 = sshll.u32 %s198, 4
          %s212 = int_to_ptr.vmem [resolvable:$true] %s211
          %214 = dma.hbm_to_vmem [thread:$0]  %s209, 16, %s212, %s196
        $region28: #{tpu_custom_call.1} parent=19 // pred_fallthru
          _
      $region20: #{tpu_custom_call.1} parent=5 // pred_fallthru
        _
      %p215 = scmp.le.s32.totalorder 1, %s16
      %p216 = scmp.lt.s32.totalorder %s16, 3
      %p217 = pnand %p215, %p216
      %p218 = pneg %p217
      // Predicated region
      $region29: #{tpu_custom_call.1} parent=5 // pred_check
        _
      $region30: #{tpu_custom_call.1} parent=5 // pred_check_branch
        %220 = sbr.rel (%p217) target = $region32
      $region31: #{tpu_custom_call.1} parent=5 // pred_region
        %s221 = ssub.s32 %s16, 1
        // Predicated region
        $region33: #{tpu_custom_call.1} parent=31 // pred_check
          %p222 = pneg %p49
        $region34: #{tpu_custom_call.1} parent=31 // pred_check_branch
          %224 = sbr.rel (%p222) target = $region36
        $region35: #{tpu_custom_call.1} parent=31 // pred_region
          %225 = dma.done [#allocation3], 128
        $region36: #{tpu_custom_call.1} parent=31 // pred_fallthru
          _
        %s226 = sand.u32 %s21, 1
        %s227 = scalar_lea.sflag [#allocation6], %s226
        %s228 = sand.u32 %s64, 1
        %s229 = smul.addr %s228, 32
        %s230 = scalar_lea.vmem [#allocation5], %s229
        // Predicated region
        $region37: #{tpu_custom_call.1} parent=31 // pred_check
          %p231 = pneg %p77
        $region38: #{tpu_custom_call.1} parent=31 // pred_check_branch
          %233 = sbr.rel (%p231) target = $region40
        $region39: #{tpu_custom_call.1} parent=31 // pred_region
          %234 = dma.done %s227, 512
        $region40: #{tpu_custom_call.1} parent=31 // pred_fallthru
          _
        %s235 = sand.u32 %s21, 1
        %s236 = scalar_lea.sflag [#allocation6], %s235
        %s237 = sand.u32 %s100, 1
        %s238 = scalar_lea.vmem [#allocation7], %s237
        // Predicated region
        $region41: #{tpu_custom_call.1} parent=31 // pred_check
          %p239 = pneg %p113
        $region42: #{tpu_custom_call.1} parent=31 // pred_check_branch
          %241 = sbr.rel (%p239) target = $region44
        $region43: #{tpu_custom_call.1} parent=31 // pred_region
          %242 = dma.done %s236, 16
        $region44: #{tpu_custom_call.1} parent=31 // pred_fallthru
          _
        %p243 = pneg %p49
        %p244 = pneg %p46
        %s245 = sand.u32 %s21, 1
        %s246 = scalar_lea.sflag [#allocation6], %s245
        %s247 = sand.u32 %s64, 1
        %s248 = smul.addr %s247, 32
        %s249 = scalar_lea.vmem [#allocation5], %s248
        %p250 = pneg %p77
        %p251 = pneg %p74
        %s252 = sand.u32 %s21, 1
        %s253 = scalar_lea.sflag [#allocation6], %s252
        %s254 = sand.u32 %s100, 1
        %s255 = scalar_lea.vmem [#allocation7], %s254
        %p256 = pneg %p113
        %p257 = pneg %p110
        %p258 = pneg %p141
        %p259 = pneg %p138
        %s260 = sand.u32 %s128, 1
        %s261 = scalar_lea.sflag [#allocation4], %s260
        %s262 = sand.u32 %s128, 1
        %s263 = smul.addr %s262, 256
        %s264 = scalar_lea.vmem [#allocation8], %s263
        %s265 = smul.u32 32, %s26
        %s266 = sadd.s32 %s26, 1
        %s267 = smul.u32 %s266, 32
        %p268 = scmp.lt.s32.totalorder %s267, 31
        %s269 = scalar_select %p268, %s267, 31
        %s270 = smul.u32 32, %s26
        %v271 = vld [vmem:[%s230] sm:$0xff]
        %v272 = vld [vmem:[%s230 + $0x8] sm:$0xff]
        %v273 = vld [vmem:[%s230 + $0x10] sm:$0xff]
        %v274 = vld [vmem:[%s230 + $0x18] sm:$0xff]
        %v275 = vld [vmem:[%s238] sm:$0x1]
        %v280 = vlaneseq
        %v281 = vshrl.u32 %v280, 7
        %v282 = vsub.s32 0, %v281
        %v283 = vrot.slane %v271, %v282
        %v284 = vlaneseq
        %v285 = vshrl.u32 %v284, 7
        %v286 = vsub.s32 1, %v285
        %v287 = vrot.slane %v271, %v286
        %v288 = vlaneseq
        %v289 = vshrl.u32 %v288, 7
        %v290 = vsub.s32 2, %v289
        %v291 = vrot.slane %v271, %v290
        %v292 = vlaneseq
        %v293 = vshrl.u32 %v292, 7
        %v294 = vsub.s32 3, %v293
        %v295 = vrot.slane %v271, %v294
        %v296 = vlaneseq
        %v297 = vshrl.u32 %v296, 7
        %v298 = vsub.s32 4, %v297
        %v299 = vrot.slane %v271, %v298
        %v300 = vlaneseq
        %v301 = vshrl.u32 %v300, 7
        %v302 = vsub.s32 5, %v301
        %v303 = vrot.slane %v271, %v302
        %v304 = vlaneseq
        %v305 = vshrl.u32 %v304, 7
        %v306 = vsub.s32 6, %v305
        %v307 = vrot.slane %v271, %v306
        %v308 = vlaneseq
        %v309 = vshrl.u32 %v308, 7
        %v310 = vsub.s32 7, %v309
        %v311 = vrot.slane %v271, %v310
        %v312 = vlaneseq
        %v313 = vshrl.u32 %v312, 7
        %v314 = vsub.s32 0, %v313
        %v315 = vrot.slane %v272, %v314
        %v316 = vlaneseq
        %v317 = vshrl.u32 %v316, 7
        %v318 = vsub.s32 1, %v317
        %v319 = vrot.slane %v272, %v318
        %v320 = vlaneseq
        %v321 = vshrl.u32 %v320, 7
        %v322 = vsub.s32 2, %v321
        %v323 = vrot.slane %v272, %v322
        %v324 = vlaneseq
        %v325 = vshrl.u32 %v324, 7
        %v326 = vsub.s32 3, %v325
        %v327 = vrot.slane %v272, %v326
        %v328 = vlaneseq
        %v329 = vshrl.u32 %v328, 7
        %v330 = vsub.s32 4, %v329
        %v331 = vrot.slane %v272, %v330
        %v332 = vlaneseq
        %v333 = vshrl.u32 %v332, 7
        %v334 = vsub.s32 5, %v333
        %v335 = vrot.slane %v272, %v334
        %v336 = vlaneseq
        %v337 = vshrl.u32 %v336, 7
        %v338 = vsub.s32 6, %v337
        %v339 = vrot.slane %v272, %v338
        %v340 = vlaneseq
        %v341 = vshrl.u32 %v340, 7
        %v342 = vsub.s32 7, %v341
        %v343 = vrot.slane %v272, %v342
        %v344 = vlaneseq
        %v345 = vshrl.u32 %v344, 7
        %v346 = vsub.s32 0, %v345
        %v347 = vrot.slane %v273, %v346
        %v348 = vlaneseq
        %v349 = vshrl.u32 %v348, 7
        %v350 = vsub.s32 1, %v349
        %v351 = vrot.slane %v273, %v350
        %v352 = vlaneseq
        %v353 = vshrl.u32 %v352, 7
        %v354 = vsub.s32 2, %v353
        %v355 = vrot.slane %v273, %v354
        %v356 = vlaneseq
        %v357 = vshrl.u32 %v356, 7
        %v358 = vsub.s32 3, %v357
        %v359 = vrot.slane %v273, %v358
        %v360 = vlaneseq
        %v361 = vshrl.u32 %v360, 7
        %v362 = vsub.s32 4, %v361
        %v363 = vrot.slane %v273, %v362
        %v364 = vlaneseq
        %v365 = vshrl.u32 %v364, 7
        %v366 = vsub.s32 5, %v365
        %v367 = vrot.slane %v273, %v366
        %v368 = vlaneseq
        %v369 = vshrl.u32 %v368, 7
        %v370 = vsub.s32 6, %v369
        %v371 = vrot.slane %v273, %v370
        %v372 = vlaneseq
        %v373 = vshrl.u32 %v372, 7
        %v374 = vsub.s32 7, %v373
        %v375 = vrot.slane %v273, %v374
        %v376 = vlaneseq
        %v377 = vshrl.u32 %v376, 7
        %v378 = vsub.s32 0, %v377
        %v379 = vrot.slane %v274, %v378
        %v380 = vlaneseq
        %v381 = vshrl.u32 %v380, 7
        %v382 = vsub.s32 1, %v381
        %v383 = vrot.slane %v274, %v382
        %v384 = vlaneseq
        %v385 = vshrl.u32 %v384, 7
        %v386 = vsub.s32 2, %v385
        %v387 = vrot.slane %v274, %v386
        %v388 = vlaneseq
        %v389 = vshrl.u32 %v388, 7
        %v390 = vsub.s32 3, %v389
        %v391 = vrot.slane %v274, %v390
        %v392 = vlaneseq
        %v393 = vshrl.u32 %v392, 7
        %v394 = vsub.s32 4, %v393
        %v395 = vrot.slane %v274, %v394
        %v396 = vlaneseq
        %v397 = vshrl.u32 %v396, 7
        %v398 = vsub.s32 5, %v397
        %v399 = vrot.slane %v274, %v398
        %v400 = vlaneseq
        %v401 = vshrl.u32 %v400, 7
        %v402 = vsub.s32 6, %v401
        %v403 = vrot.slane %v274, %v402
        %v404 = vlaneseq
        %v405 = vshrl.u32 %v404, 7
        %v406 = vsub.s32 7, %v405
        %v407 = vrot.slane %v274, %v406
        %v440 = vld [vmem:[#allocation2] sm:$0xff]
        %v441 = vlaneseq
        %v442 = vshrl.u32 %v441, 7
        %v443 = vsub.s32 0, %v442
        %v444 = vrot.slane %v283, %v443
        %v445 = vlaneseq
        %v446 = vshrl.u32 %v445, 7
        %v447 = vsub.s32 0, %v446
        %v448 = vrot.slane %v287, %v447
        %v449 = vlaneseq
        %v450 = vshrl.u32 %v449, 7
        %v451 = vsub.s32 0, %v450
        %v452 = vrot.slane %v291, %v451
        %v453 = vlaneseq
        %v454 = vshrl.u32 %v453, 7
        %v455 = vsub.s32 0, %v454
        %v456 = vrot.slane %v295, %v455
        %v457 = vlaneseq
        %v458 = vshrl.u32 %v457, 7
        %v459 = vsub.s32 0, %v458
        %v460 = vrot.slane %v299, %v459
        %v461 = vlaneseq
        %v462 = vshrl.u32 %v461, 7
        %v463 = vsub.s32 0, %v462
        %v464 = vrot.slane %v303, %v463
        %v465 = vlaneseq
        %v466 = vshrl.u32 %v465, 7
        %v467 = vsub.s32 0, %v466
        %v468 = vrot.slane %v307, %v467
        %v469 = vlaneseq
        %v470 = vshrl.u32 %v469, 7
        %v471 = vsub.s32 0, %v470
        %v472 = vrot.slane %v311, %v471
        %v473 = vlaneseq
        %v474 = vshrl.u32 %v473, 7
        %v475 = vsub.s32 0, %v474
        %v476 = vrot.slane %v315, %v475
        %v477 = vlaneseq
        %v478 = vshrl.u32 %v477, 7
        %v479 = vsub.s32 0, %v478
        %v480 = vrot.slane %v319, %v479
        %v481 = vlaneseq
        %v482 = vshrl.u32 %v481, 7
        %v483 = vsub.s32 0, %v482
        %v484 = vrot.slane %v323, %v483
        %v485 = vlaneseq
        %v486 = vshrl.u32 %v485, 7
        %v487 = vsub.s32 0, %v486
        %v488 = vrot.slane %v327, %v487
        %v489 = vlaneseq
        %v490 = vshrl.u32 %v489, 7
        %v491 = vsub.s32 0, %v490
        %v492 = vrot.slane %v331, %v491
        %v493 = vlaneseq
        %v494 = vshrl.u32 %v493, 7
        %v495 = vsub.s32 0, %v494
        %v496 = vrot.slane %v335, %v495
        %v497 = vlaneseq
        %v498 = vshrl.u32 %v497, 7
        %v499 = vsub.s32 0, %v498
        %v500 = vrot.slane %v339, %v499
        %v501 = vlaneseq
        %v502 = vshrl.u32 %v501, 7
        %v503 = vsub.s32 0, %v502
        %v504 = vrot.slane %v343, %v503
        %v505 = vlaneseq
        %v506 = vshrl.u32 %v505, 7
        %v507 = vsub.s32 0, %v506
        %v508 = vrot.slane %v347, %v507
        %v509 = vlaneseq
        %v510 = vshrl.u32 %v509, 7
        %v511 = vsub.s32 0, %v510
        %v512 = vrot.slane %v351, %v511
        %v513 = vlaneseq
        %v514 = vshrl.u32 %v513, 7
        %v515 = vsub.s32 0, %v514
        %v516 = vrot.slane %v355, %v515
        %v517 = vlaneseq
        %v518 = vshrl.u32 %v517, 7
        %v519 = vsub.s32 0, %v518
        %v520 = vrot.slane %v359, %v519
        %v521 = vlaneseq
        %v522 = vshrl.u32 %v521, 7
        %v523 = vsub.s32 0, %v522
        %v524 = vrot.slane %v363, %v523
        %v525 = vlaneseq
        %v526 = vshrl.u32 %v525, 7
        %v527 = vsub.s32 0, %v526
        %v528 = vrot.slane %v367, %v527
        %v529 = vlaneseq
        %v530 = vshrl.u32 %v529, 7
        %v531 = vsub.s32 0, %v530
        %v532 = vrot.slane %v371, %v531
        %v533 = vlaneseq
        %v534 = vshrl.u32 %v533, 7
        %v535 = vsub.s32 0, %v534
        %v536 = vrot.slane %v375, %v535
        %v537 = vlaneseq
        %v538 = vshrl.u32 %v537, 7
        %v539 = vsub.s32 0, %v538
        %v540 = vrot.slane %v379, %v539
        %v541 = vlaneseq
        %v542 = vshrl.u32 %v541, 7
        %v543 = vsub.s32 0, %v542
        %v544 = vrot.slane %v383, %v543
        %v545 = vlaneseq
        %v546 = vshrl.u32 %v545, 7
        %v547 = vsub.s32 0, %v546
        %v548 = vrot.slane %v387, %v547
        %v549 = vlaneseq
        %v550 = vshrl.u32 %v549, 7
        %v551 = vsub.s32 0, %v550
        %v552 = vrot.slane %v391, %v551
        %v553 = vlaneseq
        %v554 = vshrl.u32 %v553, 7
        %v555 = vsub.s32 0, %v554
        %v556 = vrot.slane %v395, %v555
        %v557 = vlaneseq
        %v558 = vshrl.u32 %v557, 7
        %v559 = vsub.s32 0, %v558
        %v560 = vrot.slane %v399, %v559
        %v561 = vlaneseq
        %v562 = vshrl.u32 %v561, 7
        %v563 = vsub.s32 0, %v562
        %v564 = vrot.slane %v403, %v563
        %v565 = vlaneseq
        %v566 = vshrl.u32 %v565, 7
        %v567 = vsub.s32 0, %v566
        %v568 = vrot.slane %v407, %v567
        %570 = vset.pattern.permute.xlu0 0
        %571 = vperm.xlu0 %570, %v440
        %v572 = vpop.permute.xlu0 %571
        %v574 = vmul.f32 %v572, %v444
        %v575 = vmul.f32 %v572, %v448
        %v576 = vmul.f32 %v572, %v452
        %v577 = vmul.f32 %v572, %v456
        %v578 = vmul.f32 %v572, %v460
        %v579 = vmul.f32 %v572, %v464
        %v580 = vmul.f32 %v572, %v468
        %v581 = vmul.f32 %v572, %v472
        %v582 = vmul.f32 %v572, %v476
        %v583 = vmul.f32 %v572, %v480
        %v584 = vmul.f32 %v572, %v484
        %v585 = vmul.f32 %v572, %v488
        %v586 = vmul.f32 %v572, %v492
        %v587 = vmul.f32 %v572, %v496
        %v588 = vmul.f32 %v572, %v500
        %v589 = vmul.f32 %v572, %v504
        %v590 = vmul.f32 %v572, %v508
        %v591 = vmul.f32 %v572, %v512
        %v592 = vmul.f32 %v572, %v516
        %v593 = vmul.f32 %v572, %v520
        %v594 = vmul.f32 %v572, %v524
        %v595 = vmul.f32 %v572, %v528
        %v596 = vmul.f32 %v572, %v532
        %v597 = vmul.f32 %v572, %v536
        %v598 = vmul.f32 %v572, %v540
        %v599 = vmul.f32 %v572, %v544
        %v600 = vmul.f32 %v572, %v548
        %v601 = vmul.f32 %v572, %v552
        %v602 = vmul.f32 %v572, %v556
        %v603 = vmul.f32 %v572, %v560
        %v604 = vmul.f32 %v572, %v564
        %v605 = vmul.f32 %v572, %v568
        %v606 = vlaneseq
        %v607 = vshrl.u32 %v606, 7
        %v608 = vsub.s32 0, %v607
        %v609 = vrot.slane %v275, %v608
        %610 = vset.pattern.permute.xlu0 1
        %611 = vperm.xlu0 %610, %v440
        %v612 = vpop.permute.xlu0 %611
        %v614 = vmul.f32 %v612, %v444
        %v615 = vmul.f32 %v612, %v448
        %v616 = vmul.f32 %v612, %v452
        %v617 = vmul.f32 %v612, %v456
        %v618 = vmul.f32 %v612, %v460
        %v619 = vmul.f32 %v612, %v464
        %v620 = vmul.f32 %v612, %v468
        %v621 = vmul.f32 %v612, %v472
        %v622 = vmul.f32 %v612, %v476
        %v623 = vmul.f32 %v612, %v480
        %v624 = vmul.f32 %v612, %v484
        %v625 = vmul.f32 %v612, %v488
        %v626 = vmul.f32 %v612, %v492
        %v627 = vmul.f32 %v612, %v496
        %v628 = vmul.f32 %v612, %v500
        %v629 = vmul.f32 %v612, %v504
        %v630 = vmul.f32 %v612, %v508
        %v631 = vmul.f32 %v612, %v512
        %v632 = vmul.f32 %v612, %v516
        %v633 = vmul.f32 %v612, %v520
        %v634 = vmul.f32 %v612, %v524
        %v635 = vmul.f32 %v612, %v528
        %v636 = vmul.f32 %v612, %v532
        %v637 = vmul.f32 %v612, %v536
        %v638 = vmul.f32 %v612, %v540
        %v639 = vmul.f32 %v612, %v544
        %v640 = vmul.f32 %v612, %v548
        %v641 = vmul.f32 %v612, %v552
        %v642 = vmul.f32 %v612, %v556
        %v643 = vmul.f32 %v612, %v560
        %v644 = vmul.f32 %v612, %v564
        %v645 = vmul.f32 %v612, %v568
        %v646 = vmul.f32 %v612, %v609
        %680 = vrot.lane.b32.xlu0 %v614, 127
        %v681 = vpop.permute.xlu0 %680
        %682 = vrot.lane.b32.xlu0 %v615, 127
        %v683 = vpop.permute.xlu0 %682
        %684 = vrot.lane.b32.xlu0 %v616, 127
        %v685 = vpop.permute.xlu0 %684
        %686 = vrot.lane.b32.xlu0 %v617, 127
        %v687 = vpop.permute.xlu0 %686
        %688 = vrot.lane.b32.xlu0 %v618, 127
        %v689 = vpop.permute.xlu0 %688
        %690 = vrot.lane.b32.xlu0 %v619, 127
        %v691 = vpop.permute.xlu0 %690
        %692 = vrot.lane.b32.xlu0 %v620, 127
        %v693 = vpop.permute.xlu0 %692
        %694 = vrot.lane.b32.xlu0 %v621, 127
        %v695 = vpop.permute.xlu0 %694
        %696 = vrot.lane.b32.xlu0 %v622, 127
        %v697 = vpop.permute.xlu0 %696
        %698 = vrot.lane.b32.xlu0 %v623, 127
        %v699 = vpop.permute.xlu0 %698
        %700 = vrot.lane.b32.xlu0 %v624, 127
        %v701 = vpop.permute.xlu0 %700
        %702 = vrot.lane.b32.xlu0 %v625, 127
        %v703 = vpop.permute.xlu0 %702
        %704 = vrot.lane.b32.xlu0 %v626, 127
        %v705 = vpop.permute.xlu0 %704
        %706 = vrot.lane.b32.xlu0 %v627, 127
        %v707 = vpop.permute.xlu0 %706
        %708 = vrot.lane.b32.xlu0 %v628, 127
        %v709 = vpop.permute.xlu0 %708
        %710 = vrot.lane.b32.xlu0 %v629, 127
        %v711 = vpop.permute.xlu0 %710
        %712 = vrot.lane.b32.xlu0 %v630, 127
        %v713 = vpop.permute.xlu0 %712
        %714 = vrot.lane.b32.xlu0 %v631, 127
        %v715 = vpop.permute.xlu0 %714
        %716 = vrot.lane.b32.xlu0 %v632, 127
        %v717 = vpop.permute.xlu0 %716
        %718 = vrot.lane.b32.xlu0 %v633, 127
        %v719 = vpop.permute.xlu0 %718
        %720 = vrot.lane.b32.xlu0 %v634, 127
        %v721 = vpop.permute.xlu0 %720
        %722 = vrot.lane.b32.xlu0 %v635, 127
        %v723 = vpop.permute.xlu0 %722
        %724 = vrot.lane.b32.xlu0 %v636, 127
        %v725 = vpop.permute.xlu0 %724
        %726 = vrot.lane.b32.xlu0 %v637, 127
        %v727 = vpop.permute.xlu0 %726
        %728 = vrot.lane.b32.xlu0 %v638, 127
        %v729 = vpop.permute.xlu0 %728
        %730 = vrot.lane.b32.xlu0 %v639, 127
        %v731 = vpop.permute.xlu0 %730
        %732 = vrot.lane.b32.xlu0 %v640, 127
        %v733 = vpop.permute.xlu0 %732
        %734 = vrot.lane.b32.xlu0 %v641, 127
        %v735 = vpop.permute.xlu0 %734
        %736 = vrot.lane.b32.xlu0 %v642, 127
        %v737 = vpop.permute.xlu0 %736
        %738 = vrot.lane.b32.xlu0 %v643, 127
        %v739 = vpop.permute.xlu0 %738
        %740 = vrot.lane.b32.xlu0 %v644, 127
        %v741 = vpop.permute.xlu0 %740
        %742 = vrot.lane.b32.xlu0 %v645, 127
        %v743 = vpop.permute.xlu0 %742
        %744 = vrot.lane.b32.xlu0 %v646, 127
        %v745 = vpop.permute.xlu0 %744
        %vm746 = vcmask 1039360
        %v747 = vsel %vm746, %v681, %v683
        %v748 = vsel %vm746, %v683, %v685
        %v749 = vsel %vm746, %v685, %v687
        %v750 = vsel %vm746, %v687, %v689
        %v751 = vsel %vm746, %v689, %v691
        %v752 = vsel %vm746, %v691, %v693
        %v753 = vsel %vm746, %v693, %v695
        %v754 = vsel %vm746, %v695, %v697
        %v755 = vsel %vm746, %v697, %v699
        %v756 = vsel %vm746, %v699, %v701
        %v757 = vsel %vm746, %v701, %v703
        %v758 = vsel %vm746, %v703, %v705
        %v759 = vsel %vm746, %v705, %v707
        %v760 = vsel %vm746, %v707, %v709
        %v761 = vsel %vm746, %v709, %v711
        %v762 = vsel %vm746, %v711, %v713
        %v763 = vsel %vm746, %v713, %v715
        %v764 = vsel %vm746, %v715, %v717
        %v765 = vsel %vm746, %v717, %v719
        %v766 = vsel %vm746, %v719, %v721
        %v767 = vsel %vm746, %v721, %v723
        %v768 = vsel %vm746, %v723, %v725
        %v769 = vsel %vm746, %v725, %v727
        %v770 = vsel %vm746, %v727, %v729
        %v771 = vsel %vm746, %v729, %v731
        %v772 = vsel %vm746, %v731, %v733
        %v773 = vsel %vm746, %v733, %v735
        %v774 = vsel %vm746, %v735, %v737
        %v775 = vsel %vm746, %v737, %v739
        %v776 = vsel %vm746, %v739, %v741
        %v777 = vsel %vm746, %v741, %v743
        %v778 = vsel %vm746, %v743, %v745
        %v811 = vadd.f32 %v574, %v747
        %v812 = vadd.f32 %v575, %v748
        %v813 = vadd.f32 %v576, %v749
        %v814 = vadd.f32 %v577, %v750
        %v815 = vadd.f32 %v578, %v751
        %v816 = vadd.f32 %v579, %v752
        %v817 = vadd.f32 %v580, %v753
        %v818 = vadd.f32 %v581, %v754
        %v819 = vadd.f32 %v582, %v755
        %v820 = vadd.f32 %v583, %v756
        %v821 = vadd.f32 %v584, %v757
        %v822 = vadd.f32 %v585, %v758
        %v823 = vadd.f32 %v586, %v759
        %v824 = vadd.f32 %v587, %v760
        %v825 = vadd.f32 %v588, %v761
        %v826 = vadd.f32 %v589, %v762
        %v827 = vadd.f32 %v590, %v763
        %v828 = vadd.f32 %v591, %v764
        %v829 = vadd.f32 %v592, %v765
        %v830 = vadd.f32 %v593, %v766
        %v831 = vadd.f32 %v594, %v767
        %v832 = vadd.f32 %v595, %v768
        %v833 = vadd.f32 %v596, %v769
        %v834 = vadd.f32 %v597, %v770
        %v835 = vadd.f32 %v598, %v771
        %v836 = vadd.f32 %v599, %v772
        %v837 = vadd.f32 %v600, %v773
        %v838 = vadd.f32 %v601, %v774
        %v839 = vadd.f32 %v602, %v775
        %v840 = vadd.f32 %v603, %v776
        %v841 = vadd.f32 %v604, %v777
        %v842 = vadd.f32 %v605, %v778
        %843 = vset.pattern.permute.xlu0 2
        %844 = vperm.xlu0 %843, %v440
        %v845 = vpop.permute.xlu0 %844
        %v847 = vmul.f32 %v845, %v444
        %v848 = vmul.f32 %v845, %v448
        %v849 = vmul.f32 %v845, %v452
        %v850 = vmul.f32 %v845, %v456
        %v851 = vmul.f32 %v845, %v460
        %v852 = vmul.f32 %v845, %v464
        %v853 = vmul.f32 %v845, %v468
        %v854 = vmul.f32 %v845, %v472
        %v855 = vmul.f32 %v845, %v476
        %v856 = vmul.f32 %v845, %v480
        %v857 = vmul.f32 %v845, %v484
        %v858 = vmul.f32 %v845, %v488
        %v859 = vmul.f32 %v845, %v492
        %v860 = vmul.f32 %v845, %v496
        %v861 = vmul.f32 %v845, %v500
        %v862 = vmul.f32 %v845, %v504
        %v863 = vmul.f32 %v845, %v508
        %v864 = vmul.f32 %v845, %v512
        %v865 = vmul.f32 %v845, %v516
        %v866 = vmul.f32 %v845, %v520
        %v867 = vmul.f32 %v845, %v524
        %v868 = vmul.f32 %v845, %v528
        %v869 = vmul.f32 %v845, %v532
        %v870 = vmul.f32 %v845, %v536
        %v871 = vmul.f32 %v845, %v540
        %v872 = vmul.f32 %v845, %v544
        %v873 = vmul.f32 %v845, %v548
        %v874 = vmul.f32 %v845, %v552
        %v875 = vmul.f32 %v845, %v556
        %v876 = vmul.f32 %v845, %v560
        %v877 = vmul.f32 %v845, %v564
        %v878 = vmul.f32 %v845, %v568
        %v879 = vmul.f32 %v845, %v609
        %913 = vrot.lane.b32.xlu0 %v847, 126
        %v914 = vpop.permute.xlu0 %913
        %915 = vrot.lane.b32.xlu0 %v848, 126
        %v916 = vpop.permute.xlu0 %915
        %917 = vrot.lane.b32.xlu0 %v849, 126
        %v918 = vpop.permute.xlu0 %917
        %919 = vrot.lane.b32.xlu0 %v850, 126
        %v920 = vpop.permute.xlu0 %919
        %921 = vrot.lane.b32.xlu0 %v851, 126
        %v922 = vpop.permute.xlu0 %921
        %923 = vrot.lane.b32.xlu0 %v852, 126
        %v924 = vpop.permute.xlu0 %923
        %925 = vrot.lane.b32.xlu0 %v853, 126
        %v926 = vpop.permute.xlu0 %925
        %927 = vrot.lane.b32.xlu0 %v854, 126
        %v928 = vpop.permute.xlu0 %927
        %929 = vrot.lane.b32.xlu0 %v855, 126
        %v930 = vpop.permute.xlu0 %929
        %931 = vrot.lane.b32.xlu0 %v856, 126
        %v932 = vpop.permute.xlu0 %931
        %933 = vrot.lane.b32.xlu0 %v857, 126
        %v934 = vpop.permute.xlu0 %933
        %935 = vrot.lane.b32.xlu0 %v858, 126
        %v936 = vpop.permute.xlu0 %935
        %937 = vrot.lane.b32.xlu0 %v859, 126
        %v938 = vpop.permute.xlu0 %937
        %939 = vrot.lane.b32.xlu0 %v860, 126
        %v940 = vpop.permute.xlu0 %939
        %941 = vrot.lane.b32.xlu0 %v861, 126
        %v942 = vpop.permute.xlu0 %941
        %943 = vrot.lane.b32.xlu0 %v862, 126
        %v944 = vpop.permute.xlu0 %943
        %945 = vrot.lane.b32.xlu0 %v863, 126
        %v946 = vpop.permute.xlu0 %945
        %947 = vrot.lane.b32.xlu0 %v864, 126
        %v948 = vpop.permute.xlu0 %947
        %949 = vrot.lane.b32.xlu0 %v865, 126
        %v950 = vpop.permute.xlu0 %949
        %951 = vrot.lane.b32.xlu0 %v866, 126
        %v952 = vpop.permute.xlu0 %951
        %953 = vrot.lane.b32.xlu0 %v867, 126
        %v954 = vpop.permute.xlu0 %953
        %955 = vrot.lane.b32.xlu0 %v868, 126
        %v956 = vpop.permute.xlu0 %955
        %957 = vrot.lane.b32.xlu0 %v869, 126
        %v958 = vpop.permute.xlu0 %957
        %959 = vrot.lane.b32.xlu0 %v870, 126
        %v960 = vpop.permute.xlu0 %959
        %961 = vrot.lane.b32.xlu0 %v871, 126
        %v962 = vpop.permute.xlu0 %961
        %963 = vrot.lane.b32.xlu0 %v872, 126
        %v964 = vpop.permute.xlu0 %963
        %965 = vrot.lane.b32.xlu0 %v873, 126
        %v966 = vpop.permute.xlu0 %965
        %967 = vrot.lane.b32.xlu0 %v874, 126
        %v968 = vpop.permute.xlu0 %967
        %969 = vrot.lane.b32.xlu0 %v875, 126
        %v970 = vpop.permute.xlu0 %969
        %971 = vrot.lane.b32.xlu0 %v876, 126
        %v972 = vpop.permute.xlu0 %971
        %973 = vrot.lane.b32.xlu0 %v877, 126
        %v974 = vpop.permute.xlu0 %973
        %975 = vrot.lane.b32.xlu0 %v878, 126
        %v976 = vpop.permute.xlu0 %975
        %977 = vrot.lane.b32.xlu0 %v879, 126
        %v978 = vpop.permute.xlu0 %977
        %vm979 = vcmask 1031168
        %v980 = vsel %vm979, %v914, %v916
        %v981 = vsel %vm979, %v916, %v918
        %v982 = vsel %vm979, %v918, %v920
        %v983 = vsel %vm979, %v920, %v922
        %v984 = vsel %vm979, %v922, %v924
        %v985 = vsel %vm979, %v924, %v926
        %v986 = vsel %vm979, %v926, %v928
        %v987 = vsel %vm979, %v928, %v930
        %v988 = vsel %vm979, %v930, %v932
        %v989 = vsel %vm979, %v932, %v934
        %v990 = vsel %vm979, %v934, %v936
        %v991 = vsel %vm979, %v936, %v938
        %v992 = vsel %vm979, %v938, %v940
        %v993 = vsel %vm979, %v940, %v942
        %v994 = vsel %vm979, %v942, %v944
        %v995 = vsel %vm979, %v944, %v946
        %v996 = vsel %vm979, %v946, %v948
        %v997 = vsel %vm979, %v948, %v950
        %v998 = vsel %vm979, %v950, %v952
        %v999 = vsel %vm979, %v952, %v954
        %v1000 = vsel %vm979, %v954, %v956
        %v1001 = vsel %vm979, %v956, %v958
        %v1002 = vsel %vm979, %v958, %v960
        %v1003 = vsel %vm979, %v960, %v962
        %v1004 = vsel %vm979, %v962, %v964
        %v1005 = vsel %vm979, %v964, %v966
        %v1006 = vsel %vm979, %v966, %v968
        %v1007 = vsel %vm979, %v968, %v970
        %v1008 = vsel %vm979, %v970, %v972
        %v1009 = vsel %vm979, %v972, %v974
        %v1010 = vsel %vm979, %v974, %v976
        %v1011 = vsel %vm979, %v976, %v978
        %v1044 = vadd.f32 %v811, %v980
        %v1045 = vadd.f32 %v812, %v981
        %v1046 = vadd.f32 %v813, %v982
        %v1047 = vadd.f32 %v814, %v983
        %v1048 = vadd.f32 %v815, %v984
        %v1049 = vadd.f32 %v816, %v985
        %v1050 = vadd.f32 %v817, %v986
        %v1051 = vadd.f32 %v818, %v987
        %v1052 = vadd.f32 %v819, %v988
        %v1053 = vadd.f32 %v820, %v989
        %v1054 = vadd.f32 %v821, %v990
        %v1055 = vadd.f32 %v822, %v991
        %v1056 = vadd.f32 %v823, %v992
        %v1057 = vadd.f32 %v824, %v993
        %v1058 = vadd.f32 %v825, %v994
        %v1059 = vadd.f32 %v826, %v995
        %v1060 = vadd.f32 %v827, %v996
        %v1061 = vadd.f32 %v828, %v997
        %v1062 = vadd.f32 %v829, %v998
        %v1063 = vadd.f32 %v830, %v999
        %v1064 = vadd.f32 %v831, %v1000
        %v1065 = vadd.f32 %v832, %v1001
        %v1066 = vadd.f32 %v833, %v1002
        %v1067 = vadd.f32 %v834, %v1003
        %v1068 = vadd.f32 %v835, %v1004
        %v1069 = vadd.f32 %v836, %v1005
        %v1070 = vadd.f32 %v837, %v1006
        %v1071 = vadd.f32 %v838, %v1007
        %v1072 = vadd.f32 %v839, %v1008
        %v1073 = vadd.f32 %v840, %v1009
        %v1074 = vadd.f32 %v841, %v1010
        %v1075 = vadd.f32 %v842, %v1011
        %1076 = vset.pattern.permute.xlu0 3
        %1077 = vperm.xlu0 %1076, %v440
        %v1078 = vpop.permute.xlu0 %1077
        %v1080 = vmul.f32 %v1078, %v444
        %v1081 = vmul.f32 %v1078, %v448
        %v1082 = vmul.f32 %v1078, %v452
        %v1083 = vmul.f32 %v1078, %v456
        %v1084 = vmul.f32 %v1078, %v460
        %v1085 = vmul.f32 %v1078, %v464
        %v1086 = vmul.f32 %v1078, %v468
        %v1087 = vmul.f32 %v1078, %v472
        %v1088 = vmul.f32 %v1078, %v476
        %v1089 = vmul.f32 %v1078, %v480
        %v1090 = vmul.f32 %v1078, %v484
        %v1091 = vmul.f32 %v1078, %v488
        %v1092 = vmul.f32 %v1078, %v492
        %v1093 = vmul.f32 %v1078, %v496
        %v1094 = vmul.f32 %v1078, %v500
        %v1095 = vmul.f32 %v1078, %v504
        %v1096 = vmul.f32 %v1078, %v508
        %v1097 = vmul.f32 %v1078, %v512
        %v1098 = vmul.f32 %v1078, %v516
        %v1099 = vmul.f32 %v1078, %v520
        %v1100 = vmul.f32 %v1078, %v524
        %v1101 = vmul.f32 %v1078, %v528
        %v1102 = vmul.f32 %v1078, %v532
        %v1103 = vmul.f32 %v1078, %v536
        %v1104 = vmul.f32 %v1078, %v540
        %v1105 = vmul.f32 %v1078, %v544
        %v1106 = vmul.f32 %v1078, %v548
        %v1107 = vmul.f32 %v1078, %v552
        %v1108 = vmul.f32 %v1078, %v556
        %v1109 = vmul.f32 %v1078, %v560
        %v1110 = vmul.f32 %v1078, %v564
        %v1111 = vmul.f32 %v1078, %v568
        %v1112 = vmul.f32 %v1078, %v609
        %1146 = vrot.lane.b32.xlu0 %v1080, 125
        %v1147 = vpop.permute.xlu0 %1146
        %1148 = vrot.lane.b32.xlu0 %v1081, 125
        %v1149 = vpop.permute.xlu0 %1148
        %1150 = vrot.lane.b32.xlu0 %v1082, 125
        %v1151 = vpop.permute.xlu0 %1150
        %1152 = vrot.lane.b32.xlu0 %v1083, 125
        %v1153 = vpop.permute.xlu0 %1152
        %1154 = vrot.lane.b32.xlu0 %v1084, 125
        %v1155 = vpop.permute.xlu0 %1154
        %1156 = vrot.lane.b32.xlu0 %v1085, 125
        %v1157 = vpop.permute.xlu0 %1156
        %1158 = vrot.lane.b32.xlu0 %v1086, 125
        %v1159 = vpop.permute.xlu0 %1158
        %1160 = vrot.lane.b32.xlu0 %v1087, 125
        %v1161 = vpop.permute.xlu0 %1160
        %1162 = vrot.lane.b32.xlu0 %v1088, 125
        %v1163 = vpop.permute.xlu0 %1162
        %1164 = vrot.lane.b32.xlu0 %v1089, 125
        %v1165 = vpop.permute.xlu0 %1164
        %1166 = vrot.lane.b32.xlu0 %v1090, 125
        %v1167 = vpop.permute.xlu0 %1166
        %1168 = vrot.lane.b32.xlu0 %v1091, 125
        %v1169 = vpop.permute.xlu0 %1168
        %1170 = vrot.lane.b32.xlu0 %v1092, 125
        %v1171 = vpop.permute.xlu0 %1170
        %1172 = vrot.lane.b32.xlu0 %v1093, 125
        %v1173 = vpop.permute.xlu0 %1172
        %1174 = vrot.lane.b32.xlu0 %v1094, 125
        %v1175 = vpop.permute.xlu0 %1174
        %1176 = vrot.lane.b32.xlu0 %v1095, 125
        %v1177 = vpop.permute.xlu0 %1176
        %1178 = vrot.lane.b32.xlu0 %v1096, 125
        %v1179 = vpop.permute.xlu0 %1178
        %1180 = vrot.lane.b32.xlu0 %v1097, 125
        %v1181 = vpop.permute.xlu0 %1180
        %1182 = vrot.lane.b32.xlu0 %v1098, 125
        %v1183 = vpop.permute.xlu0 %1182
        %1184 = vrot.lane.b32.xlu0 %v1099, 125
        %v1185 = vpop.permute.xlu0 %1184
        %1186 = vrot.lane.b32.xlu0 %v1100, 125
        %v1187 = vpop.permute.xlu0 %1186
        %1188 = vrot.lane.b32.xlu0 %v1101, 125
        %v1189 = vpop.permute.xlu0 %1188
        %1190 = vrot.lane.b32.xlu0 %v1102, 125
        %v1191 = vpop.permute.xlu0 %1190
        %1192 = vrot.lane.b32.xlu0 %v1103, 125
        %v1193 = vpop.permute.xlu0 %1192
        %1194 = vrot.lane.b32.xlu0 %v1104, 125
        %v1195 = vpop.permute.xlu0 %1194
        %1196 = vrot.lane.b32.xlu0 %v1105, 125
        %v1197 = vpop.permute.xlu0 %1196
        %1198 = vrot.lane.b32.xlu0 %v1106, 125
        %v1199 = vpop.permute.xlu0 %1198
        %1200 = vrot.lane.b32.xlu0 %v1107, 125
        %v1201 = vpop.permute.xlu0 %1200
        %1202 = vrot.lane.b32.xlu0 %v1108, 125
        %v1203 = vpop.permute.xlu0 %1202
        %1204 = vrot.lane.b32.xlu0 %v1109, 125
        %v1205 = vpop.permute.xlu0 %1204
        %1206 = vrot.lane.b32.xlu0 %v1110, 125
        %v1207 = vpop.permute.xlu0 %1206
        %1208 = vrot.lane.b32.xlu0 %v1111, 125
        %v1209 = vpop.permute.xlu0 %1208
        %1210 = vrot.lane.b32.xlu0 %v1112, 125
        %v1211 = vpop.permute.xlu0 %1210
        %vm1212 = vcmask 1022976
        %v1213 = vsel %vm1212, %v1147, %v1149
        %v1214 = vsel %vm1212, %v1149, %v1151
        %v1215 = vsel %vm1212, %v1151, %v1153
        %v1216 = vsel %vm1212, %v1153, %v1155
        %v1217 = vsel %vm1212, %v1155, %v1157
        %v1218 = vsel %vm1212, %v1157, %v1159
        %v1219 = vsel %vm1212, %v1159, %v1161
        %v1220 = vsel %vm1212, %v1161, %v1163
        %v1221 = vsel %vm1212, %v1163, %v1165
        %v1222 = vsel %vm1212, %v1165, %v1167
        %v1223 = vsel %vm1212, %v1167, %v1169
        %v1224 = vsel %vm1212, %v1169, %v1171
        %v1225 = vsel %vm1212, %v1171, %v1173
        %v1226 = vsel %vm1212, %v1173, %v1175
        %v1227 = vsel %vm1212, %v1175, %v1177
        %v1228 = vsel %vm1212, %v1177, %v1179
        %v1229 = vsel %vm1212, %v1179, %v1181
        %v1230 = vsel %vm1212, %v1181, %v1183
        %v1231 = vsel %vm1212, %v1183, %v1185
        %v1232 = vsel %vm1212, %v1185, %v1187
        %v1233 = vsel %vm1212, %v1187, %v1189
        %v1234 = vsel %vm1212, %v1189, %v1191
        %v1235 = vsel %vm1212, %v1191, %v1193
        %v1236 = vsel %vm1212, %v1193, %v1195
        %v1237 = vsel %vm1212, %v1195, %v1197
        %v1238 = vsel %vm1212, %v1197, %v1199
        %v1239 = vsel %vm1212, %v1199, %v1201
        %v1240 = vsel %vm1212, %v1201, %v1203
        %v1241 = vsel %vm1212, %v1203, %v1205
        %v1242 = vsel %vm1212, %v1205, %v1207
        %v1243 = vsel %vm1212, %v1207, %v1209
        %v1244 = vsel %vm1212, %v1209, %v1211
        %v1277 = vadd.f32 %v1044, %v1213
        %v1278 = vadd.f32 %v1045, %v1214
        %v1279 = vadd.f32 %v1046, %v1215
        %v1280 = vadd.f32 %v1047, %v1216
        %v1281 = vadd.f32 %v1048, %v1217
        %v1282 = vadd.f32 %v1049, %v1218
        %v1283 = vadd.f32 %v1050, %v1219
        %v1284 = vadd.f32 %v1051, %v1220
        %v1285 = vadd.f32 %v1052, %v1221
        %v1286 = vadd.f32 %v1053, %v1222
        %v1287 = vadd.f32 %v1054, %v1223
        %v1288 = vadd.f32 %v1055, %v1224
        %v1289 = vadd.f32 %v1056, %v1225
        %v1290 = vadd.f32 %v1057, %v1226
        %v1291 = vadd.f32 %v1058, %v1227
        %v1292 = vadd.f32 %v1059, %v1228
        %v1293 = vadd.f32 %v1060, %v1229
        %v1294 = vadd.f32 %v1061, %v1230
        %v1295 = vadd.f32 %v1062, %v1231
        %v1296 = vadd.f32 %v1063, %v1232
        %v1297 = vadd.f32 %v1064, %v1233
        %v1298 = vadd.f32 %v1065, %v1234
        %v1299 = vadd.f32 %v1066, %v1235
        %v1300 = vadd.f32 %v1067, %v1236
        %v1301 = vadd.f32 %v1068, %v1237
        %v1302 = vadd.f32 %v1069, %v1238
        %v1303 = vadd.f32 %v1070, %v1239
        %v1304 = vadd.f32 %v1071, %v1240
        %v1305 = vadd.f32 %v1072, %v1241
        %v1306 = vadd.f32 %v1073, %v1242
        %v1307 = vadd.f32 %v1074, %v1243
        %v1308 = vadd.f32 %v1075, %v1244
        %1309 = vset.pattern.permute.xlu0 4
        %1310 = vperm.xlu0 %1309, %v440
        %v1311 = vpop.permute.xlu0 %1310
        %v1313 = vmul.f32 %v1311, %v444
        %v1314 = vmul.f32 %v1311, %v448
        %v1315 = vmul.f32 %v1311, %v452
        %v1316 = vmul.f32 %v1311, %v456
        %v1317 = vmul.f32 %v1311, %v460
        %v1318 = vmul.f32 %v1311, %v464
        %v1319 = vmul.f32 %v1311, %v468
        %v1320 = vmul.f32 %v1311, %v472
        %v1321 = vmul.f32 %v1311, %v476
        %v1322 = vmul.f32 %v1311, %v480
        %v1323 = vmul.f32 %v1311, %v484
        %v1324 = vmul.f32 %v1311, %v488
        %v1325 = vmul.f32 %v1311, %v492
        %v1326 = vmul.f32 %v1311, %v496
        %v1327 = vmul.f32 %v1311, %v500
        %v1328 = vmul.f32 %v1311, %v504
        %v1329 = vmul.f32 %v1311, %v508
        %v1330 = vmul.f32 %v1311, %v512
        %v1331 = vmul.f32 %v1311, %v516
        %v1332 = vmul.f32 %v1311, %v520
        %v1333 = vmul.f32 %v1311, %v524
        %v1334 = vmul.f32 %v1311, %v528
        %v1335 = vmul.f32 %v1311, %v532
        %v1336 = vmul.f32 %v1311, %v536
        %v1337 = vmul.f32 %v1311, %v540
        %v1338 = vmul.f32 %v1311, %v544
        %v1339 = vmul.f32 %v1311, %v548
        %v1340 = vmul.f32 %v1311, %v552
        %v1341 = vmul.f32 %v1311, %v556
        %v1342 = vmul.f32 %v1311, %v560
        %v1343 = vmul.f32 %v1311, %v564
        %v1344 = vmul.f32 %v1311, %v568
        %v1345 = vmul.f32 %v1311, %v609
        %1379 = vrot.lane.b32.xlu0 %v1313, 124
        %v1380 = vpop.permute.xlu0 %1379
        %1381 = vrot.lane.b32.xlu0 %v1314, 124
        %v1382 = vpop.permute.xlu0 %1381
        %1383 = vrot.lane.b32.xlu0 %v1315, 124
        %v1384 = vpop.permute.xlu0 %1383
        %1385 = vrot.lane.b32.xlu0 %v1316, 124
        %v1386 = vpop.permute.xlu0 %1385
        %1387 = vrot.lane.b32.xlu0 %v1317, 124
        %v1388 = vpop.permute.xlu0 %1387
        %1389 = vrot.lane.b32.xlu0 %v1318, 124
        %v1390 = vpop.permute.xlu0 %1389
        %1391 = vrot.lane.b32.xlu0 %v1319, 124
        %v1392 = vpop.permute.xlu0 %1391
        %1393 = vrot.lane.b32.xlu0 %v1320, 124
        %v1394 = vpop.permute.xlu0 %1393
        %1395 = vrot.lane.b32.xlu0 %v1321, 124
        %v1396 = vpop.permute.xlu0 %1395
        %1397 = vrot.lane.b32.xlu0 %v1322, 124
        %v1398 = vpop.permute.xlu0 %1397
        %1399 = vrot.lane.b32.xlu0 %v1323, 124
        %v1400 = vpop.permute.xlu0 %1399
        %1401 = vrot.lane.b32.xlu0 %v1324, 124
        %v1402 = vpop.permute.xlu0 %1401
        %1403 = vrot.lane.b32.xlu0 %v1325, 124
        %v1404 = vpop.permute.xlu0 %1403
        %1405 = vrot.lane.b32.xlu0 %v1326, 124
        %v1406 = vpop.permute.xlu0 %1405
        %1407 = vrot.lane.b32.xlu0 %v1327, 124
        %v1408 = vpop.permute.xlu0 %1407
        %1409 = vrot.lane.b32.xlu0 %v1328, 124
        %v1410 = vpop.permute.xlu0 %1409
        %1411 = vrot.lane.b32.xlu0 %v1329, 124
        %v1412 = vpop.permute.xlu0 %1411
        %1413 = vrot.lane.b32.xlu0 %v1330, 124
        %v1414 = vpop.permute.xlu0 %1413
        %1415 = vrot.lane.b32.xlu0 %v1331, 124
        %v1416 = vpop.permute.xlu0 %1415
        %1417 = vrot.lane.b32.xlu0 %v1332, 124
        %v1418 = vpop.permute.xlu0 %1417
        %1419 = vrot.lane.b32.xlu0 %v1333, 124
        %v1420 = vpop.permute.xlu0 %1419
        %1421 = vrot.lane.b32.xlu0 %v1334, 124
        %v1422 = vpop.permute.xlu0 %1421
        %1423 = vrot.lane.b32.xlu0 %v1335, 124
        %v1424 = vpop.permute.xlu0 %1423
        %1425 = vrot.lane.b32.xlu0 %v1336, 124
        %v1426 = vpop.permute.xlu0 %1425
        %1427 = vrot.lane.b32.xlu0 %v1337, 124
        %v1428 = vpop.permute.xlu0 %1427
        %1429 = vrot.lane.b32.xlu0 %v1338, 124
        %v1430 = vpop.permute.xlu0 %1429
        %1431 = vrot.lane.b32.xlu0 %v1339, 124
        %v1432 = vpop.permute.xlu0 %1431
        %1433 = vrot.lane.b32.xlu0 %v1340, 124
        %v1434 = vpop.permute.xlu0 %1433
        %1435 = vrot.lane.b32.xlu0 %v1341, 124
        %v1436 = vpop.permute.xlu0 %1435
        %1437 = vrot.lane.b32.xlu0 %v1342, 124
        %v1438 = vpop.permute.xlu0 %1437
        %1439 = vrot.lane.b32.xlu0 %v1343, 124
        %v1440 = vpop.permute.xlu0 %1439
        %1441 = vrot.lane.b32.xlu0 %v1344, 124
        %v1442 = vpop.permute.xlu0 %1441
        %1443 = vrot.lane.b32.xlu0 %v1345, 124
        %v1444 = vpop.permute.xlu0 %1443
        %vm1445 = vcmask 1014784
        %v1446 = vsel %vm1445, %v1380, %v1382
        %v1447 = vsel %vm1445, %v1382, %v1384
        %v1448 = vsel %vm1445, %v1384, %v1386
        %v1449 = vsel %vm1445, %v1386, %v1388
        %v1450 = vsel %vm1445, %v1388, %v1390
        %v1451 = vsel %vm1445, %v1390, %v1392
        %v1452 = vsel %vm1445, %v1392, %v1394
        %v1453 = vsel %vm1445, %v1394, %v1396
        %v1454 = vsel %vm1445, %v1396, %v1398
        %v1455 = vsel %vm1445, %v1398, %v1400
        %v1456 = vsel %vm1445, %v1400, %v1402
        %v1457 = vsel %vm1445, %v1402, %v1404
        %v1458 = vsel %vm1445, %v1404, %v1406
        %v1459 = vsel %vm1445, %v1406, %v1408
        %v1460 = vsel %vm1445, %v1408, %v1410
        %v1461 = vsel %vm1445, %v1410, %v1412
        %v1462 = vsel %vm1445, %v1412, %v1414
        %v1463 = vsel %vm1445, %v1414, %v1416
        %v1464 = vsel %vm1445, %v1416, %v1418
        %v1465 = vsel %vm1445, %v1418, %v1420
        %v1466 = vsel %vm1445, %v1420, %v1422
        %v1467 = vsel %vm1445, %v1422, %v1424
        %v1468 = vsel %vm1445, %v1424, %v1426
        %v1469 = vsel %vm1445, %v1426, %v1428
        %v1470 = vsel %vm1445, %v1428, %v1430
        %v1471 = vsel %vm1445, %v1430, %v1432
        %v1472 = vsel %vm1445, %v1432, %v1434
        %v1473 = vsel %vm1445, %v1434, %v1436
        %v1474 = vsel %vm1445, %v1436, %v1438
        %v1475 = vsel %vm1445, %v1438, %v1440
        %v1476 = vsel %vm1445, %v1440, %v1442
        %v1477 = vsel %vm1445, %v1442, %v1444
        %v1510 = vadd.f32 %v1277, %v1446
        %v1511 = vadd.f32 %v1278, %v1447
        %v1512 = vadd.f32 %v1279, %v1448
        %v1513 = vadd.f32 %v1280, %v1449
        %v1514 = vadd.f32 %v1281, %v1450
        %v1515 = vadd.f32 %v1282, %v1451
        %v1516 = vadd.f32 %v1283, %v1452
        %v1517 = vadd.f32 %v1284, %v1453
        %v1518 = vadd.f32 %v1285, %v1454
        %v1519 = vadd.f32 %v1286, %v1455
        %v1520 = vadd.f32 %v1287, %v1456
        %v1521 = vadd.f32 %v1288, %v1457
        %v1522 = vadd.f32 %v1289, %v1458
        %v1523 = vadd.f32 %v1290, %v1459
        %v1524 = vadd.f32 %v1291, %v1460
        %v1525 = vadd.f32 %v1292, %v1461
        %v1526 = vadd.f32 %v1293, %v1462
        %v1527 = vadd.f32 %v1294, %v1463
        %v1528 = vadd.f32 %v1295, %v1464
        %v1529 = vadd.f32 %v1296, %v1465
        %v1530 = vadd.f32 %v1297, %v1466
        %v1531 = vadd.f32 %v1298, %v1467
        %v1532 = vadd.f32 %v1299, %v1468
        %v1533 = vadd.f32 %v1300, %v1469
        %v1534 = vadd.f32 %v1301, %v1470
        %v1535 = vadd.f32 %v1302, %v1471
        %v1536 = vadd.f32 %v1303, %v1472
        %v1537 = vadd.f32 %v1304, %v1473
        %v1538 = vadd.f32 %v1305, %v1474
        %v1539 = vadd.f32 %v1306, %v1475
        %v1540 = vadd.f32 %v1307, %v1476
        %v1541 = vadd.f32 %v1308, %v1477
        %1542 = vset.pattern.permute.xlu0 5
        %1543 = vperm.xlu0 %1542, %v440
        %v1544 = vpop.permute.xlu0 %1543
        %v1546 = vmul.f32 %v1544, %v444
        %v1547 = vmul.f32 %v1544, %v448
        %v1548 = vmul.f32 %v1544, %v452
        %v1549 = vmul.f32 %v1544, %v456
        %v1550 = vmul.f32 %v1544, %v460
        %v1551 = vmul.f32 %v1544, %v464
        %v1552 = vmul.f32 %v1544, %v468
        %v1553 = vmul.f32 %v1544, %v472
        %v1554 = vmul.f32 %v1544, %v476
        %v1555 = vmul.f32 %v1544, %v480
        %v1556 = vmul.f32 %v1544, %v484
        %v1557 = vmul.f32 %v1544, %v488
        %v1558 = vmul.f32 %v1544, %v492
        %v1559 = vmul.f32 %v1544, %v496
        %v1560 = vmul.f32 %v1544, %v500
        %v1561 = vmul.f32 %v1544, %v504
        %v1562 = vmul.f32 %v1544, %v508
        %v1563 = vmul.f32 %v1544, %v512
        %v1564 = vmul.f32 %v1544, %v516
        %v1565 = vmul.f32 %v1544, %v520
        %v1566 = vmul.f32 %v1544, %v524
        %v1567 = vmul.f32 %v1544, %v528
        %v1568 = vmul.f32 %v1544, %v532
        %v1569 = vmul.f32 %v1544, %v536
        %v1570 = vmul.f32 %v1544, %v540
        %v1571 = vmul.f32 %v1544, %v544
        %v1572 = vmul.f32 %v1544, %v548
        %v1573 = vmul.f32 %v1544, %v552
        %v1574 = vmul.f32 %v1544, %v556
        %v1575 = vmul.f32 %v1544, %v560
        %v1576 = vmul.f32 %v1544, %v564
        %v1577 = vmul.f32 %v1544, %v568
        %v1578 = vmul.f32 %v1544, %v609
        %1612 = vrot.lane.b32.xlu0 %v1546, 123
        %v1613 = vpop.permute.xlu0 %1612
        %1614 = vrot.lane.b32.xlu0 %v1547, 123
        %v1615 = vpop.permute.xlu0 %1614
        %1616 = vrot.lane.b32.xlu0 %v1548, 123
        %v1617 = vpop.permute.xlu0 %1616
        %1618 = vrot.lane.b32.xlu0 %v1549, 123
        %v1619 = vpop.permute.xlu0 %1618
        %1620 = vrot.lane.b32.xlu0 %v1550, 123
        %v1621 = vpop.permute.xlu0 %1620
        %1622 = vrot.lane.b32.xlu0 %v1551, 123
        %v1623 = vpop.permute.xlu0 %1622
        %1624 = vrot.lane.b32.xlu0 %v1552, 123
        %v1625 = vpop.permute.xlu0 %1624
        %1626 = vrot.lane.b32.xlu0 %v1553, 123
        %v1627 = vpop.permute.xlu0 %1626
        %1628 = vrot.lane.b32.xlu0 %v1554, 123
        %v1629 = vpop.permute.xlu0 %1628
        %1630 = vrot.lane.b32.xlu0 %v1555, 123
        %v1631 = vpop.permute.xlu0 %1630
        %1632 = vrot.lane.b32.xlu0 %v1556, 123
        %v1633 = vpop.permute.xlu0 %1632
        %1634 = vrot.lane.b32.xlu0 %v1557, 123
        %v1635 = vpop.permute.xlu0 %1634
        %1636 = vrot.lane.b32.xlu0 %v1558, 123
        %v1637 = vpop.permute.xlu0 %1636
        %1638 = vrot.lane.b32.xlu0 %v1559, 123
        %v1639 = vpop.permute.xlu0 %1638
        %1640 = vrot.lane.b32.xlu0 %v1560, 123
        %v1641 = vpop.permute.xlu0 %1640
        %1642 = vrot.lane.b32.xlu0 %v1561, 123
        %v1643 = vpop.permute.xlu0 %1642
        %1644 = vrot.lane.b32.xlu0 %v1562, 123
        %v1645 = vpop.permute.xlu0 %1644
        %1646 = vrot.lane.b32.xlu0 %v1563, 123
        %v1647 = vpop.permute.xlu0 %1646
        %1648 = vrot.lane.b32.xlu0 %v1564, 123
        %v1649 = vpop.permute.xlu0 %1648
        %1650 = vrot.lane.b32.xlu0 %v1565, 123
        %v1651 = vpop.permute.xlu0 %1650
        %1652 = vrot.lane.b32.xlu0 %v1566, 123
        %v1653 = vpop.permute.xlu0 %1652
        %1654 = vrot.lane.b32.xlu0 %v1567, 123
        %v1655 = vpop.permute.xlu0 %1654
        %1656 = vrot.lane.b32.xlu0 %v1568, 123
        %v1657 = vpop.permute.xlu0 %1656
        %1658 = vrot.lane.b32.xlu0 %v1569, 123
        %v1659 = vpop.permute.xlu0 %1658
        %1660 = vrot.lane.b32.xlu0 %v1570, 123
        %v1661 = vpop.permute.xlu0 %1660
        %1662 = vrot.lane.b32.xlu0 %v1571, 123
        %v1663 = vpop.permute.xlu0 %1662
        %1664 = vrot.lane.b32.xlu0 %v1572, 123
        %v1665 = vpop.permute.xlu0 %1664
        %1666 = vrot.lane.b32.xlu0 %v1573, 123
        %v1667 = vpop.permute.xlu0 %1666
        %1668 = vrot.lane.b32.xlu0 %v1574, 123
        %v1669 = vpop.permute.xlu0 %1668
        %1670 = vrot.lane.b32.xlu0 %v1575, 123
        %v1671 = vpop.permute.xlu0 %1670
        %1672 = vrot.lane.b32.xlu0 %v1576, 123
        %v1673 = vpop.permute.xlu0 %1672
        %1674 = vrot.lane.b32.xlu0 %v1577, 123
        %v1675 = vpop.permute.xlu0 %1674
        %1676 = vrot.lane.b32.xlu0 %v1578, 123
        %v1677 = vpop.permute.xlu0 %1676
        %vm1678 = vcmask 1006592
        %v1679 = vsel %vm1678, %v1613, %v1615
        %v1680 = vsel %vm1678, %v1615, %v1617
        %v1681 = vsel %vm1678, %v1617, %v1619
        %v1682 = vsel %vm1678, %v1619, %v1621
        %v1683 = vsel %vm1678, %v1621, %v1623
        %v1684 = vsel %vm1678, %v1623, %v1625
        %v1685 = vsel %vm1678, %v1625, %v1627
        %v1686 = vsel %vm1678, %v1627, %v1629
        %v1687 = vsel %vm1678, %v1629, %v1631
        %v1688 = vsel %vm1678, %v1631, %v1633
        %v1689 = vsel %vm1678, %v1633, %v1635
        %v1690 = vsel %vm1678, %v1635, %v1637
        %v1691 = vsel %vm1678, %v1637, %v1639
        %v1692 = vsel %vm1678, %v1639, %v1641
        %v1693 = vsel %vm1678, %v1641, %v1643
        %v1694 = vsel %vm1678, %v1643, %v1645
        %v1695 = vsel %vm1678, %v1645, %v1647
        %v1696 = vsel %vm1678, %v1647, %v1649
        %v1697 = vsel %vm1678, %v1649, %v1651
        %v1698 = vsel %vm1678, %v1651, %v1653
        %v1699 = vsel %vm1678, %v1653, %v1655
        %v1700 = vsel %vm1678, %v1655, %v1657
        %v1701 = vsel %vm1678, %v1657, %v1659
        %v1702 = vsel %vm1678, %v1659, %v1661
        %v1703 = vsel %vm1678, %v1661, %v1663
        %v1704 = vsel %vm1678, %v1663, %v1665
        %v1705 = vsel %vm1678, %v1665, %v1667
        %v1706 = vsel %vm1678, %v1667, %v1669
        %v1707 = vsel %vm1678, %v1669, %v1671
        %v1708 = vsel %vm1678, %v1671, %v1673
        %v1709 = vsel %vm1678, %v1673, %v1675
        %v1710 = vsel %vm1678, %v1675, %v1677
        %v1743 = vadd.f32 %v1510, %v1679
        %v1744 = vadd.f32 %v1511, %v1680
        %v1745 = vadd.f32 %v1512, %v1681
        %v1746 = vadd.f32 %v1513, %v1682
        %v1747 = vadd.f32 %v1514, %v1683
        %v1748 = vadd.f32 %v1515, %v1684
        %v1749 = vadd.f32 %v1516, %v1685
        %v1750 = vadd.f32 %v1517, %v1686
        %v1751 = vadd.f32 %v1518, %v1687
        %v1752 = vadd.f32 %v1519, %v1688
        %v1753 = vadd.f32 %v1520, %v1689
        %v1754 = vadd.f32 %v1521, %v1690
        %v1755 = vadd.f32 %v1522, %v1691
        %v1756 = vadd.f32 %v1523, %v1692
        %v1757 = vadd.f32 %v1524, %v1693
        %v1758 = vadd.f32 %v1525, %v1694
        %v1759 = vadd.f32 %v1526, %v1695
        %v1760 = vadd.f32 %v1527, %v1696
        %v1761 = vadd.f32 %v1528, %v1697
        %v1762 = vadd.f32 %v1529, %v1698
        %v1763 = vadd.f32 %v1530, %v1699
        %v1764 = vadd.f32 %v1531, %v1700
        %v1765 = vadd.f32 %v1532, %v1701
        %v1766 = vadd.f32 %v1533, %v1702
        %v1767 = vadd.f32 %v1534, %v1703
        %v1768 = vadd.f32 %v1535, %v1704
        %v1769 = vadd.f32 %v1536, %v1705
        %v1770 = vadd.f32 %v1537, %v1706
        %v1771 = vadd.f32 %v1538, %v1707
        %v1772 = vadd.f32 %v1539, %v1708
        %v1773 = vadd.f32 %v1540, %v1709
        %v1774 = vadd.f32 %v1541, %v1710
        %1775 = vset.pattern.permute.xlu0 6
        %1776 = vperm.xlu0 %1775, %v440
        %v1777 = vpop.permute.xlu0 %1776
        %v1779 = vmul.f32 %v1777, %v444
        %v1780 = vmul.f32 %v1777, %v448
        %v1781 = vmul.f32 %v1777, %v452
        %v1782 = vmul.f32 %v1777, %v456
        %v1783 = vmul.f32 %v1777, %v460
        %v1784 = vmul.f32 %v1777, %v464
        %v1785 = vmul.f32 %v1777, %v468
        %v1786 = vmul.f32 %v1777, %v472
        %v1787 = vmul.f32 %v1777, %v476
        %v1788 = vmul.f32 %v1777, %v480
        %v1789 = vmul.f32 %v1777, %v484
        %v1790 = vmul.f32 %v1777, %v488
        %v1791 = vmul.f32 %v1777, %v492
        %v1792 = vmul.f32 %v1777, %v496
        %v1793 = vmul.f32 %v1777, %v500
        %v1794 = vmul.f32 %v1777, %v504
        %v1795 = vmul.f32 %v1777, %v508
        %v1796 = vmul.f32 %v1777, %v512
        %v1797 = vmul.f32 %v1777, %v516
        %v1798 = vmul.f32 %v1777, %v520
        %v1799 = vmul.f32 %v1777, %v524
        %v1800 = vmul.f32 %v1777, %v528
        %v1801 = vmul.f32 %v1777, %v532
        %v1802 = vmul.f32 %v1777, %v536
        %v1803 = vmul.f32 %v1777, %v540
        %v1804 = vmul.f32 %v1777, %v544
        %v1805 = vmul.f32 %v1777, %v548
        %v1806 = vmul.f32 %v1777, %v552
        %v1807 = vmul.f32 %v1777, %v556
        %v1808 = vmul.f32 %v1777, %v560
        %v1809 = vmul.f32 %v1777, %v564
        %v1810 = vmul.f32 %v1777, %v568
        %v1811 = vmul.f32 %v1777, %v609
        %1845 = vrot.lane.b32.xlu0 %v1779, 122
        %v1846 = vpop.permute.xlu0 %1845
        %1847 = vrot.lane.b32.xlu0 %v1780, 122
        %v1848 = vpop.permute.xlu0 %1847
        %1849 = vrot.lane.b32.xlu0 %v1781, 122
        %v1850 = vpop.permute.xlu0 %1849
        %1851 = vrot.lane.b32.xlu0 %v1782, 122
        %v1852 = vpop.permute.xlu0 %1851
        %1853 = vrot.lane.b32.xlu0 %v1783, 122
        %v1854 = vpop.permute.xlu0 %1853
        %1855 = vrot.lane.b32.xlu0 %v1784, 122
        %v1856 = vpop.permute.xlu0 %1855
        %1857 = vrot.lane.b32.xlu0 %v1785, 122
        %v1858 = vpop.permute.xlu0 %1857
        %1859 = vrot.lane.b32.xlu0 %v1786, 122
        %v1860 = vpop.permute.xlu0 %1859
        %1861 = vrot.lane.b32.xlu0 %v1787, 122
        %v1862 = vpop.permute.xlu0 %1861
        %1863 = vrot.lane.b32.xlu0 %v1788, 122
        %v1864 = vpop.permute.xlu0 %1863
        %1865 = vrot.lane.b32.xlu0 %v1789, 122
        %v1866 = vpop.permute.xlu0 %1865
        %1867 = vrot.lane.b32.xlu0 %v1790, 122
        %v1868 = vpop.permute.xlu0 %1867
        %1869 = vrot.lane.b32.xlu0 %v1791, 122
        %v1870 = vpop.permute.xlu0 %1869
        %1871 = vrot.lane.b32.xlu0 %v1792, 122
        %v1872 = vpop.permute.xlu0 %1871
        %1873 = vrot.lane.b32.xlu0 %v1793, 122
        %v1874 = vpop.permute.xlu0 %1873
        %1875 = vrot.lane.b32.xlu0 %v1794, 122
        %v1876 = vpop.permute.xlu0 %1875
        %1877 = vrot.lane.b32.xlu0 %v1795, 122
        %v1878 = vpop.permute.xlu0 %1877
        %1879 = vrot.lane.b32.xlu0 %v1796, 122
        %v1880 = vpop.permute.xlu0 %1879
        %1881 = vrot.lane.b32.xlu0 %v1797, 122
        %v1882 = vpop.permute.xlu0 %1881
        %1883 = vrot.lane.b32.xlu0 %v1798, 122
        %v1884 = vpop.permute.xlu0 %1883
        %1885 = vrot.lane.b32.xlu0 %v1799, 122
        %v1886 = vpop.permute.xlu0 %1885
        %1887 = vrot.lane.b32.xlu0 %v1800, 122
        %v1888 = vpop.permute.xlu0 %1887
        %1889 = vrot.lane.b32.xlu0 %v1801, 122
        %v1890 = vpop.permute.xlu0 %1889
        %1891 = vrot.lane.b32.xlu0 %v1802, 122
        %v1892 = vpop.permute.xlu0 %1891
        %1893 = vrot.lane.b32.xlu0 %v1803, 122
        %v1894 = vpop.permute.xlu0 %1893
        %1895 = vrot.lane.b32.xlu0 %v1804, 122
        %v1896 = vpop.permute.xlu0 %1895
        %1897 = vrot.lane.b32.xlu0 %v1805, 122
        %v1898 = vpop.permute.xlu0 %1897
        %1899 = vrot.lane.b32.xlu0 %v1806, 122
        %v1900 = vpop.permute.xlu0 %1899
        %1901 = vrot.lane.b32.xlu0 %v1807, 122
        %v1902 = vpop.permute.xlu0 %1901
        %1903 = vrot.lane.b32.xlu0 %v1808, 122
        %v1904 = vpop.permute.xlu0 %1903
        %1905 = vrot.lane.b32.xlu0 %v1809, 122
        %v1906 = vpop.permute.xlu0 %1905
        %1907 = vrot.lane.b32.xlu0 %v1810, 122
        %v1908 = vpop.permute.xlu0 %1907
        %1909 = vrot.lane.b32.xlu0 %v1811, 122
        %v1910 = vpop.permute.xlu0 %1909
        %vm1911 = vcmask 998400
        %v1912 = vsel %vm1911, %v1846, %v1848
        %v1913 = vsel %vm1911, %v1848, %v1850
        %v1914 = vsel %vm1911, %v1850, %v1852
        %v1915 = vsel %vm1911, %v1852, %v1854
        %v1916 = vsel %vm1911, %v1854, %v1856
        %v1917 = vsel %vm1911, %v1856, %v1858
        %v1918 = vsel %vm1911, %v1858, %v1860
        %v1919 = vsel %vm1911, %v1860, %v1862
        %v1920 = vsel %vm1911, %v1862, %v1864
        %v1921 = vsel %vm1911, %v1864, %v1866
        %v1922 = vsel %vm1911, %v1866, %v1868
        %v1923 = vsel %vm1911, %v1868, %v1870
        %v1924 = vsel %vm1911, %v1870, %v1872
        %v1925 = vsel %vm1911, %v1872, %v1874
        %v1926 = vsel %vm1911, %v1874, %v1876
        %v1927 = vsel %vm1911, %v1876, %v1878
        %v1928 = vsel %vm1911, %v1878, %v1880
        %v1929 = vsel %vm1911, %v1880, %v1882
        %v1930 = vsel %vm1911, %v1882, %v1884
        %v1931 = vsel %vm1911, %v1884, %v1886
        %v1932 = vsel %vm1911, %v1886, %v1888
        %v1933 = vsel %vm1911, %v1888, %v1890
        %v1934 = vsel %vm1911, %v1890, %v1892
        %v1935 = vsel %vm1911, %v1892, %v1894
        %v1936 = vsel %vm1911, %v1894, %v1896
        %v1937 = vsel %vm1911, %v1896, %v1898
        %v1938 = vsel %vm1911, %v1898, %v1900
        %v1939 = vsel %vm1911, %v1900, %v1902
        %v1940 = vsel %vm1911, %v1902, %v1904
        %v1941 = vsel %vm1911, %v1904, %v1906
        %v1942 = vsel %vm1911, %v1906, %v1908
        %v1943 = vsel %vm1911, %v1908, %v1910
        %v1976 = vadd.f32 %v1743, %v1912
        %v1977 = vadd.f32 %v1744, %v1913
        %v1978 = vadd.f32 %v1745, %v1914
        %v1979 = vadd.f32 %v1746, %v1915
        %v1980 = vadd.f32 %v1747, %v1916
        %v1981 = vadd.f32 %v1748, %v1917
        %v1982 = vadd.f32 %v1749, %v1918
        %v1983 = vadd.f32 %v1750, %v1919
        %v1984 = vadd.f32 %v1751, %v1920
        %v1985 = vadd.f32 %v1752, %v1921
        %v1986 = vadd.f32 %v1753, %v1922
        %v1987 = vadd.f32 %v1754, %v1923
        %v1988 = vadd.f32 %v1755, %v1924
        %v1989 = vadd.f32 %v1756, %v1925
        %v1990 = vadd.f32 %v1757, %v1926
        %v1991 = vadd.f32 %v1758, %v1927
        %v1992 = vadd.f32 %v1759, %v1928
        %v1993 = vadd.f32 %v1760, %v1929
        %v1994 = vadd.f32 %v1761, %v1930
        %v1995 = vadd.f32 %v1762, %v1931
        %v1996 = vadd.f32 %v1763, %v1932
        %v1997 = vadd.f32 %v1764, %v1933
        %v1998 = vadd.f32 %v1765, %v1934
        %v1999 = vadd.f32 %v1766, %v1935
        %v2000 = vadd.f32 %v1767, %v1936
        %v2001 = vadd.f32 %v1768, %v1937
        %v2002 = vadd.f32 %v1769, %v1938
        %v2003 = vadd.f32 %v1770, %v1939
        %v2004 = vadd.f32 %v1771, %v1940
        %v2005 = vadd.f32 %v1772, %v1941
        %v2006 = vadd.f32 %v1773, %v1942
        %v2007 = vadd.f32 %v1774, %v1943
        %2008 = vset.pattern.permute.xlu0 7
        %2009 = vperm.xlu0 %2008, %v440
        %v2010 = vpop.permute.xlu0 %2009
        %v2012 = vmul.f32 %v2010, %v444
        %v2013 = vmul.f32 %v2010, %v448
        %v2014 = vmul.f32 %v2010, %v452
        %v2015 = vmul.f32 %v2010, %v456
        %v2016 = vmul.f32 %v2010, %v460
        %v2017 = vmul.f32 %v2010, %v464
        %v2018 = vmul.f32 %v2010, %v468
        %v2019 = vmul.f32 %v2010, %v472
        %v2020 = vmul.f32 %v2010, %v476
        %v2021 = vmul.f32 %v2010, %v480
        %v2022 = vmul.f32 %v2010, %v484
        %v2023 = vmul.f32 %v2010, %v488
        %v2024 = vmul.f32 %v2010, %v492
        %v2025 = vmul.f32 %v2010, %v496
        %v2026 = vmul.f32 %v2010, %v500
        %v2027 = vmul.f32 %v2010, %v504
        %v2028 = vmul.f32 %v2010, %v508
        %v2029 = vmul.f32 %v2010, %v512
        %v2030 = vmul.f32 %v2010, %v516
        %v2031 = vmul.f32 %v2010, %v520
        %v2032 = vmul.f32 %v2010, %v524
        %v2033 = vmul.f32 %v2010, %v528
        %v2034 = vmul.f32 %v2010, %v532
        %v2035 = vmul.f32 %v2010, %v536
        %v2036 = vmul.f32 %v2010, %v540
        %v2037 = vmul.f32 %v2010, %v544
        %v2038 = vmul.f32 %v2010, %v548
        %v2039 = vmul.f32 %v2010, %v552
        %v2040 = vmul.f32 %v2010, %v556
        %v2041 = vmul.f32 %v2010, %v560
        %v2042 = vmul.f32 %v2010, %v564
        %v2043 = vmul.f32 %v2010, %v568
        %v2044 = vmul.f32 %v2010, %v609
        %2078 = vrot.lane.b32.xlu0 %v2012, 121
        %v2079 = vpop.permute.xlu0 %2078
        %2080 = vrot.lane.b32.xlu0 %v2013, 121
        %v2081 = vpop.permute.xlu0 %2080
        %2082 = vrot.lane.b32.xlu0 %v2014, 121
        %v2083 = vpop.permute.xlu0 %2082
        %2084 = vrot.lane.b32.xlu0 %v2015, 121
        %v2085 = vpop.permute.xlu0 %2084
        %2086 = vrot.lane.b32.xlu0 %v2016, 121
        %v2087 = vpop.permute.xlu0 %2086
        %2088 = vrot.lane.b32.xlu0 %v2017, 121
        %v2089 = vpop.permute.xlu0 %2088
        %2090 = vrot.lane.b32.xlu0 %v2018, 121
        %v2091 = vpop.permute.xlu0 %2090
        %2092 = vrot.lane.b32.xlu0 %v2019, 121
        %v2093 = vpop.permute.xlu0 %2092
        %2094 = vrot.lane.b32.xlu0 %v2020, 121
        %v2095 = vpop.permute.xlu0 %2094
        %2096 = vrot.lane.b32.xlu0 %v2021, 121
        %v2097 = vpop.permute.xlu0 %2096
        %2098 = vrot.lane.b32.xlu0 %v2022, 121
        %v2099 = vpop.permute.xlu0 %2098
        %2100 = vrot.lane.b32.xlu0 %v2023, 121
        %v2101 = vpop.permute.xlu0 %2100
        %2102 = vrot.lane.b32.xlu0 %v2024, 121
        %v2103 = vpop.permute.xlu0 %2102
        %2104 = vrot.lane.b32.xlu0 %v2025, 121
        %v2105 = vpop.permute.xlu0 %2104
        %2106 = vrot.lane.b32.xlu0 %v2026, 121
        %v2107 = vpop.permute.xlu0 %2106
        %2108 = vrot.lane.b32.xlu0 %v2027, 121
        %v2109 = vpop.permute.xlu0 %2108
        %2110 = vrot.lane.b32.xlu0 %v2028, 121
        %v2111 = vpop.permute.xlu0 %2110
        %2112 = vrot.lane.b32.xlu0 %v2029, 121
        %v2113 = vpop.permute.xlu0 %2112
        %2114 = vrot.lane.b32.xlu0 %v2030, 121
        %v2115 = vpop.permute.xlu0 %2114
        %2116 = vrot.lane.b32.xlu0 %v2031, 121
        %v2117 = vpop.permute.xlu0 %2116
        %2118 = vrot.lane.b32.xlu0 %v2032, 121
        %v2119 = vpop.permute.xlu0 %2118
        %2120 = vrot.lane.b32.xlu0 %v2033, 121
        %v2121 = vpop.permute.xlu0 %2120
        %2122 = vrot.lane.b32.xlu0 %v2034, 121
        %v2123 = vpop.permute.xlu0 %2122
        %2124 = vrot.lane.b32.xlu0 %v2035, 121
        %v2125 = vpop.permute.xlu0 %2124
        %2126 = vrot.lane.b32.xlu0 %v2036, 121
        %v2127 = vpop.permute.xlu0 %2126
        %2128 = vrot.lane.b32.xlu0 %v2037, 121
        %v2129 = vpop.permute.xlu0 %2128
        %2130 = vrot.lane.b32.xlu0 %v2038, 121
        %v2131 = vpop.permute.xlu0 %2130
        %2132 = vrot.lane.b32.xlu0 %v2039, 121
        %v2133 = vpop.permute.xlu0 %2132
        %2134 = vrot.lane.b32.xlu0 %v2040, 121
        %v2135 = vpop.permute.xlu0 %2134
        %2136 = vrot.lane.b32.xlu0 %v2041, 121
        %v2137 = vpop.permute.xlu0 %2136
        %2138 = vrot.lane.b32.xlu0 %v2042, 121
        %v2139 = vpop.permute.xlu0 %2138
        %2140 = vrot.lane.b32.xlu0 %v2043, 121
        %v2141 = vpop.permute.xlu0 %2140
        %2142 = vrot.lane.b32.xlu0 %v2044, 121
        %v2143 = vpop.permute.xlu0 %2142
        %vm2144 = vcmask 990208
        %v2145 = vsel %vm2144, %v2079, %v2081
        %v2146 = vsel %vm2144, %v2081, %v2083
        %v2147 = vsel %vm2144, %v2083, %v2085
        %v2148 = vsel %vm2144, %v2085, %v2087
        %v2149 = vsel %vm2144, %v2087, %v2089
        %v2150 = vsel %vm2144, %v2089, %v2091
        %v2151 = vsel %vm2144, %v2091, %v2093
        %v2152 = vsel %vm2144, %v2093, %v2095
        %v2153 = vsel %vm2144, %v2095, %v2097
        %v2154 = vsel %vm2144, %v2097, %v2099
        %v2155 = vsel %vm2144, %v2099, %v2101
        %v2156 = vsel %vm2144, %v2101, %v2103
        %v2157 = vsel %vm2144, %v2103, %v2105
        %v2158 = vsel %vm2144, %v2105, %v2107
        %v2159 = vsel %vm2144, %v2107, %v2109
        %v2160 = vsel %vm2144, %v2109, %v2111
        %v2161 = vsel %vm2144, %v2111, %v2113
        %v2162 = vsel %vm2144, %v2113, %v2115
        %v2163 = vsel %vm2144, %v2115, %v2117
        %v2164 = vsel %vm2144, %v2117, %v2119
        %v2165 = vsel %vm2144, %v2119, %v2121
        %v2166 = vsel %vm2144, %v2121, %v2123
        %v2167 = vsel %vm2144, %v2123, %v2125
        %v2168 = vsel %vm2144, %v2125, %v2127
        %v2169 = vsel %vm2144, %v2127, %v2129
        %v2170 = vsel %vm2144, %v2129, %v2131
        %v2171 = vsel %vm2144, %v2131, %v2133
        %v2172 = vsel %vm2144, %v2133, %v2135
        %v2173 = vsel %vm2144, %v2135, %v2137
        %v2174 = vsel %vm2144, %v2137, %v2139
        %v2175 = vsel %vm2144, %v2139, %v2141
        %v2176 = vsel %vm2144, %v2141, %v2143
        %v2209 = vadd.f32 %v1976, %v2145
        %v2210 = vadd.f32 %v1977, %v2146
        %v2211 = vadd.f32 %v1978, %v2147
        %v2212 = vadd.f32 %v1979, %v2148
        %v2213 = vadd.f32 %v1980, %v2149
        %v2214 = vadd.f32 %v1981, %v2150
        %v2215 = vadd.f32 %v1982, %v2151
        %v2216 = vadd.f32 %v1983, %v2152
        %v2217 = vadd.f32 %v1984, %v2153
        %v2218 = vadd.f32 %v1985, %v2154
        %v2219 = vadd.f32 %v1986, %v2155
        %v2220 = vadd.f32 %v1987, %v2156
        %v2221 = vadd.f32 %v1988, %v2157
        %v2222 = vadd.f32 %v1989, %v2158
        %v2223 = vadd.f32 %v1990, %v2159
        %v2224 = vadd.f32 %v1991, %v2160
        %v2225 = vadd.f32 %v1992, %v2161
        %v2226 = vadd.f32 %v1993, %v2162
        %v2227 = vadd.f32 %v1994, %v2163
        %v2228 = vadd.f32 %v1995, %v2164
        %v2229 = vadd.f32 %v1996, %v2165
        %v2230 = vadd.f32 %v1997, %v2166
        %v2231 = vadd.f32 %v1998, %v2167
        %v2232 = vadd.f32 %v1999, %v2168
        %v2233 = vadd.f32 %v2000, %v2169
        %v2234 = vadd.f32 %v2001, %v2170
        %v2235 = vadd.f32 %v2002, %v2171
        %v2236 = vadd.f32 %v2003, %v2172
        %v2237 = vadd.f32 %v2004, %v2173
        %v2238 = vadd.f32 %v2005, %v2174
        %v2239 = vadd.f32 %v2006, %v2175
        %v2240 = vadd.f32 %v2007, %v2176
        %2241 = vset.pattern.permute.xlu0 8
        %2242 = vperm.xlu0 %2241, %v440
        %v2243 = vpop.permute.xlu0 %2242
        %v2245 = vmul.f32 %v2243, %v444
        %v2246 = vmul.f32 %v2243, %v448
        %v2247 = vmul.f32 %v2243, %v452
        %v2248 = vmul.f32 %v2243, %v456
        %v2249 = vmul.f32 %v2243, %v460
        %v2250 = vmul.f32 %v2243, %v464
        %v2251 = vmul.f32 %v2243, %v468
        %v2252 = vmul.f32 %v2243, %v472
        %v2253 = vmul.f32 %v2243, %v476
        %v2254 = vmul.f32 %v2243, %v480
        %v2255 = vmul.f32 %v2243, %v484
        %v2256 = vmul.f32 %v2243, %v488
        %v2257 = vmul.f32 %v2243, %v492
        %v2258 = vmul.f32 %v2243, %v496
        %v2259 = vmul.f32 %v2243, %v500
        %v2260 = vmul.f32 %v2243, %v504
        %v2261 = vmul.f32 %v2243, %v508
        %v2262 = vmul.f32 %v2243, %v512
        %v2263 = vmul.f32 %v2243, %v516
        %v2264 = vmul.f32 %v2243, %v520
        %v2265 = vmul.f32 %v2243, %v524
        %v2266 = vmul.f32 %v2243, %v528
        %v2267 = vmul.f32 %v2243, %v532
        %v2268 = vmul.f32 %v2243, %v536
        %v2269 = vmul.f32 %v2243, %v540
        %v2270 = vmul.f32 %v2243, %v544
        %v2271 = vmul.f32 %v2243, %v548
        %v2272 = vmul.f32 %v2243, %v552
        %v2273 = vmul.f32 %v2243, %v556
        %v2274 = vmul.f32 %v2243, %v560
        %v2275 = vmul.f32 %v2243, %v564
        %v2276 = vmul.f32 %v2243, %v568
        %v2277 = vmul.f32 %v2243, %v609
        %2311 = vrot.lane.b32.xlu0 %v2245, 120
        %v2312 = vpop.permute.xlu0 %2311
        %2313 = vrot.lane.b32.xlu0 %v2246, 120
        %v2314 = vpop.permute.xlu0 %2313
        %2315 = vrot.lane.b32.xlu0 %v2247, 120
        %v2316 = vpop.permute.xlu0 %2315
        %2317 = vrot.lane.b32.xlu0 %v2248, 120
        %v2318 = vpop.permute.xlu0 %2317
        %2319 = vrot.lane.b32.xlu0 %v2249, 120
        %v2320 = vpop.permute.xlu0 %2319
        %2321 = vrot.lane.b32.xlu0 %v2250, 120
        %v2322 = vpop.permute.xlu0 %2321
        %2323 = vrot.lane.b32.xlu0 %v2251, 120
        %v2324 = vpop.permute.xlu0 %2323
        %2325 = vrot.lane.b32.xlu0 %v2252, 120
        %v2326 = vpop.permute.xlu0 %2325
        %2327 = vrot.lane.b32.xlu0 %v2253, 120
        %v2328 = vpop.permute.xlu0 %2327
        %2329 = vrot.lane.b32.xlu0 %v2254, 120
        %v2330 = vpop.permute.xlu0 %2329
        %2331 = vrot.lane.b32.xlu0 %v2255, 120
        %v2332 = vpop.permute.xlu0 %2331
        %2333 = vrot.lane.b32.xlu0 %v2256, 120
        %v2334 = vpop.permute.xlu0 %2333
        %2335 = vrot.lane.b32.xlu0 %v2257, 120
        %v2336 = vpop.permute.xlu0 %2335
        %2337 = vrot.lane.b32.xlu0 %v2258, 120
        %v2338 = vpop.permute.xlu0 %2337
        %2339 = vrot.lane.b32.xlu0 %v2259, 120
        %v2340 = vpop.permute.xlu0 %2339
        %2341 = vrot.lane.b32.xlu0 %v2260, 120
        %v2342 = vpop.permute.xlu0 %2341
        %2343 = vrot.lane.b32.xlu0 %v2261, 120
        %v2344 = vpop.permute.xlu0 %2343
        %2345 = vrot.lane.b32.xlu0 %v2262, 120
        %v2346 = vpop.permute.xlu0 %2345
        %2347 = vrot.lane.b32.xlu0 %v2263, 120
        %v2348 = vpop.permute.xlu0 %2347
        %2349 = vrot.lane.b32.xlu0 %v2264, 120
        %v2350 = vpop.permute.xlu0 %2349
        %2351 = vrot.lane.b32.xlu0 %v2265, 120
        %v2352 = vpop.permute.xlu0 %2351
        %2353 = vrot.lane.b32.xlu0 %v2266, 120
        %v2354 = vpop.permute.xlu0 %2353
        %2355 = vrot.lane.b32.xlu0 %v2267, 120
        %v2356 = vpop.permute.xlu0 %2355
        %2357 = vrot.lane.b32.xlu0 %v2268, 120
        %v2358 = vpop.permute.xlu0 %2357
        %2359 = vrot.lane.b32.xlu0 %v2269, 120
        %v2360 = vpop.permute.xlu0 %2359
        %2361 = vrot.lane.b32.xlu0 %v2270, 120
        %v2362 = vpop.permute.xlu0 %2361
        %2363 = vrot.lane.b32.xlu0 %v2271, 120
        %v2364 = vpop.permute.xlu0 %2363
        %2365 = vrot.lane.b32.xlu0 %v2272, 120
        %v2366 = vpop.permute.xlu0 %2365
        %2367 = vrot.lane.b32.xlu0 %v2273, 120
        %v2368 = vpop.permute.xlu0 %2367
        %2369 = vrot.lane.b32.xlu0 %v2274, 120
        %v2370 = vpop.permute.xlu0 %2369
        %2371 = vrot.lane.b32.xlu0 %v2275, 120
        %v2372 = vpop.permute.xlu0 %2371
        %2373 = vrot.lane.b32.xlu0 %v2276, 120
        %v2374 = vpop.permute.xlu0 %2373
        %2375 = vrot.lane.b32.xlu0 %v2277, 120
        %v2376 = vpop.permute.xlu0 %2375
        %vm2377 = vcmask 982016
        %v2378 = vsel %vm2377, %v2312, %v2314
        %v2379 = vsel %vm2377, %v2314, %v2316
        %v2380 = vsel %vm2377, %v2316, %v2318
        %v2381 = vsel %vm2377, %v2318, %v2320
        %v2382 = vsel %vm2377, %v2320, %v2322
        %v2383 = vsel %vm2377, %v2322, %v2324
        %v2384 = vsel %vm2377, %v2324, %v2326
        %v2385 = vsel %vm2377, %v2326, %v2328
        %v2386 = vsel %vm2377, %v2328, %v2330
        %v2387 = vsel %vm2377, %v2330, %v2332
        %v2388 = vsel %vm2377, %v2332, %v2334
        %v2389 = vsel %vm2377, %v2334, %v2336
        %v2390 = vsel %vm2377, %v2336, %v2338
        %v2391 = vsel %vm2377, %v2338, %v2340
        %v2392 = vsel %vm2377, %v2340, %v2342
        %v2393 = vsel %vm2377, %v2342, %v2344
        %v2394 = vsel %vm2377, %v2344, %v2346
        %v2395 = vsel %vm2377, %v2346, %v2348
        %v2396 = vsel %vm2377, %v2348, %v2350
        %v2397 = vsel %vm2377, %v2350, %v2352
        %v2398 = vsel %vm2377, %v2352, %v2354
        %v2399 = vsel %vm2377, %v2354, %v2356
        %v2400 = vsel %vm2377, %v2356, %v2358
        %v2401 = vsel %vm2377, %v2358, %v2360
        %v2402 = vsel %vm2377, %v2360, %v2362
        %v2403 = vsel %vm2377, %v2362, %v2364
        %v2404 = vsel %vm2377, %v2364, %v2366
        %v2405 = vsel %vm2377, %v2366, %v2368
        %v2406 = vsel %vm2377, %v2368, %v2370
        %v2407 = vsel %vm2377, %v2370, %v2372
        %v2408 = vsel %vm2377, %v2372, %v2374
        %v2409 = vsel %vm2377, %v2374, %v2376
        %v2442 = vadd.f32 %v2209, %v2378
        %v2443 = vadd.f32 %v2210, %v2379
        %v2444 = vadd.f32 %v2211, %v2380
        %v2445 = vadd.f32 %v2212, %v2381
        %v2446 = vadd.f32 %v2213, %v2382
        %v2447 = vadd.f32 %v2214, %v2383
        %v2448 = vadd.f32 %v2215, %v2384
        %v2449 = vadd.f32 %v2216, %v2385
        %v2450 = vadd.f32 %v2217, %v2386
        %v2451 = vadd.f32 %v2218, %v2387
        %v2452 = vadd.f32 %v2219, %v2388
        %v2453 = vadd.f32 %v2220, %v2389
        %v2454 = vadd.f32 %v2221, %v2390
        %v2455 = vadd.f32 %v2222, %v2391
        %v2456 = vadd.f32 %v2223, %v2392
        %v2457 = vadd.f32 %v2224, %v2393
        %v2458 = vadd.f32 %v2225, %v2394
        %v2459 = vadd.f32 %v2226, %v2395
        %v2460 = vadd.f32 %v2227, %v2396
        %v2461 = vadd.f32 %v2228, %v2397
        %v2462 = vadd.f32 %v2229, %v2398
        %v2463 = vadd.f32 %v2230, %v2399
        %v2464 = vadd.f32 %v2231, %v2400
        %v2465 = vadd.f32 %v2232, %v2401
        %v2466 = vadd.f32 %v2233, %v2402
        %v2467 = vadd.f32 %v2234, %v2403
        %v2468 = vadd.f32 %v2235, %v2404
        %v2469 = vadd.f32 %v2236, %v2405
        %v2470 = vadd.f32 %v2237, %v2406
        %v2471 = vadd.f32 %v2238, %v2407
        %v2472 = vadd.f32 %v2239, %v2408
        %v2473 = vadd.f32 %v2240, %v2409
        %2474 = vset.pattern.permute.xlu0 9
        %2475 = vperm.xlu0 %2474, %v440
        %v2476 = vpop.permute.xlu0 %2475
        %v2478 = vmul.f32 %v2476, %v444
        %v2479 = vmul.f32 %v2476, %v448
        %v2480 = vmul.f32 %v2476, %v452
        %v2481 = vmul.f32 %v2476, %v456
        %v2482 = vmul.f32 %v2476, %v460
        %v2483 = vmul.f32 %v2476, %v464
        %v2484 = vmul.f32 %v2476, %v468
        %v2485 = vmul.f32 %v2476, %v472
        %v2486 = vmul.f32 %v2476, %v476
        %v2487 = vmul.f32 %v2476, %v480
        %v2488 = vmul.f32 %v2476, %v484
        %v2489 = vmul.f32 %v2476, %v488
        %v2490 = vmul.f32 %v2476, %v492
        %v2491 = vmul.f32 %v2476, %v496
        %v2492 = vmul.f32 %v2476, %v500
        %v2493 = vmul.f32 %v2476, %v504
        %v2494 = vmul.f32 %v2476, %v508
        %v2495 = vmul.f32 %v2476, %v512
        %v2496 = vmul.f32 %v2476, %v516
        %v2497 = vmul.f32 %v2476, %v520
        %v2498 = vmul.f32 %v2476, %v524
        %v2499 = vmul.f32 %v2476, %v528
        %v2500 = vmul.f32 %v2476, %v532
        %v2501 = vmul.f32 %v2476, %v536
        %v2502 = vmul.f32 %v2476, %v540
        %v2503 = vmul.f32 %v2476, %v544
        %v2504 = vmul.f32 %v2476, %v548
        %v2505 = vmul.f32 %v2476, %v552
        %v2506 = vmul.f32 %v2476, %v556
        %v2507 = vmul.f32 %v2476, %v560
        %v2508 = vmul.f32 %v2476, %v564
        %v2509 = vmul.f32 %v2476, %v568
        %v2510 = vmul.f32 %v2476, %v609
        %2544 = vrot.lane.b32.xlu0 %v2478, 119
        %v2545 = vpop.permute.xlu0 %2544
        %2546 = vrot.lane.b32.xlu0 %v2479, 119
        %v2547 = vpop.permute.xlu0 %2546
        %2548 = vrot.lane.b32.xlu0 %v2480, 119
        %v2549 = vpop.permute.xlu0 %2548
        %2550 = vrot.lane.b32.xlu0 %v2481, 119
        %v2551 = vpop.permute.xlu0 %2550
        %2552 = vrot.lane.b32.xlu0 %v2482, 119
        %v2553 = vpop.permute.xlu0 %2552
        %2554 = vrot.lane.b32.xlu0 %v2483, 119
        %v2555 = vpop.permute.xlu0 %2554
        %2556 = vrot.lane.b32.xlu0 %v2484, 119
        %v2557 = vpop.permute.xlu0 %2556
        %2558 = vrot.lane.b32.xlu0 %v2485, 119
        %v2559 = vpop.permute.xlu0 %2558
        %2560 = vrot.lane.b32.xlu0 %v2486, 119
        %v2561 = vpop.permute.xlu0 %2560
        %2562 = vrot.lane.b32.xlu0 %v2487, 119
        %v2563 = vpop.permute.xlu0 %2562
        %2564 = vrot.lane.b32.xlu0 %v2488, 119
        %v2565 = vpop.permute.xlu0 %2564
        %2566 = vrot.lane.b32.xlu0 %v2489, 119
        %v2567 = vpop.permute.xlu0 %2566
        %2568 = vrot.lane.b32.xlu0 %v2490, 119
        %v2569 = vpop.permute.xlu0 %2568
        %2570 = vrot.lane.b32.xlu0 %v2491, 119
        %v2571 = vpop.permute.xlu0 %2570
        %2572 = vrot.lane.b32.xlu0 %v2492, 119
        %v2573 = vpop.permute.xlu0 %2572
        %2574 = vrot.lane.b32.xlu0 %v2493, 119
        %v2575 = vpop.permute.xlu0 %2574
        %2576 = vrot.lane.b32.xlu0 %v2494, 119
        %v2577 = vpop.permute.xlu0 %2576
        %2578 = vrot.lane.b32.xlu0 %v2495, 119
        %v2579 = vpop.permute.xlu0 %2578
        %2580 = vrot.lane.b32.xlu0 %v2496, 119
        %v2581 = vpop.permute.xlu0 %2580
        %2582 = vrot.lane.b32.xlu0 %v2497, 119
        %v2583 = vpop.permute.xlu0 %2582
        %2584 = vrot.lane.b32.xlu0 %v2498, 119
        %v2585 = vpop.permute.xlu0 %2584
        %2586 = vrot.lane.b32.xlu0 %v2499, 119
        %v2587 = vpop.permute.xlu0 %2586
        %2588 = vrot.lane.b32.xlu0 %v2500, 119
        %v2589 = vpop.permute.xlu0 %2588
        %2590 = vrot.lane.b32.xlu0 %v2501, 119
        %v2591 = vpop.permute.xlu0 %2590
        %2592 = vrot.lane.b32.xlu0 %v2502, 119
        %v2593 = vpop.permute.xlu0 %2592
        %2594 = vrot.lane.b32.xlu0 %v2503, 119
        %v2595 = vpop.permute.xlu0 %2594
        %2596 = vrot.lane.b32.xlu0 %v2504, 119
        %v2597 = vpop.permute.xlu0 %2596
        %2598 = vrot.lane.b32.xlu0 %v2505, 119
        %v2599 = vpop.permute.xlu0 %2598
        %2600 = vrot.lane.b32.xlu0 %v2506, 119
        %v2601 = vpop.permute.xlu0 %2600
        %2602 = vrot.lane.b32.xlu0 %v2507, 119
        %v2603 = vpop.permute.xlu0 %2602
        %2604 = vrot.lane.b32.xlu0 %v2508, 119
        %v2605 = vpop.permute.xlu0 %2604
        %2606 = vrot.lane.b32.xlu0 %v2509, 119
        %v2607 = vpop.permute.xlu0 %2606
        %2608 = vrot.lane.b32.xlu0 %v2510, 119
        %v2609 = vpop.permute.xlu0 %2608
        %vm2610 = vcmask 973824
        %v2611 = vsel %vm2610, %v2545, %v2547
        %v2612 = vsel %vm2610, %v2547, %v2549
        %v2613 = vsel %vm2610, %v2549, %v2551
        %v2614 = vsel %vm2610, %v2551, %v2553
        %v2615 = vsel %vm2610, %v2553, %v2555
        %v2616 = vsel %vm2610, %v2555, %v2557
        %v2617 = vsel %vm2610, %v2557, %v2559
        %v2618 = vsel %vm2610, %v2559, %v2561
        %v2619 = vsel %vm2610, %v2561, %v2563
        %v2620 = vsel %vm2610, %v2563, %v2565
        %v2621 = vsel %vm2610, %v2565, %v2567
        %v2622 = vsel %vm2610, %v2567, %v2569
        %v2623 = vsel %vm2610, %v2569, %v2571
        %v2624 = vsel %vm2610, %v2571, %v2573
        %v2625 = vsel %vm2610, %v2573, %v2575
        %v2626 = vsel %vm2610, %v2575, %v2577
        %v2627 = vsel %vm2610, %v2577, %v2579
        %v2628 = vsel %vm2610, %v2579, %v2581
        %v2629 = vsel %vm2610, %v2581, %v2583
        %v2630 = vsel %vm2610, %v2583, %v2585
        %v2631 = vsel %vm2610, %v2585, %v2587
        %v2632 = vsel %vm2610, %v2587, %v2589
        %v2633 = vsel %vm2610, %v2589, %v2591
        %v2634 = vsel %vm2610, %v2591, %v2593
        %v2635 = vsel %vm2610, %v2593, %v2595
        %v2636 = vsel %vm2610, %v2595, %v2597
        %v2637 = vsel %vm2610, %v2597, %v2599
        %v2638 = vsel %vm2610, %v2599, %v2601
        %v2639 = vsel %vm2610, %v2601, %v2603
        %v2640 = vsel %vm2610, %v2603, %v2605
        %v2641 = vsel %vm2610, %v2605, %v2607
        %v2642 = vsel %vm2610, %v2607, %v2609
        %v2675 = vadd.f32 %v2442, %v2611
        %v2676 = vadd.f32 %v2443, %v2612
        %v2677 = vadd.f32 %v2444, %v2613
        %v2678 = vadd.f32 %v2445, %v2614
        %v2679 = vadd.f32 %v2446, %v2615
        %v2680 = vadd.f32 %v2447, %v2616
        %v2681 = vadd.f32 %v2448, %v2617
        %v2682 = vadd.f32 %v2449, %v2618
        %v2683 = vadd.f32 %v2450, %v2619
        %v2684 = vadd.f32 %v2451, %v2620
        %v2685 = vadd.f32 %v2452, %v2621
        %v2686 = vadd.f32 %v2453, %v2622
        %v2687 = vadd.f32 %v2454, %v2623
        %v2688 = vadd.f32 %v2455, %v2624
        %v2689 = vadd.f32 %v2456, %v2625
        %v2690 = vadd.f32 %v2457, %v2626
        %v2691 = vadd.f32 %v2458, %v2627
        %v2692 = vadd.f32 %v2459, %v2628
        %v2693 = vadd.f32 %v2460, %v2629
        %v2694 = vadd.f32 %v2461, %v2630
        %v2695 = vadd.f32 %v2462, %v2631
        %v2696 = vadd.f32 %v2463, %v2632
        %v2697 = vadd.f32 %v2464, %v2633
        %v2698 = vadd.f32 %v2465, %v2634
        %v2699 = vadd.f32 %v2466, %v2635
        %v2700 = vadd.f32 %v2467, %v2636
        %v2701 = vadd.f32 %v2468, %v2637
        %v2702 = vadd.f32 %v2469, %v2638
        %v2703 = vadd.f32 %v2470, %v2639
        %v2704 = vadd.f32 %v2471, %v2640
        %v2705 = vadd.f32 %v2472, %v2641
        %v2706 = vadd.f32 %v2473, %v2642
        %2707 = vset.pattern.permute.xlu0 10
        %2708 = vperm.xlu0 %2707, %v440
        %v2709 = vpop.permute.xlu0 %2708
        %v2711 = vmul.f32 %v2709, %v444
        %v2712 = vmul.f32 %v2709, %v448
        %v2713 = vmul.f32 %v2709, %v452
        %v2714 = vmul.f32 %v2709, %v456
        %v2715 = vmul.f32 %v2709, %v460
        %v2716 = vmul.f32 %v2709, %v464
        %v2717 = vmul.f32 %v2709, %v468
        %v2718 = vmul.f32 %v2709, %v472
        %v2719 = vmul.f32 %v2709, %v476
        %v2720 = vmul.f32 %v2709, %v480
        %v2721 = vmul.f32 %v2709, %v484
        %v2722 = vmul.f32 %v2709, %v488
        %v2723 = vmul.f32 %v2709, %v492
        %v2724 = vmul.f32 %v2709, %v496
        %v2725 = vmul.f32 %v2709, %v500
        %v2726 = vmul.f32 %v2709, %v504
        %v2727 = vmul.f32 %v2709, %v508
        %v2728 = vmul.f32 %v2709, %v512
        %v2729 = vmul.f32 %v2709, %v516
        %v2730 = vmul.f32 %v2709, %v520
        %v2731 = vmul.f32 %v2709, %v524
        %v2732 = vmul.f32 %v2709, %v528
        %v2733 = vmul.f32 %v2709, %v532
        %v2734 = vmul.f32 %v2709, %v536
        %v2735 = vmul.f32 %v2709, %v540
        %v2736 = vmul.f32 %v2709, %v544
        %v2737 = vmul.f32 %v2709, %v548
        %v2738 = vmul.f32 %v2709, %v552
        %v2739 = vmul.f32 %v2709, %v556
        %v2740 = vmul.f32 %v2709, %v560
        %v2741 = vmul.f32 %v2709, %v564
        %v2742 = vmul.f32 %v2709, %v568
        %v2743 = vmul.f32 %v2709, %v609
        %2777 = vrot.lane.b32.xlu0 %v2711, 118
        %v2778 = vpop.permute.xlu0 %2777
        %2779 = vrot.lane.b32.xlu0 %v2712, 118
        %v2780 = vpop.permute.xlu0 %2779
        %2781 = vrot.lane.b32.xlu0 %v2713, 118
        %v2782 = vpop.permute.xlu0 %2781
        %2783 = vrot.lane.b32.xlu0 %v2714, 118
        %v2784 = vpop.permute.xlu0 %2783
        %2785 = vrot.lane.b32.xlu0 %v2715, 118
        %v2786 = vpop.permute.xlu0 %2785
        %2787 = vrot.lane.b32.xlu0 %v2716, 118
        %v2788 = vpop.permute.xlu0 %2787
        %2789 = vrot.lane.b32.xlu0 %v2717, 118
        %v2790 = vpop.permute.xlu0 %2789
        %2791 = vrot.lane.b32.xlu0 %v2718, 118
        %v2792 = vpop.permute.xlu0 %2791
        %2793 = vrot.lane.b32.xlu0 %v2719, 118
        %v2794 = vpop.permute.xlu0 %2793
        %2795 = vrot.lane.b32.xlu0 %v2720, 118
        %v2796 = vpop.permute.xlu0 %2795
        %2797 = vrot.lane.b32.xlu0 %v2721, 118
        %v2798 = vpop.permute.xlu0 %2797
        %2799 = vrot.lane.b32.xlu0 %v2722, 118
        %v2800 = vpop.permute.xlu0 %2799
        %2801 = vrot.lane.b32.xlu0 %v2723, 118
        %v2802 = vpop.permute.xlu0 %2801
        %2803 = vrot.lane.b32.xlu0 %v2724, 118
        %v2804 = vpop.permute.xlu0 %2803
        %2805 = vrot.lane.b32.xlu0 %v2725, 118
        %v2806 = vpop.permute.xlu0 %2805
        %2807 = vrot.lane.b32.xlu0 %v2726, 118
        %v2808 = vpop.permute.xlu0 %2807
        %2809 = vrot.lane.b32.xlu0 %v2727, 118
        %v2810 = vpop.permute.xlu0 %2809
        %2811 = vrot.lane.b32.xlu0 %v2728, 118
        %v2812 = vpop.permute.xlu0 %2811
        %2813 = vrot.lane.b32.xlu0 %v2729, 118
        %v2814 = vpop.permute.xlu0 %2813
        %2815 = vrot.lane.b32.xlu0 %v2730, 118
        %v2816 = vpop.permute.xlu0 %2815
        %2817 = vrot.lane.b32.xlu0 %v2731, 118
        %v2818 = vpop.permute.xlu0 %2817
        %2819 = vrot.lane.b32.xlu0 %v2732, 118
        %v2820 = vpop.permute.xlu0 %2819
        %2821 = vrot.lane.b32.xlu0 %v2733, 118
        %v2822 = vpop.permute.xlu0 %2821
        %2823 = vrot.lane.b32.xlu0 %v2734, 118
        %v2824 = vpop.permute.xlu0 %2823
        %2825 = vrot.lane.b32.xlu0 %v2735, 118
        %v2826 = vpop.permute.xlu0 %2825
        %2827 = vrot.lane.b32.xlu0 %v2736, 118
        %v2828 = vpop.permute.xlu0 %2827
        %2829 = vrot.lane.b32.xlu0 %v2737, 118
        %v2830 = vpop.permute.xlu0 %2829
        %2831 = vrot.lane.b32.xlu0 %v2738, 118
        %v2832 = vpop.permute.xlu0 %2831
        %2833 = vrot.lane.b32.xlu0 %v2739, 118
        %v2834 = vpop.permute.xlu0 %2833
        %2835 = vrot.lane.b32.xlu0 %v2740, 118
        %v2836 = vpop.permute.xlu0 %2835
        %2837 = vrot.lane.b32.xlu0 %v2741, 118
        %v2838 = vpop.permute.xlu0 %2837
        %2839 = vrot.lane.b32.xlu0 %v2742, 118
        %v2840 = vpop.permute.xlu0 %2839
        %2841 = vrot.lane.b32.xlu0 %v2743, 118
        %v2842 = vpop.permute.xlu0 %2841
        %vm2843 = vcmask 965632
        %v2844 = vsel %vm2843, %v2778, %v2780
        %v2845 = vsel %vm2843, %v2780, %v2782
        %v2846 = vsel %vm2843, %v2782, %v2784
        %v2847 = vsel %vm2843, %v2784, %v2786
        %v2848 = vsel %vm2843, %v2786, %v2788
        %v2849 = vsel %vm2843, %v2788, %v2790
        %v2850 = vsel %vm2843, %v2790, %v2792
        %v2851 = vsel %vm2843, %v2792, %v2794
        %v2852 = vsel %vm2843, %v2794, %v2796
        %v2853 = vsel %vm2843, %v2796, %v2798
        %v2854 = vsel %vm2843, %v2798, %v2800
        %v2855 = vsel %vm2843, %v2800, %v2802
        %v2856 = vsel %vm2843, %v2802, %v2804
        %v2857 = vsel %vm2843, %v2804, %v2806
        %v2858 = vsel %vm2843, %v2806, %v2808
        %v2859 = vsel %vm2843, %v2808, %v2810
        %v2860 = vsel %vm2843, %v2810, %v2812
        %v2861 = vsel %vm2843, %v2812, %v2814
        %v2862 = vsel %vm2843, %v2814, %v2816
        %v2863 = vsel %vm2843, %v2816, %v2818
        %v2864 = vsel %vm2843, %v2818, %v2820
        %v2865 = vsel %vm2843, %v2820, %v2822
        %v2866 = vsel %vm2843, %v2822, %v2824
        %v2867 = vsel %vm2843, %v2824, %v2826
        %v2868 = vsel %vm2843, %v2826, %v2828
        %v2869 = vsel %vm2843, %v2828, %v2830
        %v2870 = vsel %vm2843, %v2830, %v2832
        %v2871 = vsel %vm2843, %v2832, %v2834
        %v2872 = vsel %vm2843, %v2834, %v2836
        %v2873 = vsel %vm2843, %v2836, %v2838
        %v2874 = vsel %vm2843, %v2838, %v2840
        %v2875 = vsel %vm2843, %v2840, %v2842
        %v2908 = vadd.f32 %v2675, %v2844
        %v2909 = vadd.f32 %v2676, %v2845
        %v2910 = vadd.f32 %v2677, %v2846
        %v2911 = vadd.f32 %v2678, %v2847
        %v2912 = vadd.f32 %v2679, %v2848
        %v2913 = vadd.f32 %v2680, %v2849
        %v2914 = vadd.f32 %v2681, %v2850
        %v2915 = vadd.f32 %v2682, %v2851
        %v2916 = vadd.f32 %v2683, %v2852
        %v2917 = vadd.f32 %v2684, %v2853
        %v2918 = vadd.f32 %v2685, %v2854
        %v2919 = vadd.f32 %v2686, %v2855
        %v2920 = vadd.f32 %v2687, %v2856
        %v2921 = vadd.f32 %v2688, %v2857
        %v2922 = vadd.f32 %v2689, %v2858
        %v2923 = vadd.f32 %v2690, %v2859
        %v2924 = vadd.f32 %v2691, %v2860
        %v2925 = vadd.f32 %v2692, %v2861
        %v2926 = vadd.f32 %v2693, %v2862
        %v2927 = vadd.f32 %v2694, %v2863
        %v2928 = vadd.f32 %v2695, %v2864
        %v2929 = vadd.f32 %v2696, %v2865
        %v2930 = vadd.f32 %v2697, %v2866
        %v2931 = vadd.f32 %v2698, %v2867
        %v2932 = vadd.f32 %v2699, %v2868
        %v2933 = vadd.f32 %v2700, %v2869
        %v2934 = vadd.f32 %v2701, %v2870
        %v2935 = vadd.f32 %v2702, %v2871
        %v2936 = vadd.f32 %v2703, %v2872
        %v2937 = vadd.f32 %v2704, %v2873
        %v2938 = vadd.f32 %v2705, %v2874
        %v2939 = vadd.f32 %v2706, %v2875
        %2940 = vset.pattern.permute.xlu0 11
        %2941 = vperm.xlu0 %2940, %v440
        %v2942 = vpop.permute.xlu0 %2941
        %v2944 = vmul.f32 %v2942, %v444
        %v2945 = vmul.f32 %v2942, %v448
        %v2946 = vmul.f32 %v2942, %v452
        %v2947 = vmul.f32 %v2942, %v456
        %v2948 = vmul.f32 %v2942, %v460
        %v2949 = vmul.f32 %v2942, %v464
        %v2950 = vmul.f32 %v2942, %v468
        %v2951 = vmul.f32 %v2942, %v472
        %v2952 = vmul.f32 %v2942, %v476
        %v2953 = vmul.f32 %v2942, %v480
        %v2954 = vmul.f32 %v2942, %v484
        %v2955 = vmul.f32 %v2942, %v488
        %v2956 = vmul.f32 %v2942, %v492
        %v2957 = vmul.f32 %v2942, %v496
        %v2958 = vmul.f32 %v2942, %v500
        %v2959 = vmul.f32 %v2942, %v504
        %v2960 = vmul.f32 %v2942, %v508
        %v2961 = vmul.f32 %v2942, %v512
        %v2962 = vmul.f32 %v2942, %v516
        %v2963 = vmul.f32 %v2942, %v520
        %v2964 = vmul.f32 %v2942, %v524
        %v2965 = vmul.f32 %v2942, %v528
        %v2966 = vmul.f32 %v2942, %v532
        %v2967 = vmul.f32 %v2942, %v536
        %v2968 = vmul.f32 %v2942, %v540
        %v2969 = vmul.f32 %v2942, %v544
        %v2970 = vmul.f32 %v2942, %v548
        %v2971 = vmul.f32 %v2942, %v552
        %v2972 = vmul.f32 %v2942, %v556
        %v2973 = vmul.f32 %v2942, %v560
        %v2974 = vmul.f32 %v2942, %v564
        %v2975 = vmul.f32 %v2942, %v568
        %v2976 = vmul.f32 %v2942, %v609
        %3010 = vrot.lane.b32.xlu0 %v2944, 117
        %v3011 = vpop.permute.xlu0 %3010
        %3012 = vrot.lane.b32.xlu0 %v2945, 117
        %v3013 = vpop.permute.xlu0 %3012
        %3014 = vrot.lane.b32.xlu0 %v2946, 117
        %v3015 = vpop.permute.xlu0 %3014
        %3016 = vrot.lane.b32.xlu0 %v2947, 117
        %v3017 = vpop.permute.xlu0 %3016
        %3018 = vrot.lane.b32.xlu0 %v2948, 117
        %v3019 = vpop.permute.xlu0 %3018
        %3020 = vrot.lane.b32.xlu0 %v2949, 117
        %v3021 = vpop.permute.xlu0 %3020
        %3022 = vrot.lane.b32.xlu0 %v2950, 117
        %v3023 = vpop.permute.xlu0 %3022
        %3024 = vrot.lane.b32.xlu0 %v2951, 117
        %v3025 = vpop.permute.xlu0 %3024
        %3026 = vrot.lane.b32.xlu0 %v2952, 117
        %v3027 = vpop.permute.xlu0 %3026
        %3028 = vrot.lane.b32.xlu0 %v2953, 117
        %v3029 = vpop.permute.xlu0 %3028
        %3030 = vrot.lane.b32.xlu0 %v2954, 117
        %v3031 = vpop.permute.xlu0 %3030
        %3032 = vrot.lane.b32.xlu0 %v2955, 117
        %v3033 = vpop.permute.xlu0 %3032
        %3034 = vrot.lane.b32.xlu0 %v2956, 117
        %v3035 = vpop.permute.xlu0 %3034
        %3036 = vrot.lane.b32.xlu0 %v2957, 117
        %v3037 = vpop.permute.xlu0 %3036
        %3038 = vrot.lane.b32.xlu0 %v2958, 117
        %v3039 = vpop.permute.xlu0 %3038
        %3040 = vrot.lane.b32.xlu0 %v2959, 117
        %v3041 = vpop.permute.xlu0 %3040
        %3042 = vrot.lane.b32.xlu0 %v2960, 117
        %v3043 = vpop.permute.xlu0 %3042
        %3044 = vrot.lane.b32.xlu0 %v2961, 117
        %v3045 = vpop.permute.xlu0 %3044
        %3046 = vrot.lane.b32.xlu0 %v2962, 117
        %v3047 = vpop.permute.xlu0 %3046
        %3048 = vrot.lane.b32.xlu0 %v2963, 117
        %v3049 = vpop.permute.xlu0 %3048
        %3050 = vrot.lane.b32.xlu0 %v2964, 117
        %v3051 = vpop.permute.xlu0 %3050
        %3052 = vrot.lane.b32.xlu0 %v2965, 117
        %v3053 = vpop.permute.xlu0 %3052
        %3054 = vrot.lane.b32.xlu0 %v2966, 117
        %v3055 = vpop.permute.xlu0 %3054
        %3056 = vrot.lane.b32.xlu0 %v2967, 117
        %v3057 = vpop.permute.xlu0 %3056
        %3058 = vrot.lane.b32.xlu0 %v2968, 117
        %v3059 = vpop.permute.xlu0 %3058
        %3060 = vrot.lane.b32.xlu0 %v2969, 117
        %v3061 = vpop.permute.xlu0 %3060
        %3062 = vrot.lane.b32.xlu0 %v2970, 117
        %v3063 = vpop.permute.xlu0 %3062
        %3064 = vrot.lane.b32.xlu0 %v2971, 117
        %v3065 = vpop.permute.xlu0 %3064
        %3066 = vrot.lane.b32.xlu0 %v2972, 117
        %v3067 = vpop.permute.xlu0 %3066
        %3068 = vrot.lane.b32.xlu0 %v2973, 117
        %v3069 = vpop.permute.xlu0 %3068
        %3070 = vrot.lane.b32.xlu0 %v2974, 117
        %v3071 = vpop.permute.xlu0 %3070
        %3072 = vrot.lane.b32.xlu0 %v2975, 117
        %v3073 = vpop.permute.xlu0 %3072
        %3074 = vrot.lane.b32.xlu0 %v2976, 117
        %v3075 = vpop.permute.xlu0 %3074
        %vm3076 = vcmask 957440
        %v3077 = vsel %vm3076, %v3011, %v3013
        %v3078 = vsel %vm3076, %v3013, %v3015
        %v3079 = vsel %vm3076, %v3015, %v3017
        %v3080 = vsel %vm3076, %v3017, %v3019
        %v3081 = vsel %vm3076, %v3019, %v3021
        %v3082 = vsel %vm3076, %v3021, %v3023
        %v3083 = vsel %vm3076, %v3023, %v3025
        %v3084 = vsel %vm3076, %v3025, %v3027
        %v3085 = vsel %vm3076, %v3027, %v3029
        %v3086 = vsel %vm3076, %v3029, %v3031
        %v3087 = vsel %vm3076, %v3031, %v3033
        %v3088 = vsel %vm3076, %v3033, %v3035
        %v3089 = vsel %vm3076, %v3035, %v3037
        %v3090 = vsel %vm3076, %v3037, %v3039
        %v3091 = vsel %vm3076, %v3039, %v3041
        %v3092 = vsel %vm3076, %v3041, %v3043
        %v3093 = vsel %vm3076, %v3043, %v3045
        %v3094 = vsel %vm3076, %v3045, %v3047
        %v3095 = vsel %vm3076, %v3047, %v3049
        %v3096 = vsel %vm3076, %v3049, %v3051
        %v3097 = vsel %vm3076, %v3051, %v3053
        %v3098 = vsel %vm3076, %v3053, %v3055
        %v3099 = vsel %vm3076, %v3055, %v3057
        %v3100 = vsel %vm3076, %v3057, %v3059
        %v3101 = vsel %vm3076, %v3059, %v3061
        %v3102 = vsel %vm3076, %v3061, %v3063
        %v3103 = vsel %vm3076, %v3063, %v3065
        %v3104 = vsel %vm3076, %v3065, %v3067
        %v3105 = vsel %vm3076, %v3067, %v3069
        %v3106 = vsel %vm3076, %v3069, %v3071
        %v3107 = vsel %vm3076, %v3071, %v3073
        %v3108 = vsel %vm3076, %v3073, %v3075
        %v3141 = vadd.f32 %v2908, %v3077
        %v3142 = vadd.f32 %v2909, %v3078
        %v3143 = vadd.f32 %v2910, %v3079
        %v3144 = vadd.f32 %v2911, %v3080
        %v3145 = vadd.f32 %v2912, %v3081
        %v3146 = vadd.f32 %v2913, %v3082
        %v3147 = vadd.f32 %v2914, %v3083
        %v3148 = vadd.f32 %v2915, %v3084
        %v3149 = vadd.f32 %v2916, %v3085
        %v3150 = vadd.f32 %v2917, %v3086
        %v3151 = vadd.f32 %v2918, %v3087
        %v3152 = vadd.f32 %v2919, %v3088
        %v3153 = vadd.f32 %v2920, %v3089
        %v3154 = vadd.f32 %v2921, %v3090
        %v3155 = vadd.f32 %v2922, %v3091
        %v3156 = vadd.f32 %v2923, %v3092
        %v3157 = vadd.f32 %v2924, %v3093
        %v3158 = vadd.f32 %v2925, %v3094
        %v3159 = vadd.f32 %v2926, %v3095
        %v3160 = vadd.f32 %v2927, %v3096
        %v3161 = vadd.f32 %v2928, %v3097
        %v3162 = vadd.f32 %v2929, %v3098
        %v3163 = vadd.f32 %v2930, %v3099
        %v3164 = vadd.f32 %v2931, %v3100
        %v3165 = vadd.f32 %v2932, %v3101
        %v3166 = vadd.f32 %v2933, %v3102
        %v3167 = vadd.f32 %v2934, %v3103
        %v3168 = vadd.f32 %v2935, %v3104
        %v3169 = vadd.f32 %v2936, %v3105
        %v3170 = vadd.f32 %v2937, %v3106
        %v3171 = vadd.f32 %v2938, %v3107
        %v3172 = vadd.f32 %v2939, %v3108
        %3173 = vset.pattern.permute.xlu0 12
        %3174 = vperm.xlu0 %3173, %v440
        %v3175 = vpop.permute.xlu0 %3174
        %v3177 = vmul.f32 %v3175, %v444
        %v3178 = vmul.f32 %v3175, %v448
        %v3179 = vmul.f32 %v3175, %v452
        %v3180 = vmul.f32 %v3175, %v456
        %v3181 = vmul.f32 %v3175, %v460
        %v3182 = vmul.f32 %v3175, %v464
        %v3183 = vmul.f32 %v3175, %v468
        %v3184 = vmul.f32 %v3175, %v472
        %v3185 = vmul.f32 %v3175, %v476
        %v3186 = vmul.f32 %v3175, %v480
        %v3187 = vmul.f32 %v3175, %v484
        %v3188 = vmul.f32 %v3175, %v488
        %v3189 = vmul.f32 %v3175, %v492
        %v3190 = vmul.f32 %v3175, %v496
        %v3191 = vmul.f32 %v3175, %v500
        %v3192 = vmul.f32 %v3175, %v504
        %v3193 = vmul.f32 %v3175, %v508
        %v3194 = vmul.f32 %v3175, %v512
        %v3195 = vmul.f32 %v3175, %v516
        %v3196 = vmul.f32 %v3175, %v520
        %v3197 = vmul.f32 %v3175, %v524
        %v3198 = vmul.f32 %v3175, %v528
        %v3199 = vmul.f32 %v3175, %v532
        %v3200 = vmul.f32 %v3175, %v536
        %v3201 = vmul.f32 %v3175, %v540
        %v3202 = vmul.f32 %v3175, %v544
        %v3203 = vmul.f32 %v3175, %v548
        %v3204 = vmul.f32 %v3175, %v552
        %v3205 = vmul.f32 %v3175, %v556
        %v3206 = vmul.f32 %v3175, %v560
        %v3207 = vmul.f32 %v3175, %v564
        %v3208 = vmul.f32 %v3175, %v568
        %v3209 = vmul.f32 %v3175, %v609
        %3243 = vrot.lane.b32.xlu0 %v3177, 116
        %v3244 = vpop.permute.xlu0 %3243
        %3245 = vrot.lane.b32.xlu0 %v3178, 116
        %v3246 = vpop.permute.xlu0 %3245
        %3247 = vrot.lane.b32.xlu0 %v3179, 116
        %v3248 = vpop.permute.xlu0 %3247
        %3249 = vrot.lane.b32.xlu0 %v3180, 116
        %v3250 = vpop.permute.xlu0 %3249
        %3251 = vrot.lane.b32.xlu0 %v3181, 116
        %v3252 = vpop.permute.xlu0 %3251
        %3253 = vrot.lane.b32.xlu0 %v3182, 116
        %v3254 = vpop.permute.xlu0 %3253
        %3255 = vrot.lane.b32.xlu0 %v3183, 116
        %v3256 = vpop.permute.xlu0 %3255
        %3257 = vrot.lane.b32.xlu0 %v3184, 116
        %v3258 = vpop.permute.xlu0 %3257
        %3259 = vrot.lane.b32.xlu0 %v3185, 116
        %v3260 = vpop.permute.xlu0 %3259
        %3261 = vrot.lane.b32.xlu0 %v3186, 116
        %v3262 = vpop.permute.xlu0 %3261
        %3263 = vrot.lane.b32.xlu0 %v3187, 116
        %v3264 = vpop.permute.xlu0 %3263
        %3265 = vrot.lane.b32.xlu0 %v3188, 116
        %v3266 = vpop.permute.xlu0 %3265
        %3267 = vrot.lane.b32.xlu0 %v3189, 116
        %v3268 = vpop.permute.xlu0 %3267
        %3269 = vrot.lane.b32.xlu0 %v3190, 116
        %v3270 = vpop.permute.xlu0 %3269
        %3271 = vrot.lane.b32.xlu0 %v3191, 116
        %v3272 = vpop.permute.xlu0 %3271
        %3273 = vrot.lane.b32.xlu0 %v3192, 116
        %v3274 = vpop.permute.xlu0 %3273
        %3275 = vrot.lane.b32.xlu0 %v3193, 116
        %v3276 = vpop.permute.xlu0 %3275
        %3277 = vrot.lane.b32.xlu0 %v3194, 116
        %v3278 = vpop.permute.xlu0 %3277
        %3279 = vrot.lane.b32.xlu0 %v3195, 116
        %v3280 = vpop.permute.xlu0 %3279
        %3281 = vrot.lane.b32.xlu0 %v3196, 116
        %v3282 = vpop.permute.xlu0 %3281
        %3283 = vrot.lane.b32.xlu0 %v3197, 116
        %v3284 = vpop.permute.xlu0 %3283
        %3285 = vrot.lane.b32.xlu0 %v3198, 116
        %v3286 = vpop.permute.xlu0 %3285
        %3287 = vrot.lane.b32.xlu0 %v3199, 116
        %v3288 = vpop.permute.xlu0 %3287
        %3289 = vrot.lane.b32.xlu0 %v3200, 116
        %v3290 = vpop.permute.xlu0 %3289
        %3291 = vrot.lane.b32.xlu0 %v3201, 116
        %v3292 = vpop.permute.xlu0 %3291
        %3293 = vrot.lane.b32.xlu0 %v3202, 116
        %v3294 = vpop.permute.xlu0 %3293
        %3295 = vrot.lane.b32.xlu0 %v3203, 116
        %v3296 = vpop.permute.xlu0 %3295
        %3297 = vrot.lane.b32.xlu0 %v3204, 116
        %v3298 = vpop.permute.xlu0 %3297
        %3299 = vrot.lane.b32.xlu0 %v3205, 116
        %v3300 = vpop.permute.xlu0 %3299
        %3301 = vrot.lane.b32.xlu0 %v3206, 116
        %v3302 = vpop.permute.xlu0 %3301
        %3303 = vrot.lane.b32.xlu0 %v3207, 116
        %v3304 = vpop.permute.xlu0 %3303
        %3305 = vrot.lane.b32.xlu0 %v3208, 116
        %v3306 = vpop.permute.xlu0 %3305
        %3307 = vrot.lane.b32.xlu0 %v3209, 116
        %v3308 = vpop.permute.xlu0 %3307
        %vm3309 = vcmask 949248
        %v3310 = vsel %vm3309, %v3244, %v3246
        %v3311 = vsel %vm3309, %v3246, %v3248
        %v3312 = vsel %vm3309, %v3248, %v3250
        %v3313 = vsel %vm3309, %v3250, %v3252
        %v3314 = vsel %vm3309, %v3252, %v3254
        %v3315 = vsel %vm3309, %v3254, %v3256
        %v3316 = vsel %vm3309, %v3256, %v3258
        %v3317 = vsel %vm3309, %v3258, %v3260
        %v3318 = vsel %vm3309, %v3260, %v3262
        %v3319 = vsel %vm3309, %v3262, %v3264
        %v3320 = vsel %vm3309, %v3264, %v3266
        %v3321 = vsel %vm3309, %v3266, %v3268
        %v3322 = vsel %vm3309, %v3268, %v3270
        %v3323 = vsel %vm3309, %v3270, %v3272
        %v3324 = vsel %vm3309, %v3272, %v3274
        %v3325 = vsel %vm3309, %v3274, %v3276
        %v3326 = vsel %vm3309, %v3276, %v3278
        %v3327 = vsel %vm3309, %v3278, %v3280
        %v3328 = vsel %vm3309, %v3280, %v3282
        %v3329 = vsel %vm3309, %v3282, %v3284
        %v3330 = vsel %vm3309, %v3284, %v3286
        %v3331 = vsel %vm3309, %v3286, %v3288
        %v3332 = vsel %vm3309, %v3288, %v3290
        %v3333 = vsel %vm3309, %v3290, %v3292
        %v3334 = vsel %vm3309, %v3292, %v3294
        %v3335 = vsel %vm3309, %v3294, %v3296
        %v3336 = vsel %vm3309, %v3296, %v3298
        %v3337 = vsel %vm3309, %v3298, %v3300
        %v3338 = vsel %vm3309, %v3300, %v3302
        %v3339 = vsel %vm3309, %v3302, %v3304
        %v3340 = vsel %vm3309, %v3304, %v3306
        %v3341 = vsel %vm3309, %v3306, %v3308
        %v3374 = vadd.f32 %v3141, %v3310
        %v3375 = vadd.f32 %v3142, %v3311
        %v3376 = vadd.f32 %v3143, %v3312
        %v3377 = vadd.f32 %v3144, %v3313
        %v3378 = vadd.f32 %v3145, %v3314
        %v3379 = vadd.f32 %v3146, %v3315
        %v3380 = vadd.f32 %v3147, %v3316
        %v3381 = vadd.f32 %v3148, %v3317
        %v3382 = vadd.f32 %v3149, %v3318
        %v3383 = vadd.f32 %v3150, %v3319
        %v3384 = vadd.f32 %v3151, %v3320
        %v3385 = vadd.f32 %v3152, %v3321
        %v3386 = vadd.f32 %v3153, %v3322
        %v3387 = vadd.f32 %v3154, %v3323
        %v3388 = vadd.f32 %v3155, %v3324
        %v3389 = vadd.f32 %v3156, %v3325
        %v3390 = vadd.f32 %v3157, %v3326
        %v3391 = vadd.f32 %v3158, %v3327
        %v3392 = vadd.f32 %v3159, %v3328
        %v3393 = vadd.f32 %v3160, %v3329
        %v3394 = vadd.f32 %v3161, %v3330
        %v3395 = vadd.f32 %v3162, %v3331
        %v3396 = vadd.f32 %v3163, %v3332
        %v3397 = vadd.f32 %v3164, %v3333
        %v3398 = vadd.f32 %v3165, %v3334
        %v3399 = vadd.f32 %v3166, %v3335
        %v3400 = vadd.f32 %v3167, %v3336
        %v3401 = vadd.f32 %v3168, %v3337
        %v3402 = vadd.f32 %v3169, %v3338
        %v3403 = vadd.f32 %v3170, %v3339
        %v3404 = vadd.f32 %v3171, %v3340
        %v3405 = vadd.f32 %v3172, %v3341
        %3406 = vset.pattern.permute.xlu0 13
        %3407 = vperm.xlu0 %3406, %v440
        %v3408 = vpop.permute.xlu0 %3407
        %v3410 = vmul.f32 %v3408, %v444
        %v3411 = vmul.f32 %v3408, %v448
        %v3412 = vmul.f32 %v3408, %v452
        %v3413 = vmul.f32 %v3408, %v456
        %v3414 = vmul.f32 %v3408, %v460
        %v3415 = vmul.f32 %v3408, %v464
        %v3416 = vmul.f32 %v3408, %v468
        %v3417 = vmul.f32 %v3408, %v472
        %v3418 = vmul.f32 %v3408, %v476
        %v3419 = vmul.f32 %v3408, %v480
        %v3420 = vmul.f32 %v3408, %v484
        %v3421 = vmul.f32 %v3408, %v488
        %v3422 = vmul.f32 %v3408, %v492
        %v3423 = vmul.f32 %v3408, %v496
        %v3424 = vmul.f32 %v3408, %v500
        %v3425 = vmul.f32 %v3408, %v504
        %v3426 = vmul.f32 %v3408, %v508
        %v3427 = vmul.f32 %v3408, %v512
        %v3428 = vmul.f32 %v3408, %v516
        %v3429 = vmul.f32 %v3408, %v520
        %v3430 = vmul.f32 %v3408, %v524
        %v3431 = vmul.f32 %v3408, %v528
        %v3432 = vmul.f32 %v3408, %v532
        %v3433 = vmul.f32 %v3408, %v536
        %v3434 = vmul.f32 %v3408, %v540
        %v3435 = vmul.f32 %v3408, %v544
        %v3436 = vmul.f32 %v3408, %v548
        %v3437 = vmul.f32 %v3408, %v552
        %v3438 = vmul.f32 %v3408, %v556
        %v3439 = vmul.f32 %v3408, %v560
        %v3440 = vmul.f32 %v3408, %v564
        %v3441 = vmul.f32 %v3408, %v568
        %v3442 = vmul.f32 %v3408, %v609
        %3476 = vrot.lane.b32.xlu0 %v3410, 115
        %v3477 = vpop.permute.xlu0 %3476
        %3478 = vrot.lane.b32.xlu0 %v3411, 115
        %v3479 = vpop.permute.xlu0 %3478
        %3480 = vrot.lane.b32.xlu0 %v3412, 115
        %v3481 = vpop.permute.xlu0 %3480
        %3482 = vrot.lane.b32.xlu0 %v3413, 115
        %v3483 = vpop.permute.xlu0 %3482
        %3484 = vrot.lane.b32.xlu0 %v3414, 115
        %v3485 = vpop.permute.xlu0 %3484
        %3486 = vrot.lane.b32.xlu0 %v3415, 115
        %v3487 = vpop.permute.xlu0 %3486
        %3488 = vrot.lane.b32.xlu0 %v3416, 115
        %v3489 = vpop.permute.xlu0 %3488
        %3490 = vrot.lane.b32.xlu0 %v3417, 115
        %v3491 = vpop.permute.xlu0 %3490
        %3492 = vrot.lane.b32.xlu0 %v3418, 115
        %v3493 = vpop.permute.xlu0 %3492
        %3494 = vrot.lane.b32.xlu0 %v3419, 115
        %v3495 = vpop.permute.xlu0 %3494
        %3496 = vrot.lane.b32.xlu0 %v3420, 115
        %v3497 = vpop.permute.xlu0 %3496
        %3498 = vrot.lane.b32.xlu0 %v3421, 115
        %v3499 = vpop.permute.xlu0 %3498
        %3500 = vrot.lane.b32.xlu0 %v3422, 115
        %v3501 = vpop.permute.xlu0 %3500
        %3502 = vrot.lane.b32.xlu0 %v3423, 115
        %v3503 = vpop.permute.xlu0 %3502
        %3504 = vrot.lane.b32.xlu0 %v3424, 115
        %v3505 = vpop.permute.xlu0 %3504
        %3506 = vrot.lane.b32.xlu0 %v3425, 115
        %v3507 = vpop.permute.xlu0 %3506
        %3508 = vrot.lane.b32.xlu0 %v3426, 115
        %v3509 = vpop.permute.xlu0 %3508
        %3510 = vrot.lane.b32.xlu0 %v3427, 115
        %v3511 = vpop.permute.xlu0 %3510
        %3512 = vrot.lane.b32.xlu0 %v3428, 115
        %v3513 = vpop.permute.xlu0 %3512
        %3514 = vrot.lane.b32.xlu0 %v3429, 115
        %v3515 = vpop.permute.xlu0 %3514
        %3516 = vrot.lane.b32.xlu0 %v3430, 115
        %v3517 = vpop.permute.xlu0 %3516
        %3518 = vrot.lane.b32.xlu0 %v3431, 115
        %v3519 = vpop.permute.xlu0 %3518
        %3520 = vrot.lane.b32.xlu0 %v3432, 115
        %v3521 = vpop.permute.xlu0 %3520
        %3522 = vrot.lane.b32.xlu0 %v3433, 115
        %v3523 = vpop.permute.xlu0 %3522
        %3524 = vrot.lane.b32.xlu0 %v3434, 115
        %v3525 = vpop.permute.xlu0 %3524
        %3526 = vrot.lane.b32.xlu0 %v3435, 115
        %v3527 = vpop.permute.xlu0 %3526
        %3528 = vrot.lane.b32.xlu0 %v3436, 115
        %v3529 = vpop.permute.xlu0 %3528
        %3530 = vrot.lane.b32.xlu0 %v3437, 115
        %v3531 = vpop.permute.xlu0 %3530
        %3532 = vrot.lane.b32.xlu0 %v3438, 115
        %v3533 = vpop.permute.xlu0 %3532
        %3534 = vrot.lane.b32.xlu0 %v3439, 115
        %v3535 = vpop.permute.xlu0 %3534
        %3536 = vrot.lane.b32.xlu0 %v3440, 115
        %v3537 = vpop.permute.xlu0 %3536
        %3538 = vrot.lane.b32.xlu0 %v3441, 115
        %v3539 = vpop.permute.xlu0 %3538
        %3540 = vrot.lane.b32.xlu0 %v3442, 115
        %v3541 = vpop.permute.xlu0 %3540
        %vm3542 = vcmask 941056
        %v3543 = vsel %vm3542, %v3477, %v3479
        %v3544 = vsel %vm3542, %v3479, %v3481
        %v3545 = vsel %vm3542, %v3481, %v3483
        %v3546 = vsel %vm3542, %v3483, %v3485
        %v3547 = vsel %vm3542, %v3485, %v3487
        %v3548 = vsel %vm3542, %v3487, %v3489
        %v3549 = vsel %vm3542, %v3489, %v3491
        %v3550 = vsel %vm3542, %v3491, %v3493
        %v3551 = vsel %vm3542, %v3493, %v3495
        %v3552 = vsel %vm3542, %v3495, %v3497
        %v3553 = vsel %vm3542, %v3497, %v3499
        %v3554 = vsel %vm3542, %v3499, %v3501
        %v3555 = vsel %vm3542, %v3501, %v3503
        %v3556 = vsel %vm3542, %v3503, %v3505
        %v3557 = vsel %vm3542, %v3505, %v3507
        %v3558 = vsel %vm3542, %v3507, %v3509
        %v3559 = vsel %vm3542, %v3509, %v3511
        %v3560 = vsel %vm3542, %v3511, %v3513
        %v3561 = vsel %vm3542, %v3513, %v3515
        %v3562 = vsel %vm3542, %v3515, %v3517
        %v3563 = vsel %vm3542, %v3517, %v3519
        %v3564 = vsel %vm3542, %v3519, %v3521
        %v3565 = vsel %vm3542, %v3521, %v3523
        %v3566 = vsel %vm3542, %v3523, %v3525
        %v3567 = vsel %vm3542, %v3525, %v3527
        %v3568 = vsel %vm3542, %v3527, %v3529
        %v3569 = vsel %vm3542, %v3529, %v3531
        %v3570 = vsel %vm3542, %v3531, %v3533
        %v3571 = vsel %vm3542, %v3533, %v3535
        %v3572 = vsel %vm3542, %v3535, %v3537
        %v3573 = vsel %vm3542, %v3537, %v3539
        %v3574 = vsel %vm3542, %v3539, %v3541
        %v3607 = vadd.f32 %v3374, %v3543
        %v3608 = vadd.f32 %v3375, %v3544
        %v3609 = vadd.f32 %v3376, %v3545
        %v3610 = vadd.f32 %v3377, %v3546
        %v3611 = vadd.f32 %v3378, %v3547
        %v3612 = vadd.f32 %v3379, %v3548
        %v3613 = vadd.f32 %v3380, %v3549
        %v3614 = vadd.f32 %v3381, %v3550
        %v3615 = vadd.f32 %v3382, %v3551
        %v3616 = vadd.f32 %v3383, %v3552
        %v3617 = vadd.f32 %v3384, %v3553
        %v3618 = vadd.f32 %v3385, %v3554
        %v3619 = vadd.f32 %v3386, %v3555
        %v3620 = vadd.f32 %v3387, %v3556
        %v3621 = vadd.f32 %v3388, %v3557
        %v3622 = vadd.f32 %v3389, %v3558
        %v3623 = vadd.f32 %v3390, %v3559
        %v3624 = vadd.f32 %v3391, %v3560
        %v3625 = vadd.f32 %v3392, %v3561
        %v3626 = vadd.f32 %v3393, %v3562
        %v3627 = vadd.f32 %v3394, %v3563
        %v3628 = vadd.f32 %v3395, %v3564
        %v3629 = vadd.f32 %v3396, %v3565
        %v3630 = vadd.f32 %v3397, %v3566
        %v3631 = vadd.f32 %v3398, %v3567
        %v3632 = vadd.f32 %v3399, %v3568
        %v3633 = vadd.f32 %v3400, %v3569
        %v3634 = vadd.f32 %v3401, %v3570
        %v3635 = vadd.f32 %v3402, %v3571
        %v3636 = vadd.f32 %v3403, %v3572
        %v3637 = vadd.f32 %v3404, %v3573
        %v3638 = vadd.f32 %v3405, %v3574
        %3639 = vset.pattern.permute.xlu0 14
        %3640 = vperm.xlu0 %3639, %v440
        %v3641 = vpop.permute.xlu0 %3640
        %v3643 = vmul.f32 %v3641, %v444
        %v3644 = vmul.f32 %v3641, %v448
        %v3645 = vmul.f32 %v3641, %v452
        %v3646 = vmul.f32 %v3641, %v456
        %v3647 = vmul.f32 %v3641, %v460
        %v3648 = vmul.f32 %v3641, %v464
        %v3649 = vmul.f32 %v3641, %v468
        %v3650 = vmul.f32 %v3641, %v472
        %v3651 = vmul.f32 %v3641, %v476
        %v3652 = vmul.f32 %v3641, %v480
        %v3653 = vmul.f32 %v3641, %v484
        %v3654 = vmul.f32 %v3641, %v488
        %v3655 = vmul.f32 %v3641, %v492
        %v3656 = vmul.f32 %v3641, %v496
        %v3657 = vmul.f32 %v3641, %v500
        %v3658 = vmul.f32 %v3641, %v504
        %v3659 = vmul.f32 %v3641, %v508
        %v3660 = vmul.f32 %v3641, %v512
        %v3661 = vmul.f32 %v3641, %v516
        %v3662 = vmul.f32 %v3641, %v520
        %v3663 = vmul.f32 %v3641, %v524
        %v3664 = vmul.f32 %v3641, %v528
        %v3665 = vmul.f32 %v3641, %v532
        %v3666 = vmul.f32 %v3641, %v536
        %v3667 = vmul.f32 %v3641, %v540
        %v3668 = vmul.f32 %v3641, %v544
        %v3669 = vmul.f32 %v3641, %v548
        %v3670 = vmul.f32 %v3641, %v552
        %v3671 = vmul.f32 %v3641, %v556
        %v3672 = vmul.f32 %v3641, %v560
        %v3673 = vmul.f32 %v3641, %v564
        %v3674 = vmul.f32 %v3641, %v568
        %v3675 = vmul.f32 %v3641, %v609
        %3709 = vrot.lane.b32.xlu0 %v3643, 114
        %v3710 = vpop.permute.xlu0 %3709
        %3711 = vrot.lane.b32.xlu0 %v3644, 114
        %v3712 = vpop.permute.xlu0 %3711
        %3713 = vrot.lane.b32.xlu0 %v3645, 114
        %v3714 = vpop.permute.xlu0 %3713
        %3715 = vrot.lane.b32.xlu0 %v3646, 114
        %v3716 = vpop.permute.xlu0 %3715
        %3717 = vrot.lane.b32.xlu0 %v3647, 114
        %v3718 = vpop.permute.xlu0 %3717
        %3719 = vrot.lane.b32.xlu0 %v3648, 114
        %v3720 = vpop.permute.xlu0 %3719
        %3721 = vrot.lane.b32.xlu0 %v3649, 114
        %v3722 = vpop.permute.xlu0 %3721
        %3723 = vrot.lane.b32.xlu0 %v3650, 114
        %v3724 = vpop.permute.xlu0 %3723
        %3725 = vrot.lane.b32.xlu0 %v3651, 114
        %v3726 = vpop.permute.xlu0 %3725
        %3727 = vrot.lane.b32.xlu0 %v3652, 114
        %v3728 = vpop.permute.xlu0 %3727
        %3729 = vrot.lane.b32.xlu0 %v3653, 114
        %v3730 = vpop.permute.xlu0 %3729
        %3731 = vrot.lane.b32.xlu0 %v3654, 114
        %v3732 = vpop.permute.xlu0 %3731
        %3733 = vrot.lane.b32.xlu0 %v3655, 114
        %v3734 = vpop.permute.xlu0 %3733
        %3735 = vrot.lane.b32.xlu0 %v3656, 114
        %v3736 = vpop.permute.xlu0 %3735
        %3737 = vrot.lane.b32.xlu0 %v3657, 114
        %v3738 = vpop.permute.xlu0 %3737
        %3739 = vrot.lane.b32.xlu0 %v3658, 114
        %v3740 = vpop.permute.xlu0 %3739
        %3741 = vrot.lane.b32.xlu0 %v3659, 114
        %v3742 = vpop.permute.xlu0 %3741
        %3743 = vrot.lane.b32.xlu0 %v3660, 114
        %v3744 = vpop.permute.xlu0 %3743
        %3745 = vrot.lane.b32.xlu0 %v3661, 114
        %v3746 = vpop.permute.xlu0 %3745
        %3747 = vrot.lane.b32.xlu0 %v3662, 114
        %v3748 = vpop.permute.xlu0 %3747
        %3749 = vrot.lane.b32.xlu0 %v3663, 114
        %v3750 = vpop.permute.xlu0 %3749
        %3751 = vrot.lane.b32.xlu0 %v3664, 114
        %v3752 = vpop.permute.xlu0 %3751
        %3753 = vrot.lane.b32.xlu0 %v3665, 114
        %v3754 = vpop.permute.xlu0 %3753
        %3755 = vrot.lane.b32.xlu0 %v3666, 114
        %v3756 = vpop.permute.xlu0 %3755
        %3757 = vrot.lane.b32.xlu0 %v3667, 114
        %v3758 = vpop.permute.xlu0 %3757
        %3759 = vrot.lane.b32.xlu0 %v3668, 114
        %v3760 = vpop.permute.xlu0 %3759
        %3761 = vrot.lane.b32.xlu0 %v3669, 114
        %v3762 = vpop.permute.xlu0 %3761
        %3763 = vrot.lane.b32.xlu0 %v3670, 114
        %v3764 = vpop.permute.xlu0 %3763
        %3765 = vrot.lane.b32.xlu0 %v3671, 114
        %v3766 = vpop.permute.xlu0 %3765
        %3767 = vrot.lane.b32.xlu0 %v3672, 114
        %v3768 = vpop.permute.xlu0 %3767
        %3769 = vrot.lane.b32.xlu0 %v3673, 114
        %v3770 = vpop.permute.xlu0 %3769
        %3771 = vrot.lane.b32.xlu0 %v3674, 114
        %v3772 = vpop.permute.xlu0 %3771
        %3773 = vrot.lane.b32.xlu0 %v3675, 114
        %v3774 = vpop.permute.xlu0 %3773
        %vm3775 = vcmask 932864
        %v3776 = vsel %vm3775, %v3710, %v3712
        %v3777 = vsel %vm3775, %v3712, %v3714
        %v3778 = vsel %vm3775, %v3714, %v3716
        %v3779 = vsel %vm3775, %v3716, %v3718
        %v3780 = vsel %vm3775, %v3718, %v3720
        %v3781 = vsel %vm3775, %v3720, %v3722
        %v3782 = vsel %vm3775, %v3722, %v3724
        %v3783 = vsel %vm3775, %v3724, %v3726
        %v3784 = vsel %vm3775, %v3726, %v3728
        %v3785 = vsel %vm3775, %v3728, %v3730
        %v3786 = vsel %vm3775, %v3730, %v3732
        %v3787 = vsel %vm3775, %v3732, %v3734
        %v3788 = vsel %vm3775, %v3734, %v3736
        %v3789 = vsel %vm3775, %v3736, %v3738
        %v3790 = vsel %vm3775, %v3738, %v3740
        %v3791 = vsel %vm3775, %v3740, %v3742
        %v3792 = vsel %vm3775, %v3742, %v3744
        %v3793 = vsel %vm3775, %v3744, %v3746
        %v3794 = vsel %vm3775, %v3746, %v3748
        %v3795 = vsel %vm3775, %v3748, %v3750
        %v3796 = vsel %vm3775, %v3750, %v3752
        %v3797 = vsel %vm3775, %v3752, %v3754
        %v3798 = vsel %vm3775, %v3754, %v3756
        %v3799 = vsel %vm3775, %v3756, %v3758
        %v3800 = vsel %vm3775, %v3758, %v3760
        %v3801 = vsel %vm3775, %v3760, %v3762
        %v3802 = vsel %vm3775, %v3762, %v3764
        %v3803 = vsel %vm3775, %v3764, %v3766
        %v3804 = vsel %vm3775, %v3766, %v3768
        %v3805 = vsel %vm3775, %v3768, %v3770
        %v3806 = vsel %vm3775, %v3770, %v3772
        %v3807 = vsel %vm3775, %v3772, %v3774
        %v3840 = vadd.f32 %v3607, %v3776
        %v3841 = vadd.f32 %v3608, %v3777
        %v3842 = vadd.f32 %v3609, %v3778
        %v3843 = vadd.f32 %v3610, %v3779
        %v3844 = vadd.f32 %v3611, %v3780
        %v3845 = vadd.f32 %v3612, %v3781
        %v3846 = vadd.f32 %v3613, %v3782
        %v3847 = vadd.f32 %v3614, %v3783
        %v3848 = vadd.f32 %v3615, %v3784
        %v3849 = vadd.f32 %v3616, %v3785
        %v3850 = vadd.f32 %v3617, %v3786
        %v3851 = vadd.f32 %v3618, %v3787
        %v3852 = vadd.f32 %v3619, %v3788
        %v3853 = vadd.f32 %v3620, %v3789
        %v3854 = vadd.f32 %v3621, %v3790
        %v3855 = vadd.f32 %v3622, %v3791
        %v3856 = vadd.f32 %v3623, %v3792
        %v3857 = vadd.f32 %v3624, %v3793
        %v3858 = vadd.f32 %v3625, %v3794
        %v3859 = vadd.f32 %v3626, %v3795
        %v3860 = vadd.f32 %v3627, %v3796
        %v3861 = vadd.f32 %v3628, %v3797
        %v3862 = vadd.f32 %v3629, %v3798
        %v3863 = vadd.f32 %v3630, %v3799
        %v3864 = vadd.f32 %v3631, %v3800
        %v3865 = vadd.f32 %v3632, %v3801
        %v3866 = vadd.f32 %v3633, %v3802
        %v3867 = vadd.f32 %v3634, %v3803
        %v3868 = vadd.f32 %v3635, %v3804
        %v3869 = vadd.f32 %v3636, %v3805
        %v3870 = vadd.f32 %v3637, %v3806
        %v3871 = vadd.f32 %v3638, %v3807
        %3872 = vset.pattern.permute.xlu0 15
        %3873 = vperm.xlu0 %3872, %v440
        %v3874 = vpop.permute.xlu0 %3873
        %v3876 = vmul.f32 %v3874, %v444
        %v3877 = vmul.f32 %v3874, %v448
        %v3878 = vmul.f32 %v3874, %v452
        %v3879 = vmul.f32 %v3874, %v456
        %v3880 = vmul.f32 %v3874, %v460
        %v3881 = vmul.f32 %v3874, %v464
        %v3882 = vmul.f32 %v3874, %v468
        %v3883 = vmul.f32 %v3874, %v472
        %v3884 = vmul.f32 %v3874, %v476
        %v3885 = vmul.f32 %v3874, %v480
        %v3886 = vmul.f32 %v3874, %v484
        %v3887 = vmul.f32 %v3874, %v488
        %v3888 = vmul.f32 %v3874, %v492
        %v3889 = vmul.f32 %v3874, %v496
        %v3890 = vmul.f32 %v3874, %v500
        %v3891 = vmul.f32 %v3874, %v504
        %v3892 = vmul.f32 %v3874, %v508
        %v3893 = vmul.f32 %v3874, %v512
        %v3894 = vmul.f32 %v3874, %v516
        %v3895 = vmul.f32 %v3874, %v520
        %v3896 = vmul.f32 %v3874, %v524
        %v3897 = vmul.f32 %v3874, %v528
        %v3898 = vmul.f32 %v3874, %v532
        %v3899 = vmul.f32 %v3874, %v536
        %v3900 = vmul.f32 %v3874, %v540
        %v3901 = vmul.f32 %v3874, %v544
        %v3902 = vmul.f32 %v3874, %v548
        %v3903 = vmul.f32 %v3874, %v552
        %v3904 = vmul.f32 %v3874, %v556
        %v3905 = vmul.f32 %v3874, %v560
        %v3906 = vmul.f32 %v3874, %v564
        %v3907 = vmul.f32 %v3874, %v568
        %v3908 = vmul.f32 %v3874, %v609
        %3942 = vrot.lane.b32.xlu0 %v3876, 113
        %v3943 = vpop.permute.xlu0 %3942
        %3944 = vrot.lane.b32.xlu0 %v3877, 113
        %v3945 = vpop.permute.xlu0 %3944
        %3946 = vrot.lane.b32.xlu0 %v3878, 113
        %v3947 = vpop.permute.xlu0 %3946
        %3948 = vrot.lane.b32.xlu0 %v3879, 113
        %v3949 = vpop.permute.xlu0 %3948
        %3950 = vrot.lane.b32.xlu0 %v3880, 113
        %v3951 = vpop.permute.xlu0 %3950
        %3952 = vrot.lane.b32.xlu0 %v3881, 113
        %v3953 = vpop.permute.xlu0 %3952
        %3954 = vrot.lane.b32.xlu0 %v3882, 113
        %v3955 = vpop.permute.xlu0 %3954
        %3956 = vrot.lane.b32.xlu0 %v3883, 113
        %v3957 = vpop.permute.xlu0 %3956
        %3958 = vrot.lane.b32.xlu0 %v3884, 113
        %v3959 = vpop.permute.xlu0 %3958
        %3960 = vrot.lane.b32.xlu0 %v3885, 113
        %v3961 = vpop.permute.xlu0 %3960
        %3962 = vrot.lane.b32.xlu0 %v3886, 113
        %v3963 = vpop.permute.xlu0 %3962
        %3964 = vrot.lane.b32.xlu0 %v3887, 113
        %v3965 = vpop.permute.xlu0 %3964
        %3966 = vrot.lane.b32.xlu0 %v3888, 113
        %v3967 = vpop.permute.xlu0 %3966
        %3968 = vrot.lane.b32.xlu0 %v3889, 113
        %v3969 = vpop.permute.xlu0 %3968
        %3970 = vrot.lane.b32.xlu0 %v3890, 113
        %v3971 = vpop.permute.xlu0 %3970
        %3972 = vrot.lane.b32.xlu0 %v3891, 113
        %v3973 = vpop.permute.xlu0 %3972
        %3974 = vrot.lane.b32.xlu0 %v3892, 113
        %v3975 = vpop.permute.xlu0 %3974
        %3976 = vrot.lane.b32.xlu0 %v3893, 113
        %v3977 = vpop.permute.xlu0 %3976
        %3978 = vrot.lane.b32.xlu0 %v3894, 113
        %v3979 = vpop.permute.xlu0 %3978
        %3980 = vrot.lane.b32.xlu0 %v3895, 113
        %v3981 = vpop.permute.xlu0 %3980
        %3982 = vrot.lane.b32.xlu0 %v3896, 113
        %v3983 = vpop.permute.xlu0 %3982
        %3984 = vrot.lane.b32.xlu0 %v3897, 113
        %v3985 = vpop.permute.xlu0 %3984
        %3986 = vrot.lane.b32.xlu0 %v3898, 113
        %v3987 = vpop.permute.xlu0 %3986
        %3988 = vrot.lane.b32.xlu0 %v3899, 113
        %v3989 = vpop.permute.xlu0 %3988
        %3990 = vrot.lane.b32.xlu0 %v3900, 113
        %v3991 = vpop.permute.xlu0 %3990
        %3992 = vrot.lane.b32.xlu0 %v3901, 113
        %v3993 = vpop.permute.xlu0 %3992
        %3994 = vrot.lane.b32.xlu0 %v3902, 113
        %v3995 = vpop.permute.xlu0 %3994
        %3996 = vrot.lane.b32.xlu0 %v3903, 113
        %v3997 = vpop.permute.xlu0 %3996
        %3998 = vrot.lane.b32.xlu0 %v3904, 113
        %v3999 = vpop.permute.xlu0 %3998
        %4000 = vrot.lane.b32.xlu0 %v3905, 113
        %v4001 = vpop.permute.xlu0 %4000
        %4002 = vrot.lane.b32.xlu0 %v3906, 113
        %v4003 = vpop.permute.xlu0 %4002
        %4004 = vrot.lane.b32.xlu0 %v3907, 113
        %v4005 = vpop.permute.xlu0 %4004
        %4006 = vrot.lane.b32.xlu0 %v3908, 113
        %v4007 = vpop.permute.xlu0 %4006
        %vm4008 = vcmask 924672
        %v4009 = vsel %vm4008, %v3943, %v3945
        %v4010 = vsel %vm4008, %v3945, %v3947
        %v4011 = vsel %vm4008, %v3947, %v3949
        %v4012 = vsel %vm4008, %v3949, %v3951
        %v4013 = vsel %vm4008, %v3951, %v3953
        %v4014 = vsel %vm4008, %v3953, %v3955
        %v4015 = vsel %vm4008, %v3955, %v3957
        %v4016 = vsel %vm4008, %v3957, %v3959
        %v4017 = vsel %vm4008, %v3959, %v3961
        %v4018 = vsel %vm4008, %v3961, %v3963
        %v4019 = vsel %vm4008, %v3963, %v3965
        %v4020 = vsel %vm4008, %v3965, %v3967
        %v4021 = vsel %vm4008, %v3967, %v3969
        %v4022 = vsel %vm4008, %v3969, %v3971
        %v4023 = vsel %vm4008, %v3971, %v3973
        %v4024 = vsel %vm4008, %v3973, %v3975
        %v4025 = vsel %vm4008, %v3975, %v3977
        %v4026 = vsel %vm4008, %v3977, %v3979
        %v4027 = vsel %vm4008, %v3979, %v3981
        %v4028 = vsel %vm4008, %v3981, %v3983
        %v4029 = vsel %vm4008, %v3983, %v3985
        %v4030 = vsel %vm4008, %v3985, %v3987
        %v4031 = vsel %vm4008, %v3987, %v3989
        %v4032 = vsel %vm4008, %v3989, %v3991
        %v4033 = vsel %vm4008, %v3991, %v3993
        %v4034 = vsel %vm4008, %v3993, %v3995
        %v4035 = vsel %vm4008, %v3995, %v3997
        %v4036 = vsel %vm4008, %v3997, %v3999
        %v4037 = vsel %vm4008, %v3999, %v4001
        %v4038 = vsel %vm4008, %v4001, %v4003
        %v4039 = vsel %vm4008, %v4003, %v4005
        %v4040 = vsel %vm4008, %v4005, %v4007
        %v4073 = vadd.f32 %v3840, %v4009
        %v4074 = vadd.f32 %v3841, %v4010
        %v4075 = vadd.f32 %v3842, %v4011
        %v4076 = vadd.f32 %v3843, %v4012
        %v4077 = vadd.f32 %v3844, %v4013
        %v4078 = vadd.f32 %v3845, %v4014
        %v4079 = vadd.f32 %v3846, %v4015
        %v4080 = vadd.f32 %v3847, %v4016
        %v4081 = vadd.f32 %v3848, %v4017
        %v4082 = vadd.f32 %v3849, %v4018
        %v4083 = vadd.f32 %v3850, %v4019
        %v4084 = vadd.f32 %v3851, %v4020
        %v4085 = vadd.f32 %v3852, %v4021
        %v4086 = vadd.f32 %v3853, %v4022
        %v4087 = vadd.f32 %v3854, %v4023
        %v4088 = vadd.f32 %v3855, %v4024
        %v4089 = vadd.f32 %v3856, %v4025
        %v4090 = vadd.f32 %v3857, %v4026
        %v4091 = vadd.f32 %v3858, %v4027
        %v4092 = vadd.f32 %v3859, %v4028
        %v4093 = vadd.f32 %v3860, %v4029
        %v4094 = vadd.f32 %v3861, %v4030
        %v4095 = vadd.f32 %v3862, %v4031
        %v4096 = vadd.f32 %v3863, %v4032
        %v4097 = vadd.f32 %v3864, %v4033
        %v4098 = vadd.f32 %v3865, %v4034
        %v4099 = vadd.f32 %v3866, %v4035
        %v4100 = vadd.f32 %v3867, %v4036
        %v4101 = vadd.f32 %v3868, %v4037
        %v4102 = vadd.f32 %v3869, %v4038
        %v4103 = vadd.f32 %v3870, %v4039
        %v4104 = vadd.f32 %v3871, %v4040
        %4105 = vset.pattern.permute.xlu0 16
        %4106 = vperm.xlu0 %4105, %v440
        %v4107 = vpop.permute.xlu0 %4106
        %v4109 = vmul.f32 %v4107, %v444
        %v4110 = vmul.f32 %v4107, %v448
        %v4111 = vmul.f32 %v4107, %v452
        %v4112 = vmul.f32 %v4107, %v456
        %v4113 = vmul.f32 %v4107, %v460
        %v4114 = vmul.f32 %v4107, %v464
        %v4115 = vmul.f32 %v4107, %v468
        %v4116 = vmul.f32 %v4107, %v472
        %v4117 = vmul.f32 %v4107, %v476
        %v4118 = vmul.f32 %v4107, %v480
        %v4119 = vmul.f32 %v4107, %v484
        %v4120 = vmul.f32 %v4107, %v488
        %v4121 = vmul.f32 %v4107, %v492
        %v4122 = vmul.f32 %v4107, %v496
        %v4123 = vmul.f32 %v4107, %v500
        %v4124 = vmul.f32 %v4107, %v504
        %v4125 = vmul.f32 %v4107, %v508
        %v4126 = vmul.f32 %v4107, %v512
        %v4127 = vmul.f32 %v4107, %v516
        %v4128 = vmul.f32 %v4107, %v520
        %v4129 = vmul.f32 %v4107, %v524
        %v4130 = vmul.f32 %v4107, %v528
        %v4131 = vmul.f32 %v4107, %v532
        %v4132 = vmul.f32 %v4107, %v536
        %v4133 = vmul.f32 %v4107, %v540
        %v4134 = vmul.f32 %v4107, %v544
        %v4135 = vmul.f32 %v4107, %v548
        %v4136 = vmul.f32 %v4107, %v552
        %v4137 = vmul.f32 %v4107, %v556
        %v4138 = vmul.f32 %v4107, %v560
        %v4139 = vmul.f32 %v4107, %v564
        %v4140 = vmul.f32 %v4107, %v568
        %v4141 = vmul.f32 %v4107, %v609
        %4175 = vrot.lane.b32.xlu0 %v4109, 112
        %v4176 = vpop.permute.xlu0 %4175
        %4177 = vrot.lane.b32.xlu0 %v4110, 112
        %v4178 = vpop.permute.xlu0 %4177
        %4179 = vrot.lane.b32.xlu0 %v4111, 112
        %v4180 = vpop.permute.xlu0 %4179
        %4181 = vrot.lane.b32.xlu0 %v4112, 112
        %v4182 = vpop.permute.xlu0 %4181
        %4183 = vrot.lane.b32.xlu0 %v4113, 112
        %v4184 = vpop.permute.xlu0 %4183
        %4185 = vrot.lane.b32.xlu0 %v4114, 112
        %v4186 = vpop.permute.xlu0 %4185
        %4187 = vrot.lane.b32.xlu0 %v4115, 112
        %v4188 = vpop.permute.xlu0 %4187
        %4189 = vrot.lane.b32.xlu0 %v4116, 112
        %v4190 = vpop.permute.xlu0 %4189
        %4191 = vrot.lane.b32.xlu0 %v4117, 112
        %v4192 = vpop.permute.xlu0 %4191
        %4193 = vrot.lane.b32.xlu0 %v4118, 112
        %v4194 = vpop.permute.xlu0 %4193
        %4195 = vrot.lane.b32.xlu0 %v4119, 112
        %v4196 = vpop.permute.xlu0 %4195
        %4197 = vrot.lane.b32.xlu0 %v4120, 112
        %v4198 = vpop.permute.xlu0 %4197
        %4199 = vrot.lane.b32.xlu0 %v4121, 112
        %v4200 = vpop.permute.xlu0 %4199
        %4201 = vrot.lane.b32.xlu0 %v4122, 112
        %v4202 = vpop.permute.xlu0 %4201
        %4203 = vrot.lane.b32.xlu0 %v4123, 112
        %v4204 = vpop.permute.xlu0 %4203
        %4205 = vrot.lane.b32.xlu0 %v4124, 112
        %v4206 = vpop.permute.xlu0 %4205
        %4207 = vrot.lane.b32.xlu0 %v4125, 112
        %v4208 = vpop.permute.xlu0 %4207
        %4209 = vrot.lane.b32.xlu0 %v4126, 112
        %v4210 = vpop.permute.xlu0 %4209
        %4211 = vrot.lane.b32.xlu0 %v4127, 112
        %v4212 = vpop.permute.xlu0 %4211
        %4213 = vrot.lane.b32.xlu0 %v4128, 112
        %v4214 = vpop.permute.xlu0 %4213
        %4215 = vrot.lane.b32.xlu0 %v4129, 112
        %v4216 = vpop.permute.xlu0 %4215
        %4217 = vrot.lane.b32.xlu0 %v4130, 112
        %v4218 = vpop.permute.xlu0 %4217
        %4219 = vrot.lane.b32.xlu0 %v4131, 112
        %v4220 = vpop.permute.xlu0 %4219
        %4221 = vrot.lane.b32.xlu0 %v4132, 112
        %v4222 = vpop.permute.xlu0 %4221
        %4223 = vrot.lane.b32.xlu0 %v4133, 112
        %v4224 = vpop.permute.xlu0 %4223
        %4225 = vrot.lane.b32.xlu0 %v4134, 112
        %v4226 = vpop.permute.xlu0 %4225
        %4227 = vrot.lane.b32.xlu0 %v4135, 112
        %v4228 = vpop.permute.xlu0 %4227
        %4229 = vrot.lane.b32.xlu0 %v4136, 112
        %v4230 = vpop.permute.xlu0 %4229
        %4231 = vrot.lane.b32.xlu0 %v4137, 112
        %v4232 = vpop.permute.xlu0 %4231
        %4233 = vrot.lane.b32.xlu0 %v4138, 112
        %v4234 = vpop.permute.xlu0 %4233
        %4235 = vrot.lane.b32.xlu0 %v4139, 112
        %v4236 = vpop.permute.xlu0 %4235
        %4237 = vrot.lane.b32.xlu0 %v4140, 112
        %v4238 = vpop.permute.xlu0 %4237
        %4239 = vrot.lane.b32.xlu0 %v4141, 112
        %v4240 = vpop.permute.xlu0 %4239
        %vm4241 = vcmask 916480
        %v4242 = vsel %vm4241, %v4176, %v4178
        %v4243 = vsel %vm4241, %v4178, %v4180
        %v4244 = vsel %vm4241, %v4180, %v4182
        %v4245 = vsel %vm4241, %v4182, %v4184
        %v4246 = vsel %vm4241, %v4184, %v4186
        %v4247 = vsel %vm4241, %v4186, %v4188
        %v4248 = vsel %vm4241, %v4188, %v4190
        %v4249 = vsel %vm4241, %v4190, %v4192
        %v4250 = vsel %vm4241, %v4192, %v4194
        %v4251 = vsel %vm4241, %v4194, %v4196
        %v4252 = vsel %vm4241, %v4196, %v4198
        %v4253 = vsel %vm4241, %v4198, %v4200
        %v4254 = vsel %vm4241, %v4200, %v4202
        %v4255 = vsel %vm4241, %v4202, %v4204
        %v4256 = vsel %vm4241, %v4204, %v4206
        %v4257 = vsel %vm4241, %v4206, %v4208
        %v4258 = vsel %vm4241, %v4208, %v4210
        %v4259 = vsel %vm4241, %v4210, %v4212
        %v4260 = vsel %vm4241, %v4212, %v4214
        %v4261 = vsel %vm4241, %v4214, %v4216
        %v4262 = vsel %vm4241, %v4216, %v4218
        %v4263 = vsel %vm4241, %v4218, %v4220
        %v4264 = vsel %vm4241, %v4220, %v4222
        %v4265 = vsel %vm4241, %v4222, %v4224
        %v4266 = vsel %vm4241, %v4224, %v4226
        %v4267 = vsel %vm4241, %v4226, %v4228
        %v4268 = vsel %vm4241, %v4228, %v4230
        %v4269 = vsel %vm4241, %v4230, %v4232
        %v4270 = vsel %vm4241, %v4232, %v4234
        %v4271 = vsel %vm4241, %v4234, %v4236
        %v4272 = vsel %vm4241, %v4236, %v4238
        %v4273 = vsel %vm4241, %v4238, %v4240
        %v4306 = vadd.f32 %v4073, %v4242
        %v4307 = vadd.f32 %v4074, %v4243
        %v4308 = vadd.f32 %v4075, %v4244
        %v4309 = vadd.f32 %v4076, %v4245
        %v4310 = vadd.f32 %v4077, %v4246
        %v4311 = vadd.f32 %v4078, %v4247
        %v4312 = vadd.f32 %v4079, %v4248
        %v4313 = vadd.f32 %v4080, %v4249
        %v4314 = vadd.f32 %v4081, %v4250
        %v4315 = vadd.f32 %v4082, %v4251
        %v4316 = vadd.f32 %v4083, %v4252
        %v4317 = vadd.f32 %v4084, %v4253
        %v4318 = vadd.f32 %v4085, %v4254
        %v4319 = vadd.f32 %v4086, %v4255
        %v4320 = vadd.f32 %v4087, %v4256
        %v4321 = vadd.f32 %v4088, %v4257
        %v4322 = vadd.f32 %v4089, %v4258
        %v4323 = vadd.f32 %v4090, %v4259
        %v4324 = vadd.f32 %v4091, %v4260
        %v4325 = vadd.f32 %v4092, %v4261
        %v4326 = vadd.f32 %v4093, %v4262
        %v4327 = vadd.f32 %v4094, %v4263
        %v4328 = vadd.f32 %v4095, %v4264
        %v4329 = vadd.f32 %v4096, %v4265
        %v4330 = vadd.f32 %v4097, %v4266
        %v4331 = vadd.f32 %v4098, %v4267
        %v4332 = vadd.f32 %v4099, %v4268
        %v4333 = vadd.f32 %v4100, %v4269
        %v4334 = vadd.f32 %v4101, %v4270
        %v4335 = vadd.f32 %v4102, %v4271
        %v4336 = vadd.f32 %v4103, %v4272
        %v4337 = vadd.f32 %v4104, %v4273
        %4338 = vst [vmem:[%s264] sm:$0xff] %v4306
        %4339 = vst [vmem:[%s264 + $0x8] sm:$0xff] %v4307
        %4340 = vst [vmem:[%s264 + $0x10] sm:$0xff] %v4308
        %4341 = vst [vmem:[%s264 + $0x18] sm:$0xff] %v4309
        %4342 = vst [vmem:[%s264 + $0x20] sm:$0xff] %v4310
        %4343 = vst [vmem:[%s264 + $0x28] sm:$0xff] %v4311
        %4344 = vst [vmem:[%s264 + $0x30] sm:$0xff] %v4312
        %4345 = vst [vmem:[%s264 + $0x38] sm:$0xff] %v4313
        %4346 = vst [vmem:[%s264 + $0x40] sm:$0xff] %v4314
        %4347 = vst [vmem:[%s264 + $0x48] sm:$0xff] %v4315
        %4348 = vst [vmem:[%s264 + $0x50] sm:$0xff] %v4316
        %4349 = vst [vmem:[%s264 + $0x58] sm:$0xff] %v4317
        %4350 = vst [vmem:[%s264 + $0x60] sm:$0xff] %v4318
        %4351 = vst [vmem:[%s264 + $0x68] sm:$0xff] %v4319
        %4352 = vst [vmem:[%s264 + $0x70] sm:$0xff] %v4320
        %4353 = vst [vmem:[%s264 + $0x78] sm:$0xff] %v4321
        %4354 = vst [vmem:[%s264 + $0x80] sm:$0xff] %v4322
        %4355 = vst [vmem:[%s264 + $0x88] sm:$0xff] %v4323
        %4356 = vst [vmem:[%s264 + $0x90] sm:$0xff] %v4324
        %4357 = vst [vmem:[%s264 + $0x98] sm:$0xff] %v4325
        %4358 = vst [vmem:[%s264 + $0xa0] sm:$0xff] %v4326
        %4359 = vst [vmem:[%s264 + $0xa8] sm:$0xff] %v4327
        %4360 = vst [vmem:[%s264 + $0xb0] sm:$0xff] %v4328
        %4361 = vst [vmem:[%s264 + $0xb8] sm:$0xff] %v4329
        %4362 = vst [vmem:[%s264 + $0xc0] sm:$0xff] %v4330
        %4363 = vst [vmem:[%s264 + $0xc8] sm:$0xff] %v4331
        %4364 = vst [vmem:[%s264 + $0xd0] sm:$0xff] %v4332
        %4365 = vst [vmem:[%s264 + $0xd8] sm:$0xff] %v4333
        %4366 = vst [vmem:[%s264 + $0xe0] sm:$0xff] %v4334
        %4367 = vst [vmem:[%s264 + $0xe8] sm:$0xff] %v4335
        %4368 = vst [vmem:[%s264 + $0xf0] sm:$0xff] %v4336
        %4369 = vst [vmem:[%s264 + $0xf8] sm:$0xff] %v4337
        %s4370 = sand.u32 %s128, 1
        %s4371 = scalar_lea.sflag [#allocation4], %s4370
        %s4372 = sand.u32 %s128, 1
        %s4373 = smul.addr %s4372, 256
        %s4374 = scalar_lea.vmem [#allocation8], %s4373
        // Predicated region
        $region45: #{tpu_custom_call.1} parent=31 // pred_check
          %p4375 = pneg %p138
        $region46: #{tpu_custom_call.1} parent=31 // pred_check_branch
          %4377 = sbr.rel (%p4375) target = $region48
        $region47: #{tpu_custom_call.1} parent=31 // pred_region
          %s4378 = smul.u32 32, %s26
          %s4380 = ssub.s32 4096, 4096
          %4381 = vsyncadd %s4371, %s4380
          %s4382 = smul.addr %s25, 32
          %s4383 = sadd.s32 %s4378, %s4382
          %s4384 = smul.addr %s4383, 128
          %s4385 = scalar_lea.hbm %s3, %s4384
          %s4387 = sshll.u32 %s4374, 4
          %s4388 = int_to_ptr.vmem [resolvable:$true] %s4387
          %4390 = dma.vmem_to_hbm [thread:$0]  %s4388, 4096, %s4385, %s4371
        $region48: #{tpu_custom_call.1} parent=31 // pred_fallthru
          _
      $region32: #{tpu_custom_call.1} parent=5 // pred_fallthru
        _
      %p4391 = scmp.le.s32.totalorder 2, %s16
      // Predicated region
      $region49: #{tpu_custom_call.1} parent=5 // pred_check
        %p4392 = pneg %p4391
      $region50: #{tpu_custom_call.1} parent=5 // pred_check_branch
        %4394 = sbr.rel (%p4392) target = $region52
      $region51: #{tpu_custom_call.1} parent=5 // pred_region
        %s4395 = ssub.s32 %s16, 2
        // Predicated region
        $region53: #{tpu_custom_call.1} parent=51 // pred_check
          %p4396 = pneg %p144
        $region54: #{tpu_custom_call.1} parent=51 // pred_check_branch
          %4398 = sbr.rel (%p4396) target = $region56
        $region55: #{tpu_custom_call.1} parent=51 // pred_region
          %s4399 = sand.u32 %s129, 1
          %s4400 = scalar_lea.sflag [#allocation4], %s4399
          %s4401 = sand.u32 %s129, 1
          %s4402 = smul.addr %s4401, 256
          %s4403 = scalar_lea.vmem [#allocation8], %s4402
          %4404 = dma.done %s4400, 4096
        $region56: #{tpu_custom_call.1} parent=51 // pred_fallthru
          _
      $region52: #{tpu_custom_call.1} parent=5 // pred_fallthru
        _
    $region6: #{tpu_custom_call.1} parent=1 // loop_footer
      %s20 = sadd.s32 1, %s16
    $region7: #{tpu_custom_call.1} parent=1 // loop_footer_branch
      %15 = sbr.rel target = $region3
    $region8: #{tpu_custom_call.1} parent=1 // loop_exit
      _
    %4405 = vsyncpa [#allocation3], 1
    %s4406 = scalar_lea.sflag [#allocation3], 1
    %4407 = vsyncpa %s4406, 1
    %4408 = vsyncpa [#allocation6], 1
    %s4409 = scalar_lea.sflag [#allocation6], 1
    %4410 = vsyncpa %s4409, 1
    %4411 = vsyncpa [#allocation4], 1
    %s4412 = scalar_lea.sflag [#allocation4], 1
    %4413 = vsyncpa %s4412, 1

</llo_original>
